<compile_context>
chip_gen: v7x
topology: tpu7x:2x2x1
jax: 0.10.0
libtpu: 0.0.40
codegen_flags: <defaults>
</compile_context>

<pallas_src>
import numpy as np

import jax
import jax.numpy as jnp
from jax.experimental import pallas as pl
from jax.experimental.pallas import tpu as pltpu


# ----------------------------------------------------------------------------
# The fused kernel (runs once per image; grid = (batch,), "parallel")
# ----------------------------------------------------------------------------
def _simple_cnn_kernel(x_ref, m1_ref, b1_ref, sh1_ref, sw1_ref,
                       m2_ref, b2_ref, sh2_ref, sw2_ref,
                       f1w_ref, f1b_ref, f2w_ref, f2b_ref,
                       o_ref, xpad_ref, p1pad_ref):
    f32 = jnp.float32

    def dot(a, b):
        return jnp.dot(a, b, preferred_element_type=f32)

    # ---- conv1 (3x3, pad=1) + bias + ReLU on a (28, 28*16) lane-dense slab --
    # H padding lives in the scratch rows; the W shift/padding is folded into
    # the pre-expanded weight slabs m1[kh] (28, 448) -> conv1 == 3 matmuls.
    xpad_ref[...] = jnp.zeros_like(xpad_ref)
    xpad_ref[1:29, :] = x_ref[0, 0]                              # (28, 28) image
    a1 = jnp.zeros((28, 448), f32)
    for kh in range(3):
        a1 = a1 + dot(xpad_ref[kh:kh + 28, :], m1_ref[kh])
    a1 = jnp.maximum(a1 + b1_ref[...], 0.0)                      # (28, 448) = (H, W*16)

    # ---- 2x2 max-pool #1: 0/1 selection matmuls + elementwise max -----------
    t1 = jnp.maximum(dot(sh1_ref[0], a1), dot(sh1_ref[1], a1))   # pool rows (H) -> (14, 448)
    p1 = jnp.maximum(dot(t1, sw1_ref[0]), dot(t1, sw1_ref[1]))   # pool lane groups (W) -> (14, 224)

    # ---- conv2 (3x3, pad=1) + bias + ReLU on a (14, 14*32) slab --------------
    p1pad_ref[...] = jnp.zeros_like(p1pad_ref)
    p1pad_ref[1:15, :] = p1
    a2 = jnp.zeros((14, 448), f32)
    for kh in range(3):
        a2 = a2 + dot(p1pad_ref[kh:kh + 14, :], m2_ref[kh])
    a2 = jnp.maximum(a2 + b2_ref[...], 0.0)                      # (14, 448) = (H, W*32)

    # ---- 2x2 max-pool #2 ------------------------------------------------------
    t2 = jnp.maximum(dot(sh2_ref[0], a2), dot(sh2_ref[1], a2))   # (7, 448)
    p2 = jnp.maximum(dot(t2, sw2_ref[0]), dot(t2, sw2_ref[1]))   # (7, 224) = (H, W*32)

    # ---- fc1 + ReLU: PyTorch CHW-flatten order is folded into f1w[i] ----------
    h = jnp.zeros((1, 128), f32)
    for i in range(7):
        h = h + dot(p2[i:i + 1, :], f1w_ref[i])                  # (1,224) @ (224,128)
    h = jnp.maximum(h + f1b_ref[...], 0.0)                       # (1, 128)

    # TODO(synk): nn.Dropout(0.5) is identity in eval/inference mode; the
    # training-mode stochastic mask (pltpu.prng_*) is intentionally omitted.

    # ---- fc2 + log_softmax ------------------------------------------------------
    logits = dot(h, f2w_ref[...]) + f2b_ref[...]                 # (1, 10)
    m = jnp.max(logits, axis=-1, keepdims=True)
    s = logits - m
    lse = jnp.log(jnp.sum(jnp.exp(s), axis=-1, keepdims=True))
    o_ref[0] = s - lse


# ----------------------------------------------------------------------------
# One-time parameter preparation (hoisted out of the per-forward hot path)
# ----------------------------------------------------------------------------
def prepare_params(p):
    """Convert PyTorch-layout params into the fused-kernel layout (runs once)."""
    w1 = np.asarray(p["conv1_w"], np.float32)          # (16, 1, 3, 3)
    w2 = np.asarray(p["conv2_w"], np.float32)          # (32, 16, 3, 3)

    # conv1: m1[kh][u, w*16 + c] = w1[c, 0, kh, u - w + 1]   (u = input col, w = output col)
    m1 = np.zeros((3, 28, 28 * 16), np.float32)
    for kh in range(3):
        for w in range(28):
            for kw in range(3):
                u = w + kw - 1
                if 0 <= u < 28:
                    m1[kh, u, w * 16:(w + 1) * 16] = w1[:, 0, kh, kw]

    # conv2: m2[kh][u*16 + c1, w*32 + c2] = w2[c2, c1, kh, u - w + 1]
    m2 = np.zeros((3, 14 * 16, 14 * 32), np.float32)
    for kh in range(3):
        for w in range(14):
            for kw in range(3):
                u = w + kw - 1
                if 0 <= u < 14:
                    m2[kh, u * 16:(u + 1) * 16, w * 32:(w + 1) * 32] = w2[:, :, kh, kw].T

    # 2x2 max-pool selection matrices (even / odd picks; pool = max of the two).
    sh1 = np.zeros((2, 14, 28), np.float32)
    sh1[0, np.arange(14), 2 * np.arange(14)] = 1.0
    sh1[1, np.arange(14), 2 * np.arange(14) + 1] = 1.0
    sw1 = np.zeros((2, 28 * 16, 14 * 16), np.float32)
    for par in range(2):
        for wo in range(14):
            wi = 2 * wo + par
            sw1[par, wi * 16:(wi + 1) * 16, wo * 16:(wo + 1) * 16] = np.eye(16, dtype=np.float32)

    sh2 = np.zeros((2, 7, 14), np.float32)
    sh2[0, np.arange(7), 2 * np.arange(7)] = 1.0
    sh2[1, np.arange(7), 2 * np.arange(7) + 1] = 1.0
    sw2 = np.zeros((2, 14 * 32, 7 * 32), np.float32)
    for par in range(2):
        for wo in range(7):
            wi = 2 * wo + par
            sw2[par, wi * 32:(wi + 1) * 32, wo * 32:(wo + 1) * 32] = np.eye(32, dtype=np.float32)

    # fc1: torch flatten index = c*49 + i*7 + j  <->  kernel P2[i, j*32 + c]
    f1 = np.asarray(p["fc1_w"], np.float32)                         # (128, 1568)
    f1 = f1.reshape(128, 32, 7, 7).transpose(2, 3, 1, 0)            # (i, j, c, n)
    f1 = np.ascontiguousarray(f1).reshape(7, 7 * 32, 128)           # (i, j*32+c, n)

    return {
        "m1": jnp.asarray(m1),
        "b1": jnp.asarray(np.tile(np.asarray(p["conv1_b"], np.float32), 28)[None, :]),   # (1, 448)
        "sh1": jnp.asarray(sh1), "sw1": jnp.asarray(sw1),
        "m2": jnp.asarray(m2),
        "b2": jnp.asarray(np.tile(np.asarray(p["conv2_b"], np.float32), 14)[None, :]),   # (1, 448)
        "sh2": jnp.asarray(sh2), "sw2": jnp.asarray(sw2),
        "f1w": jnp.asarray(f1),
        "f1b": jnp.asarray(np.asarray(p["fc1_b"], np.float32)[None, :]),                 # (1, 128)
        "f2w": jnp.asarray(np.asarray(p["fc2_w"], np.float32).T),                        # (128, 10)
        "f2b": jnp.asarray(np.asarray(p["fc2_b"], np.float32)[None, :]),                 # (1, 10)
    }


# ----------------------------------------------------------------------------
# Forward pass: one pallas_call, grid over the batch
# ----------------------------------------------------------------------------
def simple_cnn_forward(x, kp):
    """x: (N, 1, 28, 28) float32 NCHW. Returns (N, 10) log-probabilities."""
    n = x.shape[0]
    f32 = jnp.float32

    def whole(a):
        nd = a.ndim
        return pl.BlockSpec(a.shape, lambda b, _nd=nd: (0,) * _nd)

    args = (x.astype(f32), kp["m1"], kp["b1"], kp["sh1"], kp["sw1"],
            kp["m2"], kp["b2"], kp["sh2"], kp["sw2"],
            kp["f1w"], kp["f1b"], kp["f2w"], kp["f2b"])

    in_specs = [pl.BlockSpec((1, 1, 28, 28), lambda b: (b, 0, 0, 0))]
    in_specs += [whole(a) for a in args[1:]]

    out = pl.pallas_call(
        _simple_cnn_kernel,
        out_shape=jax.ShapeDtypeStruct((n, 1, 10), f32),
        grid=(n,),
        in_specs=in_specs,
        out_specs=pl.BlockSpec((1, 1, 10), lambda b: (b, 0, 0)),
        scratch_shapes=[pltpu.VMEM((30, 28), f32),     # H-padded conv1 input slab
                        pltpu.VMEM((16, 224), f32)],   # H-padded pooled1 slab
        compiler_params=pltpu.CompilerParams(
            dimension_semantics=("parallel",),
            vmem_limit_bytes=32 * 1024 * 1024),
    )(*args)
    return out.reshape(n, 10)


# ----------------------------------------------------------------------------
# Torch-layout parameter init + pure-JAX reference (for a correctness check)
# ----------------------------------------------------------------------------
def init_params(key):
    ks = jax.random.split(key, 8)
    s = 0.05
    return {
        # torch layouts: Conv2d weight (Cout, Cin, KH, KW); Linear weight (out, in)
        "conv1_w": s * jax.random.normal(ks[0], (16, 1, 3, 3), jnp.float32),
        "conv1_b": s * jax.random.normal(ks[1], (16,), jnp.float32),
        "conv2_w": s * jax.random.normal(ks[2], (32, 16, 3, 3), jnp.float32),
        "conv2_b": s * jax.random.normal(ks[3], (32,), jnp.float32),
        "fc1_w": s * jax.random.normal(ks[4], (128, 32 * 7 * 7), jnp.float32),
        "fc1_b": s * jax.random.normal(ks[5], (128,), jnp.float32),
        "fc2_w": s * jax.random.normal(ks[6], (10, 128), jnp.float32),
        "fc2_b": s * jax.random.normal(ks[7], (10,), jnp.float32),
    }


def reference_forward(x, params):
    """Plain XLA reference of SimpleCNN.forward (test-only, not the kernel path)."""
    hi = jax.lax.Precision.HIGHEST
    y = jax.lax.conv_general_dilated(
        x, params["conv1_w"], (1, 1), ((1, 1), (1, 1)),
        dimension_numbers=("NCHW", "OIHW", "NCHW"), precision=hi)
    y = jax.nn.relu(y + params["conv1_b"].reshape(1, -1, 1, 1))
    y = jax.lax.reduce_window(y, -jnp.inf, jax.lax.max, (1, 1, 2, 2), (1, 1, 2, 2), "VALID")
    y = jax.lax.conv_general_dilated(
        y, params["conv2_w"], (1, 1), ((1, 1), (1, 1)),
        dimension_numbers=("NCHW", "OIHW", "NCHW"), precision=hi)
    y = jax.nn.relu(y + params["conv2_b"].reshape(1, -1, 1, 1))
    y = jax.lax.reduce_window(y, -jnp.inf, jax.lax.max, (1, 1, 2, 2), (1, 1, 2, 2), "VALID")
    y = y.reshape(y.shape[0], 32 * 7 * 7)
    y = jax.nn.relu(jnp.dot(y, params["fc1_w"].T, precision=hi) + params["fc1_b"])
    logits = jnp.dot(y, params["fc2_w"].T, precision=hi) + params["fc2_b"]
    return jax.nn.log_softmax(logits, axis=1)


if __name__ == "__main__":
    key = jax.random.PRNGKey(0)
    k_param, k_x = jax.random.split(key)
    params = init_params(k_param)          # PyTorch-layout parameters
    kparams = prepare_params(params)       # one-time kernel-layout prep (hoisted)
    x = jax.random.normal(k_x, (2, 1, 28, 28), jnp.float32)  # NCHW like PyTorch

    fwd = jax.jit(simple_cnn_forward)
    out = jax.block_until_ready(fwd(x, kparams))

    assert out.shape == (2, 10), out.shape
    # log_softmax rows must exponentiate-sum to 1
    row_sums = jnp.exp(out).sum(axis=1)
    assert bool(jnp.all(jnp.abs(row_sums - 1.0) < 1e-4)), row_sums
    # compare against the plain-XLA reference of the PyTorch module
    ref = reference_forward(x, params)
    max_err = float(jnp.max(jnp.abs(out - ref)))
    assert max_err < 1e-2, f"mismatch vs reference: {max_err}"
    print("KERNEL_OK")
</pallas_src>

<mosaic_0001>
module attributes {stable_mosaic.version = 11 : i64} {
  func.func @_simple_cnn_kernel(%arg0: i32, %arg1: memref<1x1x28x28xf32, #tpu.memory_space<vmem>>, %arg2: memref<3x28x448xf32, #tpu.memory_space<vmem>>, %arg3: memref<1x448xf32, #tpu.memory_space<vmem>>, %arg4: memref<2x14x28xf32, #tpu.memory_space<vmem>>, %arg5: memref<2x448x224xf32, #tpu.memory_space<vmem>>, %arg6: memref<3x224x448xf32, #tpu.memory_space<vmem>>, %arg7: memref<1x448xf32, #tpu.memory_space<vmem>>, %arg8: memref<2x7x14xf32, #tpu.memory_space<vmem>>, %arg9: memref<2x448x224xf32, #tpu.memory_space<vmem>>, %arg10: memref<7x224x128xf32, #tpu.memory_space<vmem>>, %arg11: memref<1x128xf32, #tpu.memory_space<vmem>>, %arg12: memref<128x10xf32, #tpu.memory_space<vmem>>, %arg13: memref<1x10xf32, #tpu.memory_space<vmem>>, %arg14: memref<1x1x10xf32, #tpu.memory_space<vmem>>, %arg15: memref<30x28xf32, #tpu.memory_space<vmem>>, %arg16: memref<16x224xf32, #tpu.memory_space<vmem>>) attributes {dimension_semantics = [#tpu.dimension_semantics<parallel>], iteration_bounds = array<i64: 2>, scalar_prefetch = 0 : i64, scratch_operands = 2 : i64, tpu.core_type = #tpu.core_type<tc>, window_params = [{transform_indices = @transform_0, window_bounds = array<i64: 1, 1, 28, 28>}, {pipeline_mode = #tpu.pipeline_mode<synchronous>, transform_indices = @transform_1, window_bounds = array<i64: 3, 28, 448>}, {pipeline_mode = #tpu.pipeline_mode<synchronous>, transform_indices = @transform_2, window_bounds = array<i64: 1, 448>}, {pipeline_mode = #tpu.pipeline_mode<synchronous>, transform_indices = @transform_3, window_bounds = array<i64: 2, 14, 28>}, {pipeline_mode = #tpu.pipeline_mode<synchronous>, transform_indices = @transform_4, window_bounds = array<i64: 2, 448, 224>}, {pipeline_mode = #tpu.pipeline_mode<synchronous>, transform_indices = @transform_5, window_bounds = array<i64: 3, 224, 448>}, {pipeline_mode = #tpu.pipeline_mode<synchronous>, transform_indices = @transform_6, window_bounds = array<i64: 1, 448>}, {pipeline_mode = #tpu.pipeline_mode<synchronous>, transform_indices = @transform_7, window_bounds = array<i64: 2, 7, 14>}, {pipeline_mode = #tpu.pipeline_mode<synchronous>, transform_indices = @transform_8, window_bounds = array<i64: 2, 448, 224>}, {pipeline_mode = #tpu.pipeline_mode<synchronous>, transform_indices = @transform_9, window_bounds = array<i64: 7, 224, 128>}, {pipeline_mode = #tpu.pipeline_mode<synchronous>, transform_indices = @transform_10, window_bounds = array<i64: 1, 128>}, {pipeline_mode = #tpu.pipeline_mode<synchronous>, transform_indices = @transform_11, window_bounds = array<i64: 128, 10>}, {pipeline_mode = #tpu.pipeline_mode<synchronous>, transform_indices = @transform_12, window_bounds = array<i64: 1, 10>}, {transform_indices = @transform_13, window_bounds = array<i64: 1, 1, 10>}]} {
    %cst = arith.constant 0.000000e+00 : f32
    %0 = vector.broadcast %cst : f32 to vector<30x28xf32>
    %c0 = arith.constant 0 : index
    %c0_0 = arith.constant 0 : index
    %1 = vector.load %arg15[%c0, %c0_0] : memref<30x28xf32, #tpu.memory_space<vmem>>, vector<30x28xf32>
    tpu.vector_store %arg15[%c0, %c0_0], %0 {strides = array<i32>} : memref<30x28xf32, #tpu.memory_space<vmem>>, vector<30x28xf32>,
    %c0_1 = arith.constant 0 : index
    %c0_2 = arith.constant 0 : index
    %c0_3 = arith.constant 0 : index
    %c0_4 = arith.constant 0 : index
    %2 = vector.load %arg1[%c0_1, %c0_2, %c0_3, %c0_4] : memref<1x1x28x28xf32, #tpu.memory_space<vmem>>, vector<1x1x28x28xf32>
    %3 = vector.shape_cast %2 : vector<1x1x28x28xf32> to vector<28x28xf32>
    %c1 = arith.constant 1 : index
    %c0_5 = arith.constant 0 : index
    %4 = vector.load %arg15[%c1, %c0_5] : memref<30x28xf32, #tpu.memory_space<vmem>>, vector<28x28xf32>
    tpu.vector_store %arg15[%c1, %c0_5], %3 {strides = array<i32>} : memref<30x28xf32, #tpu.memory_space<vmem>>, vector<28x28xf32>,
    %cst_6 = arith.constant 0.000000e+00 : f32
    %5 = vector.broadcast %cst_6 : f32 to vector<28x448xf32>
    %c0_7 = arith.constant 0 : index
    %c0_8 = arith.constant 0 : index
    %6 = vector.load %arg15[%c0_7, %c0_8] : memref<30x28xf32, #tpu.memory_space<vmem>>, vector<28x28xf32>
    %c0_9 = arith.constant 0 : index
    %c0_10 = arith.constant 0 : index
    %c0_11 = arith.constant 0 : index
    %7 = vector.load %arg2[%c0_9, %c0_10, %c0_11] : memref<3x28x448xf32, #tpu.memory_space<vmem>>, vector<1x28x448xf32>
    %8 = vector.shape_cast %7 : vector<1x28x448xf32> to vector<28x448xf32>
    %cst_12 = arith.constant dense<0.000000e+00> : vector<28x448xf32>
    %9 = tpu.matmul %6, %8, %cst_12 {dimension_numbers = #tpu.dot_dimension_numbers<[1], [0], [0], [1], [0, 0, 1, 1], [], []>} : vector<28x28xf32>, vector<28x448xf32>, vector<28x448xf32> -> vector<28x448xf32>
    %10 = arith.addf %5, %9 : vector<28x448xf32>
    %c1_13 = arith.constant 1 : index
    %c0_14 = arith.constant 0 : index
    %11 = vector.load %arg15[%c1_13, %c0_14] : memref<30x28xf32, #tpu.memory_space<vmem>>, vector<28x28xf32>
    %c1_15 = arith.constant 1 : index
    %c0_16 = arith.constant 0 : index
    %c0_17 = arith.constant 0 : index
    %12 = vector.load %arg2[%c1_15, %c0_16, %c0_17] : memref<3x28x448xf32, #tpu.memory_space<vmem>>, vector<1x28x448xf32>
    %13 = vector.shape_cast %12 : vector<1x28x448xf32> to vector<28x448xf32>
    %cst_18 = arith.constant dense<0.000000e+00> : vector<28x448xf32>
    %14 = tpu.matmul %11, %13, %cst_18 {dimension_numbers = #tpu.dot_dimension_numbers<[1], [0], [0], [1], [0, 0, 1, 1], [], []>} : vector<28x28xf32>, vector<28x448xf32>, vector<28x448xf32> -> vector<28x448xf32>
    %15 = arith.addf %10, %14 : vector<28x448xf32>
    %c2 = arith.constant 2 : index
    %c0_19 = arith.constant 0 : index
    %16 = vector.load %arg15[%c2, %c0_19] : memref<30x28xf32, #tpu.memory_space<vmem>>, vector<28x28xf32>
    %c2_20 = arith.constant 2 : index
    %c0_21 = arith.constant 0 : index
    %c0_22 = arith.constant 0 : index
    %17 = vector.load %arg2[%c2_20, %c0_21, %c0_22] : memref<3x28x448xf32, #tpu.memory_space<vmem>>, vector<1x28x448xf32>
    %18 = vector.shape_cast %17 : vector<1x28x448xf32> to vector<28x448xf32>
    %cst_23 = arith.constant dense<0.000000e+00> : vector<28x448xf32>
    %19 = tpu.matmul %16, %18, %cst_23 {dimension_numbers = #tpu.dot_dimension_numbers<[1], [0], [0], [1], [0, 0, 1, 1], [], []>} : vector<28x28xf32>, vector<28x448xf32>, vector<28x448xf32> -> vector<28x448xf32>
    %20 = arith.addf %15, %19 : vector<28x448xf32>
    %c0_24 = arith.constant 0 : index
    %c0_25 = arith.constant 0 : index
    %21 = vector.load %arg3[%c0_24, %c0_25] : memref<1x448xf32, #tpu.memory_space<vmem>>, vector<1x448xf32>
    %22 = vector.broadcast %21 : vector<1x448xf32> to vector<28x448xf32>
    %23 = arith.addf %20, %22 : vector<28x448xf32>
    %cst_26 = arith.constant 0.000000e+00 : f32
    %24 = vector.broadcast %cst_26 : f32 to vector<28x448xf32>
    %25 = arith.maximumf %23, %24 : vector<28x448xf32>
    %c0_27 = arith.constant 0 : index
    %c0_28 = arith.constant 0 : index
    %c0_29 = arith.constant 0 : index
    %26 = vector.load %arg4[%c0_27, %c0_28, %c0_29] : memref<2x14x28xf32, #tpu.memory_space<vmem>>, vector<1x14x28xf32>
    %27 = vector.shape_cast %26 : vector<1x14x28xf32> to vector<14x28xf32>
    %cst_30 = arith.constant dense<0.000000e+00> : vector<14x448xf32>
    %28 = tpu.matmul %27, %25, %cst_30 {dimension_numbers = #tpu.dot_dimension_numbers<[1], [0], [0], [1], [0, 0, 1, 1], [], []>} : vector<14x28xf32>, vector<28x448xf32>, vector<14x448xf32> -> vector<14x448xf32>
    %c1_31 = arith.constant 1 : index
    %c0_32 = arith.constant 0 : index
    %c0_33 = arith.constant 0 : index
    %29 = vector.load %arg4[%c1_31, %c0_32, %c0_33] : memref<2x14x28xf32, #tpu.memory_space<vmem>>, vector<1x14x28xf32>
    %30 = vector.shape_cast %29 : vector<1x14x28xf32> to vector<14x28xf32>
    %cst_34 = arith.constant dense<0.000000e+00> : vector<14x448xf32>
    %31 = tpu.matmul %30, %25, %cst_34 {dimension_numbers = #tpu.dot_dimension_numbers<[1], [0], [0], [1], [0, 0, 1, 1], [], []>} : vector<14x28xf32>, vector<28x448xf32>, vector<14x448xf32> -> vector<14x448xf32>
    %32 = arith.maximumf %28, %31 : vector<14x448xf32>
    %c0_35 = arith.constant 0 : index
    %c0_36 = arith.constant 0 : index
    %c0_37 = arith.constant 0 : index
    %33 = vector.load %arg5[%c0_35, %c0_36, %c0_37] : memref<2x448x224xf32, #tpu.memory_space<vmem>>, vector<1x448x224xf32>
    %34 = vector.shape_cast %33 : vector<1x448x224xf32> to vector<448x224xf32>
    %cst_38 = arith.constant dense<0.000000e+00> : vector<14x224xf32>
    %35 = tpu.matmul %32, %34, %cst_38 {dimension_numbers = #tpu.dot_dimension_numbers<[1], [0], [0], [1], [0, 0, 1, 1], [], []>} : vector<14x448xf32>, vector<448x224xf32>, vector<14x224xf32> -> vector<14x224xf32>
    %c1_39 = arith.constant 1 : index
    %c0_40 = arith.constant 0 : index
    %c0_41 = arith.constant 0 : index
    %36 = vector.load %arg5[%c1_39, %c0_40, %c0_41] : memref<2x448x224xf32, #tpu.memory_space<vmem>>, vector<1x448x224xf32>
    %37 = vector.shape_cast %36 : vector<1x448x224xf32> to vector<448x224xf32>
    %cst_42 = arith.constant dense<0.000000e+00> : vector<14x224xf32>
    %38 = tpu.matmul %32, %37, %cst_42 {dimension_numbers = #tpu.dot_dimension_numbers<[1], [0], [0], [1], [0, 0, 1, 1], [], []>} : vector<14x448xf32>, vector<448x224xf32>, vector<14x224xf32> -> vector<14x224xf32>
    %39 = arith.maximumf %35, %38 : vector<14x224xf32>
    %cst_43 = arith.constant 0.000000e+00 : f32
    %40 = vector.broadcast %cst_43 : f32 to vector<16x224xf32>
    %c0_44 = arith.constant 0 : index
    %c0_45 = arith.constant 0 : index
    %41 = vector.load %arg16[%c0_44, %c0_45] : memref<16x224xf32, #tpu.memory_space<vmem>>, vector<16x224xf32>
    tpu.vector_store %arg16[%c0_44, %c0_45], %40 {strides = array<i32>} : memref<16x224xf32, #tpu.memory_space<vmem>>, vector<16x224xf32>,
    %c1_46 = arith.constant 1 : index
    %c0_47 = arith.constant 0 : index
    %42 = vector.load %arg16[%c1_46, %c0_47] : memref<16x224xf32, #tpu.memory_space<vmem>>, vector<14x224xf32>
    tpu.vector_store %arg16[%c1_46, %c0_47], %39 {strides = array<i32>} : memref<16x224xf32, #tpu.memory_space<vmem>>, vector<14x224xf32>,
    %cst_48 = arith.constant 0.000000e+00 : f32
    %43 = vector.broadcast %cst_48 : f32 to vector<14x448xf32>
    %c0_49 = arith.constant 0 : index
    %c0_50 = arith.constant 0 : index
    %44 = vector.load %arg16[%c0_49, %c0_50] : memref<16x224xf32, #tpu.memory_space<vmem>>, vector<14x224xf32>
    %c0_51 = arith.constant 0 : index
    %c0_52 = arith.constant 0 : index
    %c0_53 = arith.constant 0 : index
    %45 = vector.load %arg6[%c0_51, %c0_52, %c0_53] : memref<3x224x448xf32, #tpu.memory_space<vmem>>, vector<1x224x448xf32>
    %46 = vector.shape_cast %45 : vector<1x224x448xf32> to vector<224x448xf32>
    %cst_54 = arith.constant dense<0.000000e+00> : vector<14x448xf32>
    %47 = tpu.matmul %44, %46, %cst_54 {dimension_numbers = #tpu.dot_dimension_numbers<[1], [0], [0], [1], [0, 0, 1, 1], [], []>} : vector<14x224xf32>, vector<224x448xf32>, vector<14x448xf32> -> vector<14x448xf32>
    %48 = arith.addf %43, %47 : vector<14x448xf32>
    %c1_55 = arith.constant 1 : index
    %c0_56 = arith.constant 0 : index
    %49 = vector.load %arg16[%c1_55, %c0_56] : memref<16x224xf32, #tpu.memory_space<vmem>>, vector<14x224xf32>
    %c1_57 = arith.constant 1 : index
    %c0_58 = arith.constant 0 : index
    %c0_59 = arith.constant 0 : index
    %50 = vector.load %arg6[%c1_57, %c0_58, %c0_59] : memref<3x224x448xf32, #tpu.memory_space<vmem>>, vector<1x224x448xf32>
    %51 = vector.shape_cast %50 : vector<1x224x448xf32> to vector<224x448xf32>
    %cst_60 = arith.constant dense<0.000000e+00> : vector<14x448xf32>
    %52 = tpu.matmul %49, %51, %cst_60 {dimension_numbers = #tpu.dot_dimension_numbers<[1], [0], [0], [1], [0, 0, 1, 1], [], []>} : vector<14x224xf32>, vector<224x448xf32>, vector<14x448xf32> -> vector<14x448xf32>
    %53 = arith.addf %48, %52 : vector<14x448xf32>
    %c2_61 = arith.constant 2 : index
    %c0_62 = arith.constant 0 : index
    %54 = vector.load %arg16[%c2_61, %c0_62] : memref<16x224xf32, #tpu.memory_space<vmem>>, vector<14x224xf32>
    %c2_63 = arith.constant 2 : index
    %c0_64 = arith.constant 0 : index
    %c0_65 = arith.constant 0 : index
    %55 = vector.load %arg6[%c2_63, %c0_64, %c0_65] : memref<3x224x448xf32, #tpu.memory_space<vmem>>, vector<1x224x448xf32>
    %56 = vector.shape_cast %55 : vector<1x224x448xf32> to vector<224x448xf32>
    %cst_66 = arith.constant dense<0.000000e+00> : vector<14x448xf32>
    %57 = tpu.matmul %54, %56, %cst_66 {dimension_numbers = #tpu.dot_dimension_numbers<[1], [0], [0], [1], [0, 0, 1, 1], [], []>} : vector<14x224xf32>, vector<224x448xf32>, vector<14x448xf32> -> vector<14x448xf32>
    %58 = arith.addf %53, %57 : vector<14x448xf32>
    %c0_67 = arith.constant 0 : index
    %c0_68 = arith.constant 0 : index
    %59 = vector.load %arg7[%c0_67, %c0_68] : memref<1x448xf32, #tpu.memory_space<vmem>>, vector<1x448xf32>
    %60 = vector.broadcast %59 : vector<1x448xf32> to vector<14x448xf32>
    %61 = arith.addf %58, %60 : vector<14x448xf32>
    %cst_69 = arith.constant 0.000000e+00 : f32
    %62 = vector.broadcast %cst_69 : f32 to vector<14x448xf32>
    %63 = arith.maximumf %61, %62 : vector<14x448xf32>
    %c0_70 = arith.constant 0 : index
    %c0_71 = arith.constant 0 : index
    %c0_72 = arith.constant 0 : index
    %64 = vector.load %arg8[%c0_70, %c0_71, %c0_72] : memref<2x7x14xf32, #tpu.memory_space<vmem>>, vector<1x7x14xf32>
    %65 = vector.shape_cast %64 : vector<1x7x14xf32> to vector<7x14xf32>
    %cst_73 = arith.constant dense<0.000000e+00> : vector<7x448xf32>
    %66 = tpu.matmul %65, %63, %cst_73 {dimension_numbers = #tpu.dot_dimension_numbers<[1], [0], [0], [1], [0, 0, 1, 1], [], []>} : vector<7x14xf32>, vector<14x448xf32>, vector<7x448xf32> -> vector<7x448xf32>
    %c1_74 = arith.constant 1 : index
    %c0_75 = arith.constant 0 : index
    %c0_76 = arith.constant 0 : index
    %67 = vector.load %arg8[%c1_74, %c0_75, %c0_76] : memref<2x7x14xf32, #tpu.memory_space<vmem>>, vector<1x7x14xf32>
    %68 = vector.shape_cast %67 : vector<1x7x14xf32> to vector<7x14xf32>
    %cst_77 = arith.constant dense<0.000000e+00> : vector<7x448xf32>
    %69 = tpu.matmul %68, %63, %cst_77 {dimension_numbers = #tpu.dot_dimension_numbers<[1], [0], [0], [1], [0, 0, 1, 1], [], []>} : vector<7x14xf32>, vector<14x448xf32>, vector<7x448xf32> -> vector<7x448xf32>
    %70 = arith.maximumf %66, %69 : vector<7x448xf32>
    %c0_78 = arith.constant 0 : index
    %c0_79 = arith.constant 0 : index
    %c0_80 = arith.constant 0 : index
    %71 = vector.load %arg9[%c0_78, %c0_79, %c0_80] : memref<2x448x224xf32, #tpu.memory_space<vmem>>, vector<1x448x224xf32>
    %72 = vector.shape_cast %71 : vector<1x448x224xf32> to vector<448x224xf32>
    %cst_81 = arith.constant dense<0.000000e+00> : vector<7x224xf32>
    %73 = tpu.matmul %70, %72, %cst_81 {dimension_numbers = #tpu.dot_dimension_numbers<[1], [0], [0], [1], [0, 0, 1, 1], [], []>} : vector<7x448xf32>, vector<448x224xf32>, vector<7x224xf32> -> vector<7x224xf32>
    %c1_82 = arith.constant 1 : index
    %c0_83 = arith.constant 0 : index
    %c0_84 = arith.constant 0 : index
    %74 = vector.load %arg9[%c1_82, %c0_83, %c0_84] : memref<2x448x224xf32, #tpu.memory_space<vmem>>, vector<1x448x224xf32>
    %75 = vector.shape_cast %74 : vector<1x448x224xf32> to vector<448x224xf32>
    %cst_85 = arith.constant dense<0.000000e+00> : vector<7x224xf32>
    %76 = tpu.matmul %70, %75, %cst_85 {dimension_numbers = #tpu.dot_dimension_numbers<[1], [0], [0], [1], [0, 0, 1, 1], [], []>} : vector<7x448xf32>, vector<448x224xf32>, vector<7x224xf32> -> vector<7x224xf32>
    %77 = arith.maximumf %73, %76 : vector<7x224xf32>
    %cst_86 = arith.constant 0.000000e+00 : f32
    %78 = vector.broadcast %cst_86 : f32 to vector<1x128xf32>
    %79 = vector.extract_strided_slice %77 {offsets = [0, 0], sizes = [1, 224], strides = [1, 1]} : vector<7x224xf32> to vector<1x224xf32>
    %c0_87 = arith.constant 0 : index
    %c0_88 = arith.constant 0 : index
    %c0_89 = arith.constant 0 : index
    %80 = vector.load %arg10[%c0_87, %c0_88, %c0_89] : memref<7x224x128xf32, #tpu.memory_space<vmem>>, vector<1x224x128xf32>
    %81 = vector.shape_cast %80 : vector<1x224x128xf32> to vector<224x128xf32>
    %cst_90 = arith.constant dense<0.000000e+00> : vector<1x128xf32>
    %82 = tpu.matmul %79, %81, %cst_90 {dimension_numbers = #tpu.dot_dimension_numbers<[1], [0], [0], [1], [0, 0, 1, 1], [], []>} : vector<1x224xf32>, vector<224x128xf32>, vector<1x128xf32> -> vector<1x128xf32>
    %83 = arith.addf %78, %82 : vector<1x128xf32>
    %84 = vector.extract_strided_slice %77 {offsets = [1, 0], sizes = [1, 224], strides = [1, 1]} : vector<7x224xf32> to vector<1x224xf32>
    %c1_91 = arith.constant 1 : index
    %c0_92 = arith.constant 0 : index
    %c0_93 = arith.constant 0 : index
    %85 = vector.load %arg10[%c1_91, %c0_92, %c0_93] : memref<7x224x128xf32, #tpu.memory_space<vmem>>, vector<1x224x128xf32>
    %86 = vector.shape_cast %85 : vector<1x224x128xf32> to vector<224x128xf32>
    %cst_94 = arith.constant dense<0.000000e+00> : vector<1x128xf32>
    %87 = tpu.matmul %84, %86, %cst_94 {dimension_numbers = #tpu.dot_dimension_numbers<[1], [0], [0], [1], [0, 0, 1, 1], [], []>} : vector<1x224xf32>, vector<224x128xf32>, vector<1x128xf32> -> vector<1x128xf32>
    %88 = arith.addf %83, %87 : vector<1x128xf32>
    %89 = vector.extract_strided_slice %77 {offsets = [2, 0], sizes = [1, 224], strides = [1, 1]} : vector<7x224xf32> to vector<1x224xf32>
    %c2_95 = arith.constant 2 : index
    %c0_96 = arith.constant 0 : index
    %c0_97 = arith.constant 0 : index
    %90 = vector.load %arg10[%c2_95, %c0_96, %c0_97] : memref<7x224x128xf32, #tpu.memory_space<vmem>>, vector<1x224x128xf32>
    %91 = vector.shape_cast %90 : vector<1x224x128xf32> to vector<224x128xf32>
    %cst_98 = arith.constant dense<0.000000e+00> : vector<1x128xf32>
    %92 = tpu.matmul %89, %91, %cst_98 {dimension_numbers = #tpu.dot_dimension_numbers<[1], [0], [0], [1], [0, 0, 1, 1], [], []>} : vector<1x224xf32>, vector<224x128xf32>, vector<1x128xf32> -> vector<1x128xf32>
    %93 = arith.addf %88, %92 : vector<1x128xf32>
    %94 = vector.extract_strided_slice %77 {offsets = [3, 0], sizes = [1, 224], strides = [1, 1]} : vector<7x224xf32> to vector<1x224xf32>
    %c3 = arith.constant 3 : index
    %c0_99 = arith.constant 0 : index
    %c0_100 = arith.constant 0 : index
    %95 = vector.load %arg10[%c3, %c0_99, %c0_100] : memref<7x224x128xf32, #tpu.memory_space<vmem>>, vector<1x224x128xf32>
    %96 = vector.shape_cast %95 : vector<1x224x128xf32> to vector<224x128xf32>
    %cst_101 = arith.constant dense<0.000000e+00> : vector<1x128xf32>
    %97 = tpu.matmul %94, %96, %cst_101 {dimension_numbers = #tpu.dot_dimension_numbers<[1], [0], [0], [1], [0, 0, 1, 1], [], []>} : vector<1x224xf32>, vector<224x128xf32>, vector<1x128xf32> -> vector<1x128xf32>
    %98 = arith.addf %93, %97 : vector<1x128xf32>
    %99 = vector.extract_strided_slice %77 {offsets = [4, 0], sizes = [1, 224], strides = [1, 1]} : vector<7x224xf32> to vector<1x224xf32>
    %c4 = arith.constant 4 : index
    %c0_102 = arith.constant 0 : index
    %c0_103 = arith.constant 0 : index
    %100 = vector.load %arg10[%c4, %c0_102, %c0_103] : memref<7x224x128xf32, #tpu.memory_space<vmem>>, vector<1x224x128xf32>
    %101 = vector.shape_cast %100 : vector<1x224x128xf32> to vector<224x128xf32>
    %cst_104 = arith.constant dense<0.000000e+00> : vector<1x128xf32>
    %102 = tpu.matmul %99, %101, %cst_104 {dimension_numbers = #tpu.dot_dimension_numbers<[1], [0], [0], [1], [0, 0, 1, 1], [], []>} : vector<1x224xf32>, vector<224x128xf32>, vector<1x128xf32> -> vector<1x128xf32>
    %103 = arith.addf %98, %102 : vector<1x128xf32>
    %104 = vector.extract_strided_slice %77 {offsets = [5, 0], sizes = [1, 224], strides = [1, 1]} : vector<7x224xf32> to vector<1x224xf32>
    %c5 = arith.constant 5 : index
    %c0_105 = arith.constant 0 : index
    %c0_106 = arith.constant 0 : index
    %105 = vector.load %arg10[%c5, %c0_105, %c0_106] : memref<7x224x128xf32, #tpu.memory_space<vmem>>, vector<1x224x128xf32>
    %106 = vector.shape_cast %105 : vector<1x224x128xf32> to vector<224x128xf32>
    %cst_107 = arith.constant dense<0.000000e+00> : vector<1x128xf32>
    %107 = tpu.matmul %104, %106, %cst_107 {dimension_numbers = #tpu.dot_dimension_numbers<[1], [0], [0], [1], [0, 0, 1, 1], [], []>} : vector<1x224xf32>, vector<224x128xf32>, vector<1x128xf32> -> vector<1x128xf32>
    %108 = arith.addf %103, %107 : vector<1x128xf32>
    %109 = vector.extract_strided_slice %77 {offsets = [6, 0], sizes = [1, 224], strides = [1, 1]} : vector<7x224xf32> to vector<1x224xf32>
    %c6 = arith.constant 6 : index
    %c0_108 = arith.constant 0 : index
    %c0_109 = arith.constant 0 : index
    %110 = vector.load %arg10[%c6, %c0_108, %c0_109] : memref<7x224x128xf32, #tpu.memory_space<vmem>>, vector<1x224x128xf32>
    %111 = vector.shape_cast %110 : vector<1x224x128xf32> to vector<224x128xf32>
    %cst_110 = arith.constant dense<0.000000e+00> : vector<1x128xf32>
    %112 = tpu.matmul %109, %111, %cst_110 {dimension_numbers = #tpu.dot_dimension_numbers<[1], [0], [0], [1], [0, 0, 1, 1], [], []>} : vector<1x224xf32>, vector<224x128xf32>, vector<1x128xf32> -> vector<1x128xf32>
    %113 = arith.addf %108, %112 : vector<1x128xf32>
    %c0_111 = arith.constant 0 : index
    %c0_112 = arith.constant 0 : index
    %114 = vector.load %arg11[%c0_111, %c0_112] : memref<1x128xf32, #tpu.memory_space<vmem>>, vector<1x128xf32>
    %115 = arith.addf %113, %114 : vector<1x128xf32>
    %cst_113 = arith.constant 0.000000e+00 : f32
    %116 = vector.broadcast %cst_113 : f32 to vector<1x128xf32>
    %117 = arith.maximumf %115, %116 : vector<1x128xf32>
    %c0_114 = arith.constant 0 : index
    %c0_115 = arith.constant 0 : index
    %118 = vector.load %arg12[%c0_114, %c0_115] : memref<128x10xf32, #tpu.memory_space<vmem>>, vector<128x10xf32>
    %cst_116 = arith.constant dense<0.000000e+00> : vector<1x10xf32>
    %119 = tpu.matmul %117, %118, %cst_116 {dimension_numbers = #tpu.dot_dimension_numbers<[1], [0], [0], [1], [0, 0, 1, 1], [], []>} : vector<1x128xf32>, vector<128x10xf32>, vector<1x10xf32> -> vector<1x10xf32>
    %c0_117 = arith.constant 0 : index
    %c0_118 = arith.constant 0 : index
    %120 = vector.load %arg13[%c0_117, %c0_118] : memref<1x10xf32, #tpu.memory_space<vmem>>, vector<1x10xf32>
    %121 = arith.addf %119, %120 : vector<1x10xf32>
    %cst_119 = arith.constant dense<0xFF800000> : vector<1xf32>
    %122 = vector.multi_reduction <maximumf>, %121, %cst_119 [1] : vector<1x10xf32> to vector<1xf32>
    %123 = vector.shape_cast %122 : vector<1xf32> to vector<1x1xf32>
    %124 = vector.broadcast %123 : vector<1x1xf32> to vector<1x10xf32>
    %125 = arith.subf %121, %124 : vector<1x10xf32>
    %126 = math.exp %125 : vector<1x10xf32>
    %cst_120 = arith.constant dense<0.000000e+00> : vector<1xf32>
    %127 = vector.multi_reduction <add>, %126, %cst_120 [1] : vector<1x10xf32> to vector<1xf32>
    %128 = vector.shape_cast %127 : vector<1xf32> to vector<1x1xf32>
    %129 = math.log %128 : vector<1x1xf32>
    %130 = vector.broadcast %129 : vector<1x1xf32> to vector<1x10xf32>
    %131 = arith.subf %125, %130 : vector<1x10xf32>
    %c0_121 = arith.constant 0 : index
    %c0_122 = arith.constant 0 : index
    %c0_123 = arith.constant 0 : index
    %132 = vector.load %arg14[%c0_121, %c0_122, %c0_123] : memref<1x1x10xf32, #tpu.memory_space<vmem>>, vector<1x1x10xf32>
    %133 = vector.shape_cast %132 : vector<1x1x10xf32> to vector<1x10xf32>
    %134 = vector.shape_cast %131 : vector<1x10xf32> to vector<1x1x10xf32>
    tpu.vector_store %arg14[%c0_121, %c0_122, %c0_123], %134 {strides = array<i32>} : memref<1x1x10xf32, #tpu.memory_space<vmem>>, vector<1x1x10xf32>,
    return
  }
  func.func @transform_0(%arg0: i32) -> (i32, i32, i32, i32) {
    %c0_i32 = arith.constant 0 : i32
    %c0_i32_0 = arith.constant 0 : i32
    %c0_i32_1 = arith.constant 0 : i32
    %c0_i32_2 = arith.constant 0 : i32
    return %arg0, %c0_i32, %c0_i32_0, %c0_i32_1 : i32, i32, i32, i32
  }
  func.func @transform_1(%arg0: i32) -> (i32, i32, i32) {
    %c0_i32 = arith.constant 0 : i32
    %c0_i32_0 = arith.constant 0 : i32
    %c0_i32_1 = arith.constant 0 : i32
    %c0_i32_2 = arith.constant 0 : i32
    return %c0_i32, %c0_i32_0, %c0_i32_1 : i32, i32, i32
  }
  func.func @transform_2(%arg0: i32) -> (i32, i32) {
    %c0_i32 = arith.constant 0 : i32
    %c0_i32_0 = arith.constant 0 : i32
    %c0_i32_1 = arith.constant 0 : i32
    return %c0_i32, %c0_i32_0 : i32, i32
  }
  func.func @transform_3(%arg0: i32) -> (i32, i32, i32) {
    %c0_i32 = arith.constant 0 : i32
    %c0_i32_0 = arith.constant 0 : i32
    %c0_i32_1 = arith.constant 0 : i32
    %c0_i32_2 = arith.constant 0 : i32
    return %c0_i32, %c0_i32_0, %c0_i32_1 : i32, i32, i32
  }
  func.func @transform_4(%arg0: i32) -> (i32, i32, i32) {
    %c0_i32 = arith.constant 0 : i32
    %c0_i32_0 = arith.constant 0 : i32
    %c0_i32_1 = arith.constant 0 : i32
    %c0_i32_2 = arith.constant 0 : i32
    return %c0_i32, %c0_i32_0, %c0_i32_1 : i32, i32, i32
  }
  func.func @transform_5(%arg0: i32) -> (i32, i32, i32) {
    %c0_i32 = arith.constant 0 : i32
    %c0_i32_0 = arith.constant 0 : i32
    %c0_i32_1 = arith.constant 0 : i32
    %c0_i32_2 = arith.constant 0 : i32
    return %c0_i32, %c0_i32_0, %c0_i32_1 : i32, i32, i32
  }
  func.func @transform_6(%arg0: i32) -> (i32, i32) {
    %c0_i32 = arith.constant 0 : i32
    %c0_i32_0 = arith.constant 0 : i32
    %c0_i32_1 = arith.constant 0 : i32
    return %c0_i32, %c0_i32_0 : i32, i32
  }
  func.func @transform_7(%arg0: i32) -> (i32, i32, i32) {
    %c0_i32 = arith.constant 0 : i32
    %c0_i32_0 = arith.constant 0 : i32
    %c0_i32_1 = arith.constant 0 : i32
    %c0_i32_2 = arith.constant 0 : i32
    return %c0_i32, %c0_i32_0, %c0_i32_1 : i32, i32, i32
  }
  func.func @transform_8(%arg0: i32) -> (i32, i32, i32) {
    %c0_i32 = arith.constant 0 : i32
    %c0_i32_0 = arith.constant 0 : i32
    %c0_i32_1 = arith.constant 0 : i32
    %c0_i32_2 = arith.constant 0 : i32
    return %c0_i32, %c0_i32_0, %c0_i32_1 : i32, i32, i32
  }
  func.func @transform_9(%arg0: i32) -> (i32, i32, i32) {
    %c0_i32 = arith.constant 0 : i32
    %c0_i32_0 = arith.constant 0 : i32
    %c0_i32_1 = arith.constant 0 : i32
    %c0_i32_2 = arith.constant 0 : i32
    return %c0_i32, %c0_i32_0, %c0_i32_1 : i32, i32, i32
  }
  func.func @transform_10(%arg0: i32) -> (i32, i32) {
    %c0_i32 = arith.constant 0 : i32
    %c0_i32_0 = arith.constant 0 : i32
    %c0_i32_1 = arith.constant 0 : i32
    return %c0_i32, %c0_i32_0 : i32, i32
  }
  func.func @transform_11(%arg0: i32) -> (i32, i32) {
    %c0_i32 = arith.constant 0 : i32
    %c0_i32_0 = arith.constant 0 : i32
    %c0_i32_1 = arith.constant 0 : i32
    return %c0_i32, %c0_i32_0 : i32, i32
  }
  func.func @transform_12(%arg0: i32) -> (i32, i32) {
    %c0_i32 = arith.constant 0 : i32
    %c0_i32_0 = arith.constant 0 : i32
    %c0_i32_1 = arith.constant 0 : i32
    return %c0_i32, %c0_i32_0 : i32, i32
  }
  func.func @transform_13(%arg0: i32) -> (i32, i32, i32) {
    %c0_i32 = arith.constant 0 : i32
    %c0_i32_0 = arith.constant 0 : i32
    %c0_i32_1 = arith.constant 0 : i32
    return %arg0, %c0_i32, %c0_i32_0 : i32, i32, i32
  }
}

</mosaic_0001>

<llo_original>
// kernel: simple_cnn_forward.1
$region0: #{simple_cnn_forward.1}
  #allocation0 [shape = 'u32[]', space=smem, size = 0x4, offset = 0x4, fixed_abs, tag = 'smem constant byte address 0x4 - core index']
  #allocation1 [shape = 'u32[144,128]{1,0:T(1,128)}', space=vmem, size = 0x12000, scoped, tag = 'internal scratch']
  #allocation2 [shape = 'f32[30,28]{1,0:T(8,128)}', space=vmem, size = 0x4000, scoped, tag = 'scratch operand']
  #allocation3 [shape = 'f32[16,224]{1,0:T(8,128)}', space=vmem, size = 0x4000, scoped, tag = 'scratch operand']
  %s0 = inlined_call_operand.vmem [shape: f32[2,1,28,28], index: 0, kind: input, shape index: {}]
  %s1 = inlined_call_operand.hbm [shape: f32[3,28,448], index: 1, kind: input, shape index: {}]
  %s2 = inlined_call_operand.hbm [shape: f32[1,448], index: 2, kind: input, shape index: {}]
  %s3 = inlined_call_operand.vmem [shape: f32[2,14,28], index: 3, kind: input, shape index: {}]
  %s4 = inlined_call_operand.hbm [shape: f32[2,448,224], index: 4, kind: input, shape index: {}]
  %s5 = inlined_call_operand.hbm [shape: f32[3,224,448], index: 5, kind: input, shape index: {}]
  %s6 = inlined_call_operand.hbm [shape: f32[1,448], index: 6, kind: input, shape index: {}]
  %s7 = inlined_call_operand.vmem [shape: f32[2,7,14], index: 7, kind: input, shape index: {}]
  %s8 = inlined_call_operand.hbm [shape: f32[2,448,224], index: 8, kind: input, shape index: {}]
  %s9 = inlined_call_operand.hbm [shape: f32[7,224,128], index: 9, kind: input, shape index: {}]
  %s10 = inlined_call_operand.hbm [shape: f32[1,128], index: 10, kind: input, shape index: {}]
  %s11 = inlined_call_operand.vmem [shape: f32[128,10], index: 11, kind: input, shape index: {}]
  %s12 = inlined_call_operand.hbm [shape: f32[1,10], index: 12, kind: input, shape index: {}]
  %s13 = inlined_call_operand.hbm [shape: f32[2,1,10], index: 13, kind: output, shape index: {}]
  %s14 = sld [smem:[#allocation0]]
  $region121: #{simple_cnn_forward.1} parent=0
    _
  %s16 = ssub.s32 1, %s14
  %s17 = scalar_select 0, %s16, %s14
  $region1: #{simple_cnn_forward.1} parent=0
    #allocation4 [shape = 'u8[196608]{0}', space=vmem, size = 0x30000, scoped, tag = 'input window, operand 1, single buffered']
    #allocation5 [shape = 's32[2]{0}', space=sflag, size = 0x8, scoped, tag = 'scoped memory for simple_cnn_forward.1']
    #allocation6 [shape = 's32[2]{0}', space=sflag, size = 0x8, scoped, tag = 'scoped memory for simple_cnn_forward.1']
    #allocation7 [shape = 'u8[2048]{0}', space=vmem, size = 0x800, scoped, tag = 'input window, operand 2, single buffered']
    #allocation8 [shape = 's32[1]{0}', space=sflag, size = 0x4, scoped, tag = 'scoped memory for simple_cnn_forward.1']
    #allocation9 [shape = 'u8[917504]{0}', space=vmem, size = 0xe0000, scoped, tag = 'input window, operand 4, single buffered']
    #allocation10 [shape = 'u8[1376256]{0}', space=vmem, size = 0x150000, scoped, tag = 'input window, operand 5, single buffered']
    #allocation11 [shape = 's32[1]{0}', space=sflag, size = 0x4, scoped, tag = 'scoped memory for simple_cnn_forward.1']
    #allocation12 [shape = 'u8[2048]{0}', space=vmem, size = 0x800, scoped, tag = 'input window, operand 6, single buffered']
    #allocation13 [shape = 'u8[917504]{0}', space=vmem, size = 0xe0000, scoped, tag = 'input window, operand 8, single buffered']
    #allocation14 [shape = 's32[1]{0}', space=sflag, size = 0x4, scoped, tag = 'scoped memory for simple_cnn_forward.1']
    #allocation15 [shape = 'u8[802816]{0}', space=vmem, size = 0xc4000, scoped, tag = 'input window, operand 9, single buffered']
    #allocation16 [shape = 'u8[512]{0}', space=vmem, size = 0x400, scoped, tag = 'input window, operand 10, single buffered']
    #allocation17 [shape = 's32[1]{0}', space=sflag, size = 0x4, scoped, tag = 'scoped memory for simple_cnn_forward.1']
    #allocation18 [shape = 'u8[512]{0}', space=vmem, size = 0x400, scoped, tag = 'input window, operand 12, single buffered']
    #allocation19 [shape = 'u8[1024]{0}', space=vmem, size = 0x400, scoped, tag = 'output window, operand 0']
    %18 = vsyncpa [#allocation5], 0
    %19 = vsyncpa [#allocation8], 0
    %20 = vsyncpa [#allocation11], 0
    %21 = vsyncpa [#allocation14], 0
    %22 = vsyncpa [#allocation17], 0
    %23 = vsyncpa [#allocation6], 0
    %s24 = scalar_lea.sflag [#allocation6], 1
    %25 = vsyncpa %s24, 0
    loop: start=0, step=1, limit=4
    $region2: #{simple_cnn_forward.1} parent=1 // loop_pre_header
      _
    $region3: #{simple_cnn_forward.1} parent=1 // loop_header
      %s27 = sphi 0, %s31
      %p28 = scmp.ge.s32.totalorder %s27, 4
      %s37 = sphi 0, %s39
      %s40 = sphi 0, %s37
      %s41 = sphi 0, %s40
      %s57 = sphi 0, %s41
      %s61 = sphi 0, %s61
      %s63 = sphi 0, %s61
      %s64 = sphi 0, %s63
      %s78 = sphi 0, %s64
      %s82 = sphi 0, %s82
      %s84 = sphi 0, %s82
      %s85 = sphi 0, %s84
      %s99 = sphi 0, %s85
      %s103 = sphi 0, %s103
      %s105 = sphi 0, %s103
      %s106 = sphi 0, %s105
      %s120 = sphi 0, %s106
      %s124 = sphi 0, %s124
      %s126 = sphi 0, %s124
      %s127 = sphi 0, %s126
      %s141 = sphi 0, %s127
      %s145 = sphi 0, %s145
      %s147 = sphi 0, %s145
      %s148 = sphi 0, %s147
      %s162 = sphi 0, %s148
      %s166 = sphi 0, %s166
      %s168 = sphi 0, %s166
      %s169 = sphi 0, %s168
      %s183 = sphi 0, %s169
      %s187 = sphi 0, %s187
      %s189 = sphi 0, %s187
      %s190 = sphi 0, %s189
      %s204 = sphi 0, %s190
      %s208 = sphi 0, %s208
      %s210 = sphi 0, %s208
      %s211 = sphi 0, %s210
      %s225 = sphi 0, %s211
      %s229 = sphi 0, %s229
      %s231 = sphi 0, %s229
      %s232 = sphi 0, %s231
      %s246 = sphi 0, %s232
      %s250 = sphi 0, %s250
      %s252 = sphi 0, %s250
      %s253 = sphi 0, %s252
      %s267 = sphi 0, %s253
      %s271 = sphi 0, %s271
      %s273 = sphi 0, %s271
      %s274 = sphi 0, %s273
      %s288 = sphi 0, %s274
      %s292 = sphi 0, %s292
      %s294 = sphi 0, %s292
      %s295 = sphi 0, %s294
      %s309 = sphi 0, %s295
      %s315 = sphi 0, %s317
      %s318 = sphi 0, %s315
      %s319 = sphi 0, %s318
      %s335 = sphi 0, %s319
    $region4: #{simple_cnn_forward.1} parent=1 // loop_header_branch
      %30 = sbr.rel (%p28) target = $region8
    $region5: #{simple_cnn_forward.1} parent=1 // loop_body
      %s32 = ssub.s32 %s27, 1
      %s33 = ssub.s32 %s27, 2
      %s34 = sadd.s32 %s27, 1
      %s35 = ssub.s32 %s27, %s34
      %p36 = scmp.eq.s32.totalorder %s35, 0
      %s38 = sadd.s32 %s37, 1
      %s39 = scalar_select %p36, %s37, %s38
      %p42 = pneg %p36
      %p43 = scmp.eq.s32.totalorder %s27, 1
      %p44 = por %p42, %p43
      %p45 = scmp.ne.s32.totalorder %s37, %s40
      %p46 = scmp.eq.s32.totalorder %s27, 0
      %p47 = por %p45, %p46
      %p48 = scmp.ne.s32.totalorder %s37, %s40
      %p49 = scmp.eq.s32.totalorder %s32, 1
      %p50 = por %p48, %p49
      %p51 = scmp.ne.s32.totalorder %s40, %s41
      %p52 = scmp.eq.s32.totalorder %s32, 0
      %p53 = por %p51, %p52
      %p54 = scmp.ne.s32.totalorder %s40, %s41
      %p55 = scmp.eq.s32.totalorder %s33, 1
      %p56 = por %p54, %p55
      %p58 = scmp.ne.s32.totalorder %s41, %s57
      %p59 = scmp.eq.s32.totalorder %s33, 0
      %p60 = por %p58, %p59
      %s62 = sadd.s32 %s61, 1
      %p65 = scmp.eq.s32.totalorder %s27, 1
      %p66 = scmp.ne.s32.totalorder %s61, %s63
      %p67 = scmp.eq.s32.totalorder %s27, 0
      %p68 = por %p66, %p67
      %p69 = scmp.ne.s32.totalorder %s61, %s63
      %p70 = scmp.eq.s32.totalorder %s32, 1
      %p71 = por %p69, %p70
      %p72 = scmp.ne.s32.totalorder %s63, %s64
      %p73 = scmp.eq.s32.totalorder %s32, 0
      %p74 = por %p72, %p73
      %p75 = scmp.ne.s32.totalorder %s63, %s64
      %p76 = scmp.eq.s32.totalorder %s33, 1
      %p77 = por %p75, %p76
      %p79 = scmp.ne.s32.totalorder %s64, %s78
      %p80 = scmp.eq.s32.totalorder %s33, 0
      %p81 = por %p79, %p80
      %s83 = sadd.s32 %s82, 1
      %p86 = scmp.eq.s32.totalorder %s27, 1
      %p87 = scmp.ne.s32.totalorder %s82, %s84
      %p88 = scmp.eq.s32.totalorder %s27, 0
      %p89 = por %p87, %p88
      %p90 = scmp.ne.s32.totalorder %s82, %s84
      %p91 = scmp.eq.s32.totalorder %s32, 1
      %p92 = por %p90, %p91
      %p93 = scmp.ne.s32.totalorder %s84, %s85
      %p94 = scmp.eq.s32.totalorder %s32, 0
      %p95 = por %p93, %p94
      %p96 = scmp.ne.s32.totalorder %s84, %s85
      %p97 = scmp.eq.s32.totalorder %s33, 1
      %p98 = por %p96, %p97
      %p100 = scmp.ne.s32.totalorder %s85, %s99
      %p101 = scmp.eq.s32.totalorder %s33, 0
      %p102 = por %p100, %p101
      %s104 = sadd.s32 %s103, 1
      %p107 = scmp.eq.s32.totalorder %s27, 1
      %p108 = scmp.ne.s32.totalorder %s103, %s105
      %p109 = scmp.eq.s32.totalorder %s27, 0
      %p110 = por %p108, %p109
      %p111 = scmp.ne.s32.totalorder %s103, %s105
      %p112 = scmp.eq.s32.totalorder %s32, 1
      %p113 = por %p111, %p112
      %p114 = scmp.ne.s32.totalorder %s105, %s106
      %p115 = scmp.eq.s32.totalorder %s32, 0
      %p116 = por %p114, %p115
      %p117 = scmp.ne.s32.totalorder %s105, %s106
      %p118 = scmp.eq.s32.totalorder %s33, 1
      %p119 = por %p117, %p118
      %p121 = scmp.ne.s32.totalorder %s106, %s120
      %p122 = scmp.eq.s32.totalorder %s33, 0
      %p123 = por %p121, %p122
      %s125 = sadd.s32 %s124, 1
      %p128 = scmp.eq.s32.totalorder %s27, 1
      %p129 = scmp.ne.s32.totalorder %s124, %s126
      %p130 = scmp.eq.s32.totalorder %s27, 0
      %p131 = por %p129, %p130
      %p132 = scmp.ne.s32.totalorder %s124, %s126
      %p133 = scmp.eq.s32.totalorder %s32, 1
      %p134 = por %p132, %p133
      %p135 = scmp.ne.s32.totalorder %s126, %s127
      %p136 = scmp.eq.s32.totalorder %s32, 0
      %p137 = por %p135, %p136
      %p138 = scmp.ne.s32.totalorder %s126, %s127
      %p139 = scmp.eq.s32.totalorder %s33, 1
      %p140 = por %p138, %p139
      %p142 = scmp.ne.s32.totalorder %s127, %s141
      %p143 = scmp.eq.s32.totalorder %s33, 0
      %p144 = por %p142, %p143
      %s146 = sadd.s32 %s145, 1
      %p149 = scmp.eq.s32.totalorder %s27, 1
      %p150 = scmp.ne.s32.totalorder %s145, %s147
      %p151 = scmp.eq.s32.totalorder %s27, 0
      %p152 = por %p150, %p151
      %p153 = scmp.ne.s32.totalorder %s145, %s147
      %p154 = scmp.eq.s32.totalorder %s32, 1
      %p155 = por %p153, %p154
      %p156 = scmp.ne.s32.totalorder %s147, %s148
      %p157 = scmp.eq.s32.totalorder %s32, 0
      %p158 = por %p156, %p157
      %p159 = scmp.ne.s32.totalorder %s147, %s148
      %p160 = scmp.eq.s32.totalorder %s33, 1
      %p161 = por %p159, %p160
      %p163 = scmp.ne.s32.totalorder %s148, %s162
      %p164 = scmp.eq.s32.totalorder %s33, 0
      %p165 = por %p163, %p164
      %s167 = sadd.s32 %s166, 1
      %p170 = scmp.eq.s32.totalorder %s27, 1
      %p171 = scmp.ne.s32.totalorder %s166, %s168
      %p172 = scmp.eq.s32.totalorder %s27, 0
      %p173 = por %p171, %p172
      %p174 = scmp.ne.s32.totalorder %s166, %s168
      %p175 = scmp.eq.s32.totalorder %s32, 1
      %p176 = por %p174, %p175
      %p177 = scmp.ne.s32.totalorder %s168, %s169
      %p178 = scmp.eq.s32.totalorder %s32, 0
      %p179 = por %p177, %p178
      %p180 = scmp.ne.s32.totalorder %s168, %s169
      %p181 = scmp.eq.s32.totalorder %s33, 1
      %p182 = por %p180, %p181
      %p184 = scmp.ne.s32.totalorder %s169, %s183
      %p185 = scmp.eq.s32.totalorder %s33, 0
      %p186 = por %p184, %p185
      %s188 = sadd.s32 %s187, 1
      %p191 = scmp.eq.s32.totalorder %s27, 1
      %p192 = scmp.ne.s32.totalorder %s187, %s189
      %p193 = scmp.eq.s32.totalorder %s27, 0
      %p194 = por %p192, %p193
      %p195 = scmp.ne.s32.totalorder %s187, %s189
      %p196 = scmp.eq.s32.totalorder %s32, 1
      %p197 = por %p195, %p196
      %p198 = scmp.ne.s32.totalorder %s189, %s190
      %p199 = scmp.eq.s32.totalorder %s32, 0
      %p200 = por %p198, %p199
      %p201 = scmp.ne.s32.totalorder %s189, %s190
      %p202 = scmp.eq.s32.totalorder %s33, 1
      %p203 = por %p201, %p202
      %p205 = scmp.ne.s32.totalorder %s190, %s204
      %p206 = scmp.eq.s32.totalorder %s33, 0
      %p207 = por %p205, %p206
      %s209 = sadd.s32 %s208, 1
      %p212 = scmp.eq.s32.totalorder %s27, 1
      %p213 = scmp.ne.s32.totalorder %s208, %s210
      %p214 = scmp.eq.s32.totalorder %s27, 0
      %p215 = por %p213, %p214
      %p216 = scmp.ne.s32.totalorder %s208, %s210
      %p217 = scmp.eq.s32.totalorder %s32, 1
      %p218 = por %p216, %p217
      %p219 = scmp.ne.s32.totalorder %s210, %s211
      %p220 = scmp.eq.s32.totalorder %s32, 0
      %p221 = por %p219, %p220
      %p222 = scmp.ne.s32.totalorder %s210, %s211
      %p223 = scmp.eq.s32.totalorder %s33, 1
      %p224 = por %p222, %p223
      %p226 = scmp.ne.s32.totalorder %s211, %s225
      %p227 = scmp.eq.s32.totalorder %s33, 0
      %p228 = por %p226, %p227
      %s230 = sadd.s32 %s229, 1
      %p233 = scmp.eq.s32.totalorder %s27, 1
      %p234 = scmp.ne.s32.totalorder %s229, %s231
      %p235 = scmp.eq.s32.totalorder %s27, 0
      %p236 = por %p234, %p235
      %p237 = scmp.ne.s32.totalorder %s229, %s231
      %p238 = scmp.eq.s32.totalorder %s32, 1
      %p239 = por %p237, %p238
      %p240 = scmp.ne.s32.totalorder %s231, %s232
      %p241 = scmp.eq.s32.totalorder %s32, 0
      %p242 = por %p240, %p241
      %p243 = scmp.ne.s32.totalorder %s231, %s232
      %p244 = scmp.eq.s32.totalorder %s33, 1
      %p245 = por %p243, %p244
      %p247 = scmp.ne.s32.totalorder %s232, %s246
      %p248 = scmp.eq.s32.totalorder %s33, 0
      %p249 = por %p247, %p248
      %s251 = sadd.s32 %s250, 1
      %p254 = scmp.eq.s32.totalorder %s27, 1
      %p255 = scmp.ne.s32.totalorder %s250, %s252
      %p256 = scmp.eq.s32.totalorder %s27, 0
      %p257 = por %p255, %p256
      %p258 = scmp.ne.s32.totalorder %s250, %s252
      %p259 = scmp.eq.s32.totalorder %s32, 1
      %p260 = por %p258, %p259
      %p261 = scmp.ne.s32.totalorder %s252, %s253
      %p262 = scmp.eq.s32.totalorder %s32, 0
      %p263 = por %p261, %p262
      %p264 = scmp.ne.s32.totalorder %s252, %s253
      %p265 = scmp.eq.s32.totalorder %s33, 1
      %p266 = por %p264, %p265
      %p268 = scmp.ne.s32.totalorder %s253, %s267
      %p269 = scmp.eq.s32.totalorder %s33, 0
      %p270 = por %p268, %p269
      %s272 = sadd.s32 %s271, 1
      %p275 = scmp.eq.s32.totalorder %s27, 1
      %p276 = scmp.ne.s32.totalorder %s271, %s273
      %p277 = scmp.eq.s32.totalorder %s27, 0
      %p278 = por %p276, %p277
      %p279 = scmp.ne.s32.totalorder %s271, %s273
      %p280 = scmp.eq.s32.totalorder %s32, 1
      %p281 = por %p279, %p280
      %p282 = scmp.ne.s32.totalorder %s273, %s274
      %p283 = scmp.eq.s32.totalorder %s32, 0
      %p284 = por %p282, %p283
      %p285 = scmp.ne.s32.totalorder %s273, %s274
      %p286 = scmp.eq.s32.totalorder %s33, 1
      %p287 = por %p285, %p286
      %p289 = scmp.ne.s32.totalorder %s274, %s288
      %p290 = scmp.eq.s32.totalorder %s33, 0
      %p291 = por %p289, %p290
      %s293 = sadd.s32 %s292, 1
      %p296 = scmp.eq.s32.totalorder %s27, 1
      %p297 = scmp.ne.s32.totalorder %s292, %s294
      %p298 = scmp.eq.s32.totalorder %s27, 0
      %p299 = por %p297, %p298
      %p300 = scmp.ne.s32.totalorder %s292, %s294
      %p301 = scmp.eq.s32.totalorder %s32, 1
      %p302 = por %p300, %p301
      %p303 = scmp.ne.s32.totalorder %s294, %s295
      %p304 = scmp.eq.s32.totalorder %s32, 0
      %p305 = por %p303, %p304
      %p306 = scmp.ne.s32.totalorder %s294, %s295
      %p307 = scmp.eq.s32.totalorder %s33, 1
      %p308 = por %p306, %p307
      %p310 = scmp.ne.s32.totalorder %s295, %s309
      %p311 = scmp.eq.s32.totalorder %s33, 0
      %p312 = por %p310, %p311
      %s313 = ssub.s32 %s27, %s34
      %p314 = scmp.eq.s32.totalorder %s313, 0
      %s316 = sadd.s32 %s315, 1
      %s317 = scalar_select %p314, %s315, %s316
      %p320 = pneg %p314
      %p321 = scmp.eq.s32.totalorder %s27, 1
      %p322 = por %p320, %p321
      %p323 = scmp.ne.s32.totalorder %s315, %s318
      %p324 = scmp.eq.s32.totalorder %s27, 0
      %p325 = por %p323, %p324
      %p326 = scmp.ne.s32.totalorder %s315, %s318
      %p327 = scmp.eq.s32.totalorder %s32, 1
      %p328 = por %p326, %p327
      %p329 = scmp.ne.s32.totalorder %s318, %s319
      %p330 = scmp.eq.s32.totalorder %s32, 0
      %p331 = por %p329, %p330
      %p332 = scmp.ne.s32.totalorder %s318, %s319
      %p333 = scmp.eq.s32.totalorder %s33, 1
      %p334 = por %p332, %p333
      %p336 = scmp.ne.s32.totalorder %s319, %s335
      %p337 = scmp.eq.s32.totalorder %s33, 0
      %p338 = por %p336, %p337
      %p339 = scmp.le.s32.totalorder 1, %s27
      %p340 = scmp.lt.s32.totalorder %s27, 3
      %p341 = pnand %p339, %p340
      %p342 = pneg %p341
      // Predicated region
      $region9: #{simple_cnn_forward.1} parent=5 // pred_check
        _
      $region10: #{simple_cnn_forward.1} parent=5 // pred_check_branch
        %344 = sbr.rel (%p341) target = $region12
      $region11: #{simple_cnn_forward.1} parent=5 // pred_region
        %s345 = ssub.s32 %s27, 1
        // Predicated region
        $region13: #{simple_cnn_forward.1} parent=11 // pred_check
          %p346 = pneg %p74
        $region14: #{simple_cnn_forward.1} parent=11 // pred_check_branch
          %348 = sbr.rel (%p346) target = $region16
        $region15: #{simple_cnn_forward.1} parent=11 // pred_region
          %s350 = ssub.s32 6144, 6144
          %351 = vsyncadd [#allocation5], %s350
          %s352 = sshll.u32 [#allocation4], 4
          %s353 = int_to_ptr.vmem [resolvable:$true] %s352
          %358 = dma.hbm_to_vmem [thread:$0]  %s1, 6144, %s353, [#allocation5], 512, 512, 32
        $region16: #{simple_cnn_forward.1} parent=11 // pred_fallthru
          _
        // Predicated region
        $region17: #{simple_cnn_forward.1} parent=11 // pred_check
          %p359 = pneg %p95
        $region18: #{simple_cnn_forward.1} parent=11 // pred_check_branch
          %361 = sbr.rel (%p359) target = $region20
        $region19: #{simple_cnn_forward.1} parent=11 // pred_region
          %s363 = ssub.s32 64, 64
          %364 = vsyncadd [#allocation8], %s363
          %s366 = sshll.u32 [#allocation7], 4
          %s367 = int_to_ptr.vmem [resolvable:$true] %s366
          %369 = dma.hbm_to_vmem [thread:$0]  %s2, 64, %s367, [#allocation8]
        $region20: #{simple_cnn_forward.1} parent=11 // pred_fallthru
          _
        // Predicated region
        $region21: #{simple_cnn_forward.1} parent=11 // pred_check
          %p370 = pneg %p116
        $region22: #{simple_cnn_forward.1} parent=11 // pred_check_branch
          %372 = sbr.rel (%p370) target = $region24
        $region23: #{simple_cnn_forward.1} parent=11 // pred_region
          _
        $region24: #{simple_cnn_forward.1} parent=11 // pred_fallthru
          _
        // Predicated region
        $region25: #{simple_cnn_forward.1} parent=11 // pred_check
          %p373 = pneg %p137
        $region26: #{simple_cnn_forward.1} parent=11 // pred_check_branch
          %375 = sbr.rel (%p373) target = $region28
        $region27: #{simple_cnn_forward.1} parent=11 // pred_region
          %s377 = ssub.s32 28672, 28672
          %378 = vsyncadd [#allocation8], %s377
          %s379 = sshll.u32 [#allocation9], 4
          %s380 = int_to_ptr.vmem [resolvable:$true] %s379
          %385 = dma.hbm_to_vmem [thread:$0]  %s4, 28672, %s380, [#allocation8], 256, 256, 16
        $region28: #{simple_cnn_forward.1} parent=11 // pred_fallthru
          _
        // Predicated region
        $region29: #{simple_cnn_forward.1} parent=11 // pred_check
          %p386 = pneg %p158
        $region30: #{simple_cnn_forward.1} parent=11 // pred_check_branch
          %388 = sbr.rel (%p386) target = $region32
        $region31: #{simple_cnn_forward.1} parent=11 // pred_region
          %s390 = ssub.s32 43008, 43008
          %391 = vsyncadd [#allocation11], %s390
          %s392 = sshll.u32 [#allocation10], 4
          %s393 = int_to_ptr.vmem [resolvable:$true] %s392
          %398 = dma.hbm_to_vmem [thread:$0]  %s5, 43008, %s393, [#allocation11], 512, 512, 32
        $region32: #{simple_cnn_forward.1} parent=11 // pred_fallthru
          _
        // Predicated region
        $region33: #{simple_cnn_forward.1} parent=11 // pred_check
          %p399 = pneg %p179
        $region34: #{simple_cnn_forward.1} parent=11 // pred_check_branch
          %401 = sbr.rel (%p399) target = $region36
        $region35: #{simple_cnn_forward.1} parent=11 // pred_region
          %s403 = ssub.s32 64, 64
          %404 = vsyncadd [#allocation11], %s403
          %s406 = sshll.u32 [#allocation12], 4
          %s407 = int_to_ptr.vmem [resolvable:$true] %s406
          %409 = dma.hbm_to_vmem [thread:$0]  %s6, 64, %s407, [#allocation11]
        $region36: #{simple_cnn_forward.1} parent=11 // pred_fallthru
          _
        // Predicated region
        $region37: #{simple_cnn_forward.1} parent=11 // pred_check
          %p410 = pneg %p200
        $region38: #{simple_cnn_forward.1} parent=11 // pred_check_branch
          %412 = sbr.rel (%p410) target = $region40
        $region39: #{simple_cnn_forward.1} parent=11 // pred_region
          _
        $region40: #{simple_cnn_forward.1} parent=11 // pred_fallthru
          _
        // Predicated region
        $region41: #{simple_cnn_forward.1} parent=11 // pred_check
          %p413 = pneg %p221
        $region42: #{simple_cnn_forward.1} parent=11 // pred_check_branch
          %415 = sbr.rel (%p413) target = $region44
        $region43: #{simple_cnn_forward.1} parent=11 // pred_region
          %s417 = ssub.s32 28672, 28672
          %418 = vsyncadd [#allocation14], %s417
          %s419 = sshll.u32 [#allocation13], 4
          %s420 = int_to_ptr.vmem [resolvable:$true] %s419
          %425 = dma.hbm_to_vmem [thread:$0]  %s8, 28672, %s420, [#allocation14], 256, 256, 16
        $region44: #{simple_cnn_forward.1} parent=11 // pred_fallthru
          _
        // Predicated region
        $region45: #{simple_cnn_forward.1} parent=11 // pred_check
          %p426 = pneg %p242
        $region46: #{simple_cnn_forward.1} parent=11 // pred_check_branch
          %428 = sbr.rel (%p426) target = $region48
        $region47: #{simple_cnn_forward.1} parent=11 // pred_region
          %s430 = ssub.s32 25088, 25088
          %431 = vsyncadd [#allocation14], %s430
          %s432 = sshll.u32 [#allocation15], 4
          %s433 = int_to_ptr.vmem [resolvable:$true] %s432
          %438 = dma.hbm_to_vmem [thread:$0]  %s9, 25088, %s433, [#allocation14], 128, 128, 8
        $region48: #{simple_cnn_forward.1} parent=11 // pred_fallthru
          _
        // Predicated region
        $region49: #{simple_cnn_forward.1} parent=11 // pred_check
          %p439 = pneg %p263
        $region50: #{simple_cnn_forward.1} parent=11 // pred_check_branch
          %441 = sbr.rel (%p439) target = $region52
        $region51: #{simple_cnn_forward.1} parent=11 // pred_region
          %s443 = ssub.s32 16, 16
          %444 = vsyncadd [#allocation17], %s443
          %s446 = sshll.u32 [#allocation16], 4
          %s447 = int_to_ptr.vmem [resolvable:$true] %s446
          %449 = dma.hbm_to_vmem [thread:$0]  %s10, 16, %s447, [#allocation17]
        $region52: #{simple_cnn_forward.1} parent=11 // pred_fallthru
          _
        // Predicated region
        $region53: #{simple_cnn_forward.1} parent=11 // pred_check
          %p450 = pneg %p284
        $region54: #{simple_cnn_forward.1} parent=11 // pred_check_branch
          %452 = sbr.rel (%p450) target = $region56
        $region55: #{simple_cnn_forward.1} parent=11 // pred_region
          _
        $region56: #{simple_cnn_forward.1} parent=11 // pred_fallthru
          _
        // Predicated region
        $region57: #{simple_cnn_forward.1} parent=11 // pred_check
          %p453 = pneg %p305
        $region58: #{simple_cnn_forward.1} parent=11 // pred_check_branch
          %455 = sbr.rel (%p453) target = $region60
        $region59: #{simple_cnn_forward.1} parent=11 // pred_region
          %s457 = ssub.s32 16, 16
          %458 = vsyncadd [#allocation17], %s457
          %s460 = sshll.u32 [#allocation18], 4
          %s461 = int_to_ptr.vmem [resolvable:$true] %s460
          %463 = dma.hbm_to_vmem [thread:$0]  %s12, 16, %s461, [#allocation17]
        $region60: #{simple_cnn_forward.1} parent=11 // pred_fallthru
          _
      $region12: #{simple_cnn_forward.1} parent=5 // pred_fallthru
        _
      %p464 = scmp.lt.s32.totalorder %s27, 2
      // Predicated region
      $region61: #{simple_cnn_forward.1} parent=5 // pred_check
        %p465 = pneg %p464
      $region62: #{simple_cnn_forward.1} parent=5 // pred_check_branch
        %467 = sbr.rel (%p465) target = $region64
      $region63: #{simple_cnn_forward.1} parent=5 // pred_region
        // Predicated region
        $region65: #{simple_cnn_forward.1} parent=63 // pred_check
          %p468 = pneg %p47
        $region66: #{simple_cnn_forward.1} parent=63 // pred_check_branch
          %470 = sbr.rel (%p468) target = $region68
        $region67: #{simple_cnn_forward.1} parent=63 // pred_region
          %p471 = scmp.lt.s32.totalorder %s27, 1
          %s472 = scalar_select %p471, %s27, 1
          %s473 = smul.addr %s472, 4
          %s474 = smul.addr %s473, 8
          %s475 = scalar_lea.vmem %s0, %s474
        $region68: #{simple_cnn_forward.1} parent=63 // pred_fallthru
          _
      $region64: #{simple_cnn_forward.1} parent=5 // pred_fallthru
        _
      %p476 = scmp.le.s32.totalorder 1, %s27
      %p477 = scmp.lt.s32.totalorder %s27, 3
      %p478 = pnand %p476, %p477
      %p479 = pneg %p478
      // Predicated region
      $region69: #{simple_cnn_forward.1} parent=5 // pred_check
        _
      $region70: #{simple_cnn_forward.1} parent=5 // pred_check_branch
        %481 = sbr.rel (%p478) target = $region72
      $region71: #{simple_cnn_forward.1} parent=5 // pred_region
        %s482 = ssub.s32 %s27, 1
        // Predicated region
        $region73: #{simple_cnn_forward.1} parent=71 // pred_check
          %p483 = pneg %p74
        $region74: #{simple_cnn_forward.1} parent=71 // pred_check_branch
          %485 = sbr.rel (%p483) target = $region76
        $region75: #{simple_cnn_forward.1} parent=71 // pred_region
          %486 = dma.done [#allocation5], 6144
        $region76: #{simple_cnn_forward.1} parent=71 // pred_fallthru
          _
        // Predicated region
        $region77: #{simple_cnn_forward.1} parent=71 // pred_check
          %p487 = pneg %p95
        $region78: #{simple_cnn_forward.1} parent=71 // pred_check_branch
          %489 = sbr.rel (%p487) target = $region80
        $region79: #{simple_cnn_forward.1} parent=71 // pred_region
          %490 = dma.done [#allocation8], 64
        $region80: #{simple_cnn_forward.1} parent=71 // pred_fallthru
          _
        // Predicated region
        $region81: #{simple_cnn_forward.1} parent=71 // pred_check
          %p491 = pneg %p137
        $region82: #{simple_cnn_forward.1} parent=71 // pred_check_branch
          %493 = sbr.rel (%p491) target = $region84
        $region83: #{simple_cnn_forward.1} parent=71 // pred_region
          %494 = dma.done [#allocation8], 28672
        $region84: #{simple_cnn_forward.1} parent=71 // pred_fallthru
          _
        // Predicated region
        $region85: #{simple_cnn_forward.1} parent=71 // pred_check
          %p495 = pneg %p158
        $region86: #{simple_cnn_forward.1} parent=71 // pred_check_branch
          %497 = sbr.rel (%p495) target = $region88
        $region87: #{simple_cnn_forward.1} parent=71 // pred_region
          %498 = dma.done [#allocation11], 43008
        $region88: #{simple_cnn_forward.1} parent=71 // pred_fallthru
          _
        // Predicated region
        $region89: #{simple_cnn_forward.1} parent=71 // pred_check
          %p499 = pneg %p179
        $region90: #{simple_cnn_forward.1} parent=71 // pred_check_branch
          %501 = sbr.rel (%p499) target = $region92
        $region91: #{simple_cnn_forward.1} parent=71 // pred_region
          %502 = dma.done [#allocation11], 64
        $region92: #{simple_cnn_forward.1} parent=71 // pred_fallthru
          _
        // Predicated region
        $region93: #{simple_cnn_forward.1} parent=71 // pred_check
          %p503 = pneg %p221
        $region94: #{simple_cnn_forward.1} parent=71 // pred_check_branch
          %505 = sbr.rel (%p503) target = $region96
        $region95: #{simple_cnn_forward.1} parent=71 // pred_region
          %506 = dma.done [#allocation14], 28672
        $region96: #{simple_cnn_forward.1} parent=71 // pred_fallthru
          _
        // Predicated region
        $region97: #{simple_cnn_forward.1} parent=71 // pred_check
          %p507 = pneg %p242
        $region98: #{simple_cnn_forward.1} parent=71 // pred_check_branch
          %509 = sbr.rel (%p507) target = $region100
        $region99: #{simple_cnn_forward.1} parent=71 // pred_region
          %510 = dma.done [#allocation14], 25088
        $region100: #{simple_cnn_forward.1} parent=71 // pred_fallthru
          _
        // Predicated region
        $region101: #{simple_cnn_forward.1} parent=71 // pred_check
          %p511 = pneg %p263
        $region102: #{simple_cnn_forward.1} parent=71 // pred_check_branch
          %513 = sbr.rel (%p511) target = $region104
        $region103: #{simple_cnn_forward.1} parent=71 // pred_region
          %514 = dma.done [#allocation17], 16
        $region104: #{simple_cnn_forward.1} parent=71 // pred_fallthru
          _
        // Predicated region
        $region105: #{simple_cnn_forward.1} parent=71 // pred_check
          %p515 = pneg %p305
        $region106: #{simple_cnn_forward.1} parent=71 // pred_check_branch
          %517 = sbr.rel (%p515) target = $region108
        $region107: #{simple_cnn_forward.1} parent=71 // pred_region
          %518 = dma.done [#allocation17], 16
        $region108: #{simple_cnn_forward.1} parent=71 // pred_fallthru
          _
        %p519 = scmp.lt.s32.totalorder %s32, 1
        %s520 = scalar_select %p519, %s32, 1
        %s521 = smul.addr %s520, 4
        %s522 = smul.addr %s521, 8
        %s523 = scalar_lea.vmem %s0, %s522
        %p524 = pneg %p53
        %p525 = pneg %p50
        %p526 = pneg %p74
        %p527 = pneg %p71
        %p528 = pneg %p95
        %p529 = pneg %p92
        %p530 = pneg %p116
        %p531 = pneg %p113
        %p532 = pneg %p137
        %p533 = pneg %p134
        %p534 = pneg %p158
        %p535 = pneg %p155
        %p536 = pneg %p179
        %p537 = pneg %p176
        %p538 = pneg %p200
        %p539 = pneg %p197
        %p540 = pneg %p221
        %p541 = pneg %p218
        %p542 = pneg %p242
        %p543 = pneg %p239
        %p544 = pneg %p263
        %p545 = pneg %p260
        %p546 = pneg %p284
        %p547 = pneg %p281
        %p548 = pneg %p305
        %p549 = pneg %p302
        %p550 = pneg %p331
        %p551 = pneg %p328
        %s552 = sand.u32 %s318, 1
        %s553 = scalar_lea.sflag [#allocation6], %s552
        %s554 = sand.u32 %s318, 1
        %s555 = scalar_lea.vmem [#allocation19], %s554
        %p556 = scmp.lt.s32.totalorder %s32, 1
        %s557 = scalar_select %p556, %s32, 1
        %s558 = smul.addr %s557, 4
        %s559 = smul.addr %s558, 8
        %s560 = scalar_lea.vmem %s0, %s559
        %vm561 = vcmask 228352
        %562 = vst.msk [vmem:[#allocation2] sm:$0xff] %vm561, 0.0
        %563 = vst.msk [vmem:[#allocation2 + $0x8] sm:$0xff] %vm561, 0.0
        %564 = vst.msk [vmem:[#allocation2 + $0x10] sm:$0xff] %vm561, 0.0
        %vm565 = vcmask 226304
        %566 = vst.msk [vmem:[#allocation2 + $0x18] sm:$0x3f] %vm565, 0.0
        %v567 = vld [vmem:[%s560] sm:$0xff]
        %v568 = vld [vmem:[%s560 + $0x8] sm:$0xff]
        %v569 = vld [vmem:[%s560 + $0x10] sm:$0xff]
        %v570 = vld [vmem:[%s560 + $0x18] sm:$0xf]
        %571 = vst.msk [vmem:[#allocation2 + $0x1] sm:$0xff] %vm561, %v567
        %572 = vst.msk [vmem:[#allocation2 + $0x9] sm:$0xff] %vm561, %v568
        %573 = vst.msk [vmem:[#allocation2 + $0x11] sm:$0xff] %vm561, %v569
        %vm574 = vcmask 224256
        %575 = vst.msk [vmem:[#allocation2 + $0x19] sm:$0xf] %vm574, %v570
        %v576 = vld [vmem:[#allocation2] sm:$0xff]
        %v577 = vld [vmem:[#allocation2 + $0x8] sm:$0xff]
        %v578 = vld [vmem:[#allocation2 + $0x10] sm:$0xff]
        %v579 = vld [vmem:[#allocation2 + $0x18] sm:$0xf]
        %v580 = vld [vmem:[#allocation4] sm:$0xff]
        %v581 = vld [vmem:[#allocation4 + $0x8] sm:$0xff]
        %v582 = vld [vmem:[#allocation4 + $0x10] sm:$0xff]
        %v583 = vld [vmem:[#allocation4 + $0x18] sm:$0xff]
        %v584 = vld [vmem:[#allocation4 + $0x20] sm:$0xff]
        %v585 = vld [vmem:[#allocation4 + $0x28] sm:$0xff]
        %v586 = vld [vmem:[#allocation4 + $0x30] sm:$0xff]
        %v587 = vld [vmem:[#allocation4 + $0x38] sm:$0xff]
        %v588 = vld [vmem:[#allocation4 + $0x40] sm:$0xff]
        %v589 = vld [vmem:[#allocation4 + $0x48] sm:$0xff]
        %v590 = vld [vmem:[#allocation4 + $0x50] sm:$0xff]
        %v591 = vld [vmem:[#allocation4 + $0x58] sm:$0xff]
        %v592 = vld [vmem:[#allocation4 + $0x60] sm:$0xf]
        %v593 = vld [vmem:[#allocation4 + $0x68] sm:$0xf]
        %v594 = vld [vmem:[#allocation4 + $0x70] sm:$0xf]
        %v595 = vld [vmem:[#allocation4 + $0x78] sm:$0xf]
        %v596 = vld [vmem:[#allocation2 + $0x1] sm:$0xff]
        %v597 = vld [vmem:[#allocation2 + $0x9] sm:$0xff]
        %v598 = vld [vmem:[#allocation2 + $0x11] sm:$0xff]
        %v599 = vld [vmem:[#allocation2 + $0x19] sm:$0xf]
        %s600 = scalar_lea.vmem [#allocation4], 128
        %v601 = vld [vmem:[%s600] sm:$0xff]
        %v602 = vld [vmem:[%s600 + $0x8] sm:$0xff]
        %v603 = vld [vmem:[%s600 + $0x10] sm:$0xff]
        %v604 = vld [vmem:[%s600 + $0x18] sm:$0xff]
        %v605 = vld [vmem:[%s600 + $0x20] sm:$0xff]
        %v606 = vld [vmem:[%s600 + $0x28] sm:$0xff]
        %v607 = vld [vmem:[%s600 + $0x30] sm:$0xff]
        %v608 = vld [vmem:[%s600 + $0x38] sm:$0xff]
        %v609 = vld [vmem:[%s600 + $0x40] sm:$0xff]
        %v610 = vld [vmem:[%s600 + $0x48] sm:$0xff]
        %v611 = vld [vmem:[%s600 + $0x50] sm:$0xff]
        %v612 = vld [vmem:[%s600 + $0x58] sm:$0xff]
        %v613 = vld [vmem:[%s600 + $0x60] sm:$0xf]
        %v614 = vld [vmem:[%s600 + $0x68] sm:$0xf]
        %v615 = vld [vmem:[%s600 + $0x70] sm:$0xf]
        %v616 = vld [vmem:[%s600 + $0x78] sm:$0xf]
        %v618 = vsel %vm561, %v596, 0
        %v621 = vsel %vm561, %v597, 0
        %v624 = vsel %vm561, %v598, 0
        %v627 = vsel %vm561, %v599, 0
        %vm629 = vcmask 1043456
        %v631 = vsel %vm629, %v613, 0
        %v634 = vsel %vm629, %v614, 0
        %v637 = vsel %vm629, %v615, 0
        %v640 = vsel %vm629, %v616, 0
        %642 = vmatprep.subr.mxu0 %v602
        %643 = vmatpush1.msra.mxu0 %v601
        %644 = vmatprep.subr.mxu0 %v606
        %645 = vmatpush1.msra.mxu0 %v605
        %646 = vmatprep.subr.mxu0 %v610
        %647 = vmatpush1.msra.mxu0 %v609
        %648 = vmatprep.subr.mxu0 %v634
        %649 = vmatpush1.msra.mxu0 %v631
        %650 = vmatprep.subr.mxu0 0.0
        %651 = vmatpush1.msra.mxu0 0.0
        %652 = vmatprep.subr.mxu0 0.0
        %653 = vmatpush1.msra.mxu0 0.0
        %654 = vmatprep.subr.mxu0 0.0
        %655 = vmatpush1.msra.mxu0 0.0
        %656 = vmatprep.subr.mxu0 0.0
        %657 = vmatpush1.msra.mxu0 0.0
        %658 = vmatprep.subr.mxu0 0.0
        %659 = vmatpush1.msra.mxu0 0.0
        %660 = vmatprep.subr.mxu0 0.0
        %661 = vmatpush1.msra.mxu0 0.0
        %662 = vmatprep.subr.mxu0 0.0
        %663 = vmatpush1.msra.mxu0 0.0
        %664 = vmatprep.subr.mxu0 0.0
        %665 = vmatpush1.msra.mxu0 0.0
        %666 = vmatprep.subr.mxu0 0.0
        %667 = vmatpush1.msra.mxu0 0.0
        %668 = vmatprep.subr.mxu0 0.0
        %669 = vmatpush1.msra.mxu0 0.0
        %670 = vmatprep.subr.mxu0 0.0
        %671 = vmatpush1.msra.mxu0 0.0
        %672 = vmatprep.subr.mxu0 0.0
        %673 = vmatpush1.msra.mxu0 0.0
        %674 = vmatprep.subr.mxu0 0.0
        %675 = vmatpush1.msra.mxu0 0.0
        %676 = vmatprep.subr.mxu0 0.0
        %677 = vmatpush1.msra.mxu0 0.0
        %678 = vmatprep.subr.mxu0 0.0
        %679 = vmatpush1.msra.mxu0 0.0
        %680 = vmatprep.subr.mxu0 0.0
        %681 = vmatpush1.msra.mxu0 0.0
        %682 = vmatprep.subr.mxu0 0.0
        %683 = vmatpush1.msra.mxu0 0.0
        %684 = vmatprep.subr.mxu0 0.0
        %685 = vmatpush1.msra.mxu0 0.0
        %686 = vmatprep.subr.mxu0 0.0
        %687 = vmatpush1.msra.mxu0 0.0
        %688 = vmatprep.subr.mxu0 0.0
        %689 = vmatpush1.msra.mxu0 0.0
        %690 = vmatprep.subr.mxu0 0.0
        %691 = vmatpush1.msra.mxu0 0.0
        %692 = vmatprep.subr.mxu0 0.0
        %693 = vmatpush1.msra.mxu0 0.0
        %694 = vmatprep.subr.mxu0 0.0
        %695 = vmatpush1.msra.mxu0 0.0
        %696 = vmatprep.subr.mxu0 0.0
        %697 = vmatpush1.msra.mxu0 0.0
        %698 = vmatprep.subr.mxu0 0.0
        %699 = vmatpush1.msra.mxu0 0.0
        %700 = vmatprep.subr.mxu0 0.0
        %701 = vmatpush1.msra.mxu0 0.0
        %702 = vmatprep.subr.mxu0 0.0
        %703 = vmatpush1.msra.mxu0 0.0
        %704 = vmatprep.subr.mxu0 0.0
        %705 = vmatpush1.msra.mxu0 0.0
        %706 = vmatprep.mubr.f32.mxu0 0.0
        %707 = vmatmul.mubr.f32.gmra.mrb[0].mxu0 %v618
        %v708 = vpop.f32.mrb[0].mxu0
        %v709 = vadd.f32 0.0, %v708
        %v710 = vpop.f32.mrb[0].mxu0
        %v711 = vadd.f32 0.0, %v710
        %712 = vmatprep.mubr.f32.mxu0 0.0
        %713 = vmatmul.mubr.f32.gmra.mrb[0].mxu0 %v621
        %v714 = vpop.f32.mrb[0].mxu0
        %v715 = vadd.f32 0.0, %v714
        %v716 = vpop.f32.mrb[0].mxu0
        %v717 = vadd.f32 0.0, %v716
        %718 = vmatprep.mubr.f32.mxu0 0.0
        %719 = vmatmul.mubr.f32.gmra.mrb[0].mxu0 %v624
        %v720 = vpop.f32.mrb[0].mxu0
        %v721 = vadd.f32 0.0, %v720
        %v722 = vpop.f32.mrb[0].mxu0
        %v723 = vadd.f32 0.0, %v722
        %724 = vmatprep.mubr.f32.mxu0 0.0
        %725 = vmatmul.mubr.f32.gmra.mrb[0].mxu0 %v627
        %v726 = vpop.f32.mrb[0].mxu0
        %v727 = vadd.f32 0.0, %v726
        %v728 = vpop.f32.mrb[0].mxu0
        %v729 = vadd.f32 0.0, %v728
        %730 = vdwg.mxu0
        %731 = vmatprep.subr.mxu0 %v604
        %732 = vmatpush1.msra.mxu0 %v603
        %733 = vmatprep.subr.mxu0 %v608
        %734 = vmatpush1.msra.mxu0 %v607
        %735 = vmatprep.subr.mxu0 %v612
        %736 = vmatpush1.msra.mxu0 %v611
        %737 = vmatprep.subr.mxu0 %v640
        %738 = vmatpush1.msra.mxu0 %v637
        %739 = vmatprep.subr.mxu0 0.0
        %740 = vmatpush1.msra.mxu0 0.0
        %741 = vmatprep.subr.mxu0 0.0
        %742 = vmatpush1.msra.mxu0 0.0
        %743 = vmatprep.subr.mxu0 0.0
        %744 = vmatpush1.msra.mxu0 0.0
        %745 = vmatprep.subr.mxu0 0.0
        %746 = vmatpush1.msra.mxu0 0.0
        %747 = vmatprep.subr.mxu0 0.0
        %748 = vmatpush1.msra.mxu0 0.0
        %749 = vmatprep.subr.mxu0 0.0
        %750 = vmatpush1.msra.mxu0 0.0
        %751 = vmatprep.subr.mxu0 0.0
        %752 = vmatpush1.msra.mxu0 0.0
        %753 = vmatprep.subr.mxu0 0.0
        %754 = vmatpush1.msra.mxu0 0.0
        %755 = vmatprep.subr.mxu0 0.0
        %756 = vmatpush1.msra.mxu0 0.0
        %757 = vmatprep.subr.mxu0 0.0
        %758 = vmatpush1.msra.mxu0 0.0
        %759 = vmatprep.subr.mxu0 0.0
        %760 = vmatpush1.msra.mxu0 0.0
        %761 = vmatprep.subr.mxu0 0.0
        %762 = vmatpush1.msra.mxu0 0.0
        %763 = vmatprep.subr.mxu0 0.0
        %764 = vmatpush1.msra.mxu0 0.0
        %765 = vmatprep.subr.mxu0 0.0
        %766 = vmatpush1.msra.mxu0 0.0
        %767 = vmatprep.subr.mxu0 0.0
        %768 = vmatpush1.msra.mxu0 0.0
        %769 = vmatprep.subr.mxu0 0.0
        %770 = vmatpush1.msra.mxu0 0.0
        %771 = vmatprep.subr.mxu0 0.0
        %772 = vmatpush1.msra.mxu0 0.0
        %773 = vmatprep.subr.mxu0 0.0
        %774 = vmatpush1.msra.mxu0 0.0
        %775 = vmatprep.subr.mxu0 0.0
        %776 = vmatpush1.msra.mxu0 0.0
        %777 = vmatprep.subr.mxu0 0.0
        %778 = vmatpush1.msra.mxu0 0.0
        %779 = vmatprep.subr.mxu0 0.0
        %780 = vmatpush1.msra.mxu0 0.0
        %781 = vmatprep.subr.mxu0 0.0
        %782 = vmatpush1.msra.mxu0 0.0
        %783 = vmatprep.subr.mxu0 0.0
        %784 = vmatpush1.msra.mxu0 0.0
        %785 = vmatprep.subr.mxu0 0.0
        %786 = vmatpush1.msra.mxu0 0.0
        %787 = vmatprep.subr.mxu0 0.0
        %788 = vmatpush1.msra.mxu0 0.0
        %789 = vmatprep.subr.mxu0 0.0
        %790 = vmatpush1.msra.mxu0 0.0
        %791 = vmatprep.subr.mxu0 0.0
        %792 = vmatpush1.msra.mxu0 0.0
        %793 = vmatprep.subr.mxu0 0.0
        %794 = vmatpush1.msra.mxu0 0.0
        %795 = vmatprep.mubr.f32.mxu0 0.0
        %796 = vmatmul.mubr.f32.gmra.mrb[0].mxu0 %v618
        %v797 = vpop.f32.mrb[0].mxu0
        %v798 = vadd.f32 0.0, %v797
        %v799 = vpop.f32.mrb[0].mxu0
        %v800 = vadd.f32 0.0, %v799
        %801 = vmatprep.mubr.f32.mxu0 0.0
        %802 = vmatmul.mubr.f32.gmra.mrb[0].mxu0 %v621
        %v803 = vpop.f32.mrb[0].mxu0
        %v804 = vadd.f32 0.0, %v803
        %v805 = vpop.f32.mrb[0].mxu0
        %v806 = vadd.f32 0.0, %v805
        %807 = vmatprep.mubr.f32.mxu0 0.0
        %808 = vmatmul.mubr.f32.gmra.mrb[0].mxu0 %v624
        %v809 = vpop.f32.mrb[0].mxu0
        %v810 = vadd.f32 0.0, %v809
        %v811 = vpop.f32.mrb[0].mxu0
        %v812 = vadd.f32 0.0, %v811
        %813 = vmatprep.mubr.f32.mxu0 0.0
        %814 = vmatmul.mubr.f32.gmra.mrb[0].mxu0 %v627
        %v815 = vpop.f32.mrb[0].mxu0
        %v816 = vadd.f32 0.0, %v815
        %v817 = vpop.f32.mrb[0].mxu0
        %v818 = vadd.f32 0.0, %v817
        %819 = vdwg.mxu0
        %v821 = vsel %vm561, %v576, 0
        %v824 = vsel %vm561, %v577, 0
        %v827 = vsel %vm561, %v578, 0
        %v830 = vsel %vm561, %v579, 0
        %v833 = vsel %vm629, %v592, 0
        %v836 = vsel %vm629, %v593, 0
        %v839 = vsel %vm629, %v594, 0
        %v842 = vsel %vm629, %v595, 0
        %844 = vmatprep.subr.mxu0 %v581
        %845 = vmatpush1.msra.mxu0 %v580
        %846 = vmatprep.subr.mxu0 %v585
        %847 = vmatpush1.msra.mxu0 %v584
        %848 = vmatprep.subr.mxu0 %v589
        %849 = vmatpush1.msra.mxu0 %v588
        %850 = vmatprep.subr.mxu0 %v836
        %851 = vmatpush1.msra.mxu0 %v833
        %852 = vmatprep.subr.mxu0 0.0
        %853 = vmatpush1.msra.mxu0 0.0
        %854 = vmatprep.subr.mxu0 0.0
        %855 = vmatpush1.msra.mxu0 0.0
        %856 = vmatprep.subr.mxu0 0.0
        %857 = vmatpush1.msra.mxu0 0.0
        %858 = vmatprep.subr.mxu0 0.0
        %859 = vmatpush1.msra.mxu0 0.0
        %860 = vmatprep.subr.mxu0 0.0
        %861 = vmatpush1.msra.mxu0 0.0
        %862 = vmatprep.subr.mxu0 0.0
        %863 = vmatpush1.msra.mxu0 0.0
        %864 = vmatprep.subr.mxu0 0.0
        %865 = vmatpush1.msra.mxu0 0.0
        %866 = vmatprep.subr.mxu0 0.0
        %867 = vmatpush1.msra.mxu0 0.0
        %868 = vmatprep.subr.mxu0 0.0
        %869 = vmatpush1.msra.mxu0 0.0
        %870 = vmatprep.subr.mxu0 0.0
        %871 = vmatpush1.msra.mxu0 0.0
        %872 = vmatprep.subr.mxu0 0.0
        %873 = vmatpush1.msra.mxu0 0.0
        %874 = vmatprep.subr.mxu0 0.0
        %875 = vmatpush1.msra.mxu0 0.0
        %876 = vmatprep.subr.mxu0 0.0
        %877 = vmatpush1.msra.mxu0 0.0
        %878 = vmatprep.subr.mxu0 0.0
        %879 = vmatpush1.msra.mxu0 0.0
        %880 = vmatprep.subr.mxu0 0.0
        %881 = vmatpush1.msra.mxu0 0.0
        %882 = vmatprep.subr.mxu0 0.0
        %883 = vmatpush1.msra.mxu0 0.0
        %884 = vmatprep.subr.mxu0 0.0
        %885 = vmatpush1.msra.mxu0 0.0
        %886 = vmatprep.subr.mxu0 0.0
        %887 = vmatpush1.msra.mxu0 0.0
        %888 = vmatprep.subr.mxu0 0.0
        %889 = vmatpush1.msra.mxu0 0.0
        %890 = vmatprep.subr.mxu0 0.0
        %891 = vmatpush1.msra.mxu0 0.0
        %892 = vmatprep.subr.mxu0 0.0
        %893 = vmatpush1.msra.mxu0 0.0
        %894 = vmatprep.subr.mxu0 0.0
        %895 = vmatpush1.msra.mxu0 0.0
        %896 = vmatprep.subr.mxu0 0.0
        %897 = vmatpush1.msra.mxu0 0.0
        %898 = vmatprep.subr.mxu0 0.0
        %899 = vmatpush1.msra.mxu0 0.0
        %900 = vmatprep.subr.mxu0 0.0
        %901 = vmatpush1.msra.mxu0 0.0
        %902 = vmatprep.subr.mxu0 0.0
        %903 = vmatpush1.msra.mxu0 0.0
        %904 = vmatprep.subr.mxu0 0.0
        %905 = vmatpush1.msra.mxu0 0.0
        %906 = vmatprep.subr.mxu0 0.0
        %907 = vmatpush1.msra.mxu0 0.0
        %908 = vmatprep.mubr.f32.mxu0 0.0
        %909 = vmatmul.mubr.f32.gmra.mrb[0].mxu0 %v821
        %v910 = vpop.f32.mrb[0].mxu0
        %v911 = vadd.f32 %v709, %v910
        %v912 = vpop.f32.mrb[0].mxu0
        %v913 = vadd.f32 %v711, %v912
        %914 = vmatprep.mubr.f32.mxu0 0.0
        %915 = vmatmul.mubr.f32.gmra.mrb[0].mxu0 %v824
        %v916 = vpop.f32.mrb[0].mxu0
        %v917 = vadd.f32 %v715, %v916
        %v918 = vpop.f32.mrb[0].mxu0
        %v919 = vadd.f32 %v717, %v918
        %920 = vmatprep.mubr.f32.mxu0 0.0
        %921 = vmatmul.mubr.f32.gmra.mrb[0].mxu0 %v827
        %v922 = vpop.f32.mrb[0].mxu0
        %v923 = vadd.f32 %v721, %v922
        %v924 = vpop.f32.mrb[0].mxu0
        %v925 = vadd.f32 %v723, %v924
        %926 = vmatprep.mubr.f32.mxu0 0.0
        %927 = vmatmul.mubr.f32.gmra.mrb[0].mxu0 %v830
        %v928 = vpop.f32.mrb[0].mxu0
        %v929 = vadd.f32 %v727, %v928
        %v930 = vpop.f32.mrb[0].mxu0
        %v931 = vadd.f32 %v729, %v930
        %932 = vdwg.mxu0
        %933 = vmatprep.subr.mxu0 %v583
        %934 = vmatpush1.msra.mxu0 %v582
        %935 = vmatprep.subr.mxu0 %v587
        %936 = vmatpush1.msra.mxu0 %v586
        %937 = vmatprep.subr.mxu0 %v591
        %938 = vmatpush1.msra.mxu0 %v590
        %939 = vmatprep.subr.mxu0 %v842
        %940 = vmatpush1.msra.mxu0 %v839
        %941 = vmatprep.subr.mxu0 0.0
        %942 = vmatpush1.msra.mxu0 0.0
        %943 = vmatprep.subr.mxu0 0.0
        %944 = vmatpush1.msra.mxu0 0.0
        %945 = vmatprep.subr.mxu0 0.0
        %946 = vmatpush1.msra.mxu0 0.0
        %947 = vmatprep.subr.mxu0 0.0
        %948 = vmatpush1.msra.mxu0 0.0
        %949 = vmatprep.subr.mxu0 0.0
        %950 = vmatpush1.msra.mxu0 0.0
        %951 = vmatprep.subr.mxu0 0.0
        %952 = vmatpush1.msra.mxu0 0.0
        %953 = vmatprep.subr.mxu0 0.0
        %954 = vmatpush1.msra.mxu0 0.0
        %955 = vmatprep.subr.mxu0 0.0
        %956 = vmatpush1.msra.mxu0 0.0
        %957 = vmatprep.subr.mxu0 0.0
        %958 = vmatpush1.msra.mxu0 0.0
        %959 = vmatprep.subr.mxu0 0.0
        %960 = vmatpush1.msra.mxu0 0.0
        %961 = vmatprep.subr.mxu0 0.0
        %962 = vmatpush1.msra.mxu0 0.0
        %963 = vmatprep.subr.mxu0 0.0
        %964 = vmatpush1.msra.mxu0 0.0
        %965 = vmatprep.subr.mxu0 0.0
        %966 = vmatpush1.msra.mxu0 0.0
        %967 = vmatprep.subr.mxu0 0.0
        %968 = vmatpush1.msra.mxu0 0.0
        %969 = vmatprep.subr.mxu0 0.0
        %970 = vmatpush1.msra.mxu0 0.0
        %971 = vmatprep.subr.mxu0 0.0
        %972 = vmatpush1.msra.mxu0 0.0
        %973 = vmatprep.subr.mxu0 0.0
        %974 = vmatpush1.msra.mxu0 0.0
        %975 = vmatprep.subr.mxu0 0.0
        %976 = vmatpush1.msra.mxu0 0.0
        %977 = vmatprep.subr.mxu0 0.0
        %978 = vmatpush1.msra.mxu0 0.0
        %979 = vmatprep.subr.mxu0 0.0
        %980 = vmatpush1.msra.mxu0 0.0
        %981 = vmatprep.subr.mxu0 0.0
        %982 = vmatpush1.msra.mxu0 0.0
        %983 = vmatprep.subr.mxu0 0.0
        %984 = vmatpush1.msra.mxu0 0.0
        %985 = vmatprep.subr.mxu0 0.0
        %986 = vmatpush1.msra.mxu0 0.0
        %987 = vmatprep.subr.mxu0 0.0
        %988 = vmatpush1.msra.mxu0 0.0
        %989 = vmatprep.subr.mxu0 0.0
        %990 = vmatpush1.msra.mxu0 0.0
        %991 = vmatprep.subr.mxu0 0.0
        %992 = vmatpush1.msra.mxu0 0.0
        %993 = vmatprep.subr.mxu0 0.0
        %994 = vmatpush1.msra.mxu0 0.0
        %995 = vmatprep.subr.mxu0 0.0
        %996 = vmatpush1.msra.mxu0 0.0
        %997 = vmatprep.mubr.f32.mxu0 0.0
        %998 = vmatmul.mubr.f32.gmra.mrb[0].mxu0 %v821
        %v999 = vpop.f32.mrb[0].mxu0
        %v1000 = vadd.f32 %v798, %v999
        %v1001 = vpop.f32.mrb[0].mxu0
        %v1002 = vadd.f32 %v800, %v1001
        %1003 = vmatprep.mubr.f32.mxu0 0.0
        %1004 = vmatmul.mubr.f32.gmra.mrb[0].mxu0 %v824
        %v1005 = vpop.f32.mrb[0].mxu0
        %v1006 = vadd.f32 %v804, %v1005
        %v1007 = vpop.f32.mrb[0].mxu0
        %v1008 = vadd.f32 %v806, %v1007
        %1009 = vmatprep.mubr.f32.mxu0 0.0
        %1010 = vmatmul.mubr.f32.gmra.mrb[0].mxu0 %v827
        %v1011 = vpop.f32.mrb[0].mxu0
        %v1012 = vadd.f32 %v810, %v1011
        %v1013 = vpop.f32.mrb[0].mxu0
        %v1014 = vadd.f32 %v812, %v1013
        %1015 = vmatprep.mubr.f32.mxu0 0.0
        %1016 = vmatmul.mubr.f32.gmra.mrb[0].mxu0 %v830
        %v1017 = vpop.f32.mrb[0].mxu0
        %v1018 = vadd.f32 %v816, %v1017
        %v1019 = vpop.f32.mrb[0].mxu0
        %v1020 = vadd.f32 %v818, %v1019
        %1021 = vdwg.mxu0
        %v1022 = vld [vmem:[#allocation2 + $0x2] sm:$0xff]
        %v1023 = vld [vmem:[#allocation2 + $0xa] sm:$0xff]
        %v1024 = vld [vmem:[#allocation2 + $0x12] sm:$0xff]
        %v1025 = vld [vmem:[#allocation2 + $0x1a] sm:$0xf]
        %s1026 = scalar_lea.vmem [#allocation4], 256
        %v1027 = vld [vmem:[%s1026] sm:$0xff]
        %v1028 = vld [vmem:[%s1026 + $0x8] sm:$0xff]
        %v1029 = vld [vmem:[%s1026 + $0x10] sm:$0xff]
        %v1030 = vld [vmem:[%s1026 + $0x18] sm:$0xff]
        %v1031 = vld [vmem:[%s1026 + $0x20] sm:$0xff]
        %v1032 = vld [vmem:[%s1026 + $0x28] sm:$0xff]
        %v1033 = vld [vmem:[%s1026 + $0x30] sm:$0xff]
        %v1034 = vld [vmem:[%s1026 + $0x38] sm:$0xff]
        %v1035 = vld [vmem:[%s1026 + $0x40] sm:$0xff]
        %v1036 = vld [vmem:[%s1026 + $0x48] sm:$0xff]
        %v1037 = vld [vmem:[%s1026 + $0x50] sm:$0xff]
        %v1038 = vld [vmem:[%s1026 + $0x58] sm:$0xff]
        %v1039 = vld [vmem:[%s1026 + $0x60] sm:$0xf]
        %v1040 = vld [vmem:[%s1026 + $0x68] sm:$0xf]
        %v1041 = vld [vmem:[%s1026 + $0x70] sm:$0xf]
        %v1042 = vld [vmem:[%s1026 + $0x78] sm:$0xf]
        %v1044 = vsel %vm561, %v1022, 0
        %v1047 = vsel %vm561, %v1023, 0
        %v1050 = vsel %vm561, %v1024, 0
        %v1053 = vsel %vm561, %v1025, 0
        %v1056 = vsel %vm629, %v1039, 0
        %v1059 = vsel %vm629, %v1040, 0
        %v1062 = vsel %vm629, %v1041, 0
        %v1065 = vsel %vm629, %v1042, 0
        %1067 = vmatprep.subr.mxu0 %v1028
        %1068 = vmatpush1.msra.mxu0 %v1027
        %1069 = vmatprep.subr.mxu0 %v1032
        %1070 = vmatpush1.msra.mxu0 %v1031
        %1071 = vmatprep.subr.mxu0 %v1036
        %1072 = vmatpush1.msra.mxu0 %v1035
        %1073 = vmatprep.subr.mxu0 %v1059
        %1074 = vmatpush1.msra.mxu0 %v1056
        %1075 = vmatprep.subr.mxu0 0.0
        %1076 = vmatpush1.msra.mxu0 0.0
        %1077 = vmatprep.subr.mxu0 0.0
        %1078 = vmatpush1.msra.mxu0 0.0
        %1079 = vmatprep.subr.mxu0 0.0
        %1080 = vmatpush1.msra.mxu0 0.0
        %1081 = vmatprep.subr.mxu0 0.0
        %1082 = vmatpush1.msra.mxu0 0.0
        %1083 = vmatprep.subr.mxu0 0.0
        %1084 = vmatpush1.msra.mxu0 0.0
        %1085 = vmatprep.subr.mxu0 0.0
        %1086 = vmatpush1.msra.mxu0 0.0
        %1087 = vmatprep.subr.mxu0 0.0
        %1088 = vmatpush1.msra.mxu0 0.0
        %1089 = vmatprep.subr.mxu0 0.0
        %1090 = vmatpush1.msra.mxu0 0.0
        %1091 = vmatprep.subr.mxu0 0.0
        %1092 = vmatpush1.msra.mxu0 0.0
        %1093 = vmatprep.subr.mxu0 0.0
        %1094 = vmatpush1.msra.mxu0 0.0
        %1095 = vmatprep.subr.mxu0 0.0
        %1096 = vmatpush1.msra.mxu0 0.0
        %1097 = vmatprep.subr.mxu0 0.0
        %1098 = vmatpush1.msra.mxu0 0.0
        %1099 = vmatprep.subr.mxu0 0.0
        %1100 = vmatpush1.msra.mxu0 0.0
        %1101 = vmatprep.subr.mxu0 0.0
        %1102 = vmatpush1.msra.mxu0 0.0
        %1103 = vmatprep.subr.mxu0 0.0
        %1104 = vmatpush1.msra.mxu0 0.0
        %1105 = vmatprep.subr.mxu0 0.0
        %1106 = vmatpush1.msra.mxu0 0.0
        %1107 = vmatprep.subr.mxu0 0.0
        %1108 = vmatpush1.msra.mxu0 0.0
        %1109 = vmatprep.subr.mxu0 0.0
        %1110 = vmatpush1.msra.mxu0 0.0
        %1111 = vmatprep.subr.mxu0 0.0
        %1112 = vmatpush1.msra.mxu0 0.0
        %1113 = vmatprep.subr.mxu0 0.0
        %1114 = vmatpush1.msra.mxu0 0.0
        %1115 = vmatprep.subr.mxu0 0.0
        %1116 = vmatpush1.msra.mxu0 0.0
        %1117 = vmatprep.subr.mxu0 0.0
        %1118 = vmatpush1.msra.mxu0 0.0
        %1119 = vmatprep.subr.mxu0 0.0
        %1120 = vmatpush1.msra.mxu0 0.0
        %1121 = vmatprep.subr.mxu0 0.0
        %1122 = vmatpush1.msra.mxu0 0.0
        %1123 = vmatprep.subr.mxu0 0.0
        %1124 = vmatpush1.msra.mxu0 0.0
        %1125 = vmatprep.subr.mxu0 0.0
        %1126 = vmatpush1.msra.mxu0 0.0
        %1127 = vmatprep.subr.mxu0 0.0
        %1128 = vmatpush1.msra.mxu0 0.0
        %1129 = vmatprep.subr.mxu0 0.0
        %1130 = vmatpush1.msra.mxu0 0.0
        %1131 = vmatprep.mubr.f32.mxu0 0.0
        %1132 = vmatmul.mubr.f32.gmra.mrb[0].mxu0 %v1044
        %v1133 = vpop.f32.mrb[0].mxu0
        %v1134 = vadd.f32 0.0, %v1133
        %v1135 = vpop.f32.mrb[0].mxu0
        %v1136 = vadd.f32 0.0, %v1135
        %1137 = vmatprep.mubr.f32.mxu0 0.0
        %1138 = vmatmul.mubr.f32.gmra.mrb[0].mxu0 %v1047
        %v1139 = vpop.f32.mrb[0].mxu0
        %v1140 = vadd.f32 0.0, %v1139
        %v1141 = vpop.f32.mrb[0].mxu0
        %v1142 = vadd.f32 0.0, %v1141
        %1143 = vmatprep.mubr.f32.mxu0 0.0
        %1144 = vmatmul.mubr.f32.gmra.mrb[0].mxu0 %v1050
        %v1145 = vpop.f32.mrb[0].mxu0
        %v1146 = vadd.f32 0.0, %v1145
        %v1147 = vpop.f32.mrb[0].mxu0
        %v1148 = vadd.f32 0.0, %v1147
        %1149 = vmatprep.mubr.f32.mxu0 0.0
        %1150 = vmatmul.mubr.f32.gmra.mrb[0].mxu0 %v1053
        %v1151 = vpop.f32.mrb[0].mxu0
        %v1152 = vadd.f32 0.0, %v1151
        %v1153 = vpop.f32.mrb[0].mxu0
        %v1154 = vadd.f32 0.0, %v1153
        %1155 = vdwg.mxu0
        %1156 = vmatprep.subr.mxu0 %v1030
        %1157 = vmatpush1.msra.mxu0 %v1029
        %1158 = vmatprep.subr.mxu0 %v1034
        %1159 = vmatpush1.msra.mxu0 %v1033
        %1160 = vmatprep.subr.mxu0 %v1038
        %1161 = vmatpush1.msra.mxu0 %v1037
        %1162 = vmatprep.subr.mxu0 %v1065
        %1163 = vmatpush1.msra.mxu0 %v1062
        %1164 = vmatprep.subr.mxu0 0.0
        %1165 = vmatpush1.msra.mxu0 0.0
        %1166 = vmatprep.subr.mxu0 0.0
        %1167 = vmatpush1.msra.mxu0 0.0
        %1168 = vmatprep.subr.mxu0 0.0
        %1169 = vmatpush1.msra.mxu0 0.0
        %1170 = vmatprep.subr.mxu0 0.0
        %1171 = vmatpush1.msra.mxu0 0.0
        %1172 = vmatprep.subr.mxu0 0.0
        %1173 = vmatpush1.msra.mxu0 0.0
        %1174 = vmatprep.subr.mxu0 0.0
        %1175 = vmatpush1.msra.mxu0 0.0
        %1176 = vmatprep.subr.mxu0 0.0
        %1177 = vmatpush1.msra.mxu0 0.0
        %1178 = vmatprep.subr.mxu0 0.0
        %1179 = vmatpush1.msra.mxu0 0.0
        %1180 = vmatprep.subr.mxu0 0.0
        %1181 = vmatpush1.msra.mxu0 0.0
        %1182 = vmatprep.subr.mxu0 0.0
        %1183 = vmatpush1.msra.mxu0 0.0
        %1184 = vmatprep.subr.mxu0 0.0
        %1185 = vmatpush1.msra.mxu0 0.0
        %1186 = vmatprep.subr.mxu0 0.0
        %1187 = vmatpush1.msra.mxu0 0.0
        %1188 = vmatprep.subr.mxu0 0.0
        %1189 = vmatpush1.msra.mxu0 0.0
        %1190 = vmatprep.subr.mxu0 0.0
        %1191 = vmatpush1.msra.mxu0 0.0
        %1192 = vmatprep.subr.mxu0 0.0
        %1193 = vmatpush1.msra.mxu0 0.0
        %1194 = vmatprep.subr.mxu0 0.0
        %1195 = vmatpush1.msra.mxu0 0.0
        %1196 = vmatprep.subr.mxu0 0.0
        %1197 = vmatpush1.msra.mxu0 0.0
        %1198 = vmatprep.subr.mxu0 0.0
        %1199 = vmatpush1.msra.mxu0 0.0
        %1200 = vmatprep.subr.mxu0 0.0
        %1201 = vmatpush1.msra.mxu0 0.0
        %1202 = vmatprep.subr.mxu0 0.0
        %1203 = vmatpush1.msra.mxu0 0.0
        %1204 = vmatprep.subr.mxu0 0.0
        %1205 = vmatpush1.msra.mxu0 0.0
        %1206 = vmatprep.subr.mxu0 0.0
        %1207 = vmatpush1.msra.mxu0 0.0
        %1208 = vmatprep.subr.mxu0 0.0
        %1209 = vmatpush1.msra.mxu0 0.0
        %1210 = vmatprep.subr.mxu0 0.0
        %1211 = vmatpush1.msra.mxu0 0.0
        %1212 = vmatprep.subr.mxu0 0.0
        %1213 = vmatpush1.msra.mxu0 0.0
        %1214 = vmatprep.subr.mxu0 0.0
        %1215 = vmatpush1.msra.mxu0 0.0
        %1216 = vmatprep.subr.mxu0 0.0
        %1217 = vmatpush1.msra.mxu0 0.0
        %1218 = vmatprep.subr.mxu0 0.0
        %1219 = vmatpush1.msra.mxu0 0.0
        %1220 = vmatprep.mubr.f32.mxu0 0.0
        %1221 = vmatmul.mubr.f32.gmra.mrb[0].mxu0 %v1044
        %v1222 = vpop.f32.mrb[0].mxu0
        %v1223 = vadd.f32 0.0, %v1222
        %v1224 = vpop.f32.mrb[0].mxu0
        %v1225 = vadd.f32 0.0, %v1224
        %1226 = vmatprep.mubr.f32.mxu0 0.0
        %1227 = vmatmul.mubr.f32.gmra.mrb[0].mxu0 %v1047
        %v1228 = vpop.f32.mrb[0].mxu0
        %v1229 = vadd.f32 0.0, %v1228
        %v1230 = vpop.f32.mrb[0].mxu0
        %v1231 = vadd.f32 0.0, %v1230
        %1232 = vmatprep.mubr.f32.mxu0 0.0
        %1233 = vmatmul.mubr.f32.gmra.mrb[0].mxu0 %v1050
        %v1234 = vpop.f32.mrb[0].mxu0
        %v1235 = vadd.f32 0.0, %v1234
        %v1236 = vpop.f32.mrb[0].mxu0
        %v1237 = vadd.f32 0.0, %v1236
        %1238 = vmatprep.mubr.f32.mxu0 0.0
        %1239 = vmatmul.mubr.f32.gmra.mrb[0].mxu0 %v1053
        %v1240 = vpop.f32.mrb[0].mxu0
        %v1241 = vadd.f32 0.0, %v1240
        %v1242 = vpop.f32.mrb[0].mxu0
        %v1243 = vadd.f32 0.0, %v1242
        %1244 = vdwg.mxu0
        %v1245 = vadd.f32 %v911, %v1134
        %v1246 = vadd.f32 %v913, %v1136
        %v1247 = vadd.f32 %v1000, %v1223
        %v1248 = vadd.f32 %v1002, %v1225
        %v1249 = vadd.f32 %v917, %v1140
        %v1250 = vadd.f32 %v919, %v1142
        %v1251 = vadd.f32 %v1006, %v1229
        %v1252 = vadd.f32 %v1008, %v1231
        %v1253 = vadd.f32 %v923, %v1146
        %v1254 = vadd.f32 %v925, %v1148
        %v1255 = vadd.f32 %v1012, %v1235
        %v1256 = vadd.f32 %v1014, %v1237
        %v1257 = vadd.f32 %v929, %v1152
        %v1258 = vadd.f32 %v931, %v1154
        %v1259 = vadd.f32 %v1018, %v1241
        %v1260 = vadd.f32 %v1020, %v1243
        %v1261 = vld [vmem:[#allocation7] sm:$0xf]
        %v1263 = vlaneseq
        %v1264 = vshrl.u32 %v1263, 7
        %v1265 = vsub.s32 0, %v1264
        %v1266 = vrot.slane %v1261, %v1265
        %v1267 = vlaneseq
        %v1268 = vshrl.u32 %v1267, 7
        %v1269 = vsub.s32 1, %v1268
        %v1270 = vrot.slane %v1261, %v1269
        %v1271 = vlaneseq
        %v1272 = vshrl.u32 %v1271, 7
        %v1273 = vsub.s32 2, %v1272
        %v1274 = vrot.slane %v1261, %v1273
        %v1275 = vlaneseq
        %v1276 = vshrl.u32 %v1275, 7
        %v1277 = vsub.s32 3, %v1276
        %v1278 = vrot.slane %v1261, %v1277
        %v1283 = vadd.f32 %v1245, %v1266
        %v1284 = vadd.f32 %v1246, %v1270
        %v1285 = vadd.f32 %v1247, %v1274
        %v1286 = vadd.f32 %v1248, %v1278
        %v1287 = vadd.f32 %v1249, %v1266
        %v1288 = vadd.f32 %v1250, %v1270
        %v1289 = vadd.f32 %v1251, %v1274
        %v1290 = vadd.f32 %v1252, %v1278
        %v1291 = vadd.f32 %v1253, %v1266
        %v1292 = vadd.f32 %v1254, %v1270
        %v1293 = vadd.f32 %v1255, %v1274
        %v1294 = vadd.f32 %v1256, %v1278
        %v1295 = vadd.f32 %v1257, %v1266
        %v1296 = vadd.f32 %v1258, %v1270
        %v1297 = vadd.f32 %v1259, %v1274
        %v1298 = vadd.f32 %v1260, %v1278
        %v1299 = vmax.f32 %v1283, 0.0
        %v1300 = vmax.f32 %v1284, 0.0
        %v1301 = vmax.f32 %v1285, 0.0
        %v1302 = vmax.f32 %v1286, 0.0
        %v1303 = vmax.f32 %v1287, 0.0
        %v1304 = vmax.f32 %v1288, 0.0
        %v1305 = vmax.f32 %v1289, 0.0
        %v1306 = vmax.f32 %v1290, 0.0
        %v1307 = vmax.f32 %v1291, 0.0
        %v1308 = vmax.f32 %v1292, 0.0
        %v1309 = vmax.f32 %v1293, 0.0
        %v1310 = vmax.f32 %v1294, 0.0
        %v1311 = vmax.f32 %v1295, 0.0
        %v1312 = vmax.f32 %v1296, 0.0
        %v1313 = vmax.f32 %v1297, 0.0
        %v1314 = vmax.f32 %v1298, 0.0
        %v1315 = vld [vmem:[%s3] sm:$0xff]
        %v1316 = vld [vmem:[%s3 + $0x8] sm:$0x3f]
        %v1318 = vsel %vm561, %v1315, 0
        %v1321 = vsel %vm561, %v1316, 0
        %v1324 = vsel %vm629, %v1311, 0
        %v1327 = vsel %vm629, %v1312, 0
        %v1330 = vsel %vm629, %v1313, 0
        %v1333 = vsel %vm629, %v1314, 0
        %1335 = vmatprep.subr.mxu0 %v1300
        %1336 = vmatpush1.msra.mxu0 %v1299
        %1337 = vmatprep.subr.mxu0 %v1304
        %1338 = vmatpush1.msra.mxu0 %v1303
        %1339 = vmatprep.subr.mxu0 %v1308
        %1340 = vmatpush1.msra.mxu0 %v1307
        %1341 = vmatprep.subr.mxu0 %v1327
        %1342 = vmatpush1.msra.mxu0 %v1324
        %1343 = vmatprep.subr.mxu0 0.0
        %1344 = vmatpush1.msra.mxu0 0.0
        %1345 = vmatprep.subr.mxu0 0.0
        %1346 = vmatpush1.msra.mxu0 0.0
        %1347 = vmatprep.subr.mxu0 0.0
        %1348 = vmatpush1.msra.mxu0 0.0
        %1349 = vmatprep.subr.mxu0 0.0
        %1350 = vmatpush1.msra.mxu0 0.0
        %1351 = vmatprep.subr.mxu0 0.0
        %1352 = vmatpush1.msra.mxu0 0.0
        %1353 = vmatprep.subr.mxu0 0.0
        %1354 = vmatpush1.msra.mxu0 0.0
        %1355 = vmatprep.subr.mxu0 0.0
        %1356 = vmatpush1.msra.mxu0 0.0
        %1357 = vmatprep.subr.mxu0 0.0
        %1358 = vmatpush1.msra.mxu0 0.0
        %1359 = vmatprep.subr.mxu0 0.0
        %1360 = vmatpush1.msra.mxu0 0.0
        %1361 = vmatprep.subr.mxu0 0.0
        %1362 = vmatpush1.msra.mxu0 0.0
        %1363 = vmatprep.subr.mxu0 0.0
        %1364 = vmatpush1.msra.mxu0 0.0
        %1365 = vmatprep.subr.mxu0 0.0
        %1366 = vmatpush1.msra.mxu0 0.0
        %1367 = vmatprep.subr.mxu0 0.0
        %1368 = vmatpush1.msra.mxu0 0.0
        %1369 = vmatprep.subr.mxu0 0.0
        %1370 = vmatpush1.msra.mxu0 0.0
        %1371 = vmatprep.subr.mxu0 0.0
        %1372 = vmatpush1.msra.mxu0 0.0
        %1373 = vmatprep.subr.mxu0 0.0
        %1374 = vmatpush1.msra.mxu0 0.0
        %1375 = vmatprep.subr.mxu0 0.0
        %1376 = vmatpush1.msra.mxu0 0.0
        %1377 = vmatprep.subr.mxu0 0.0
        %1378 = vmatpush1.msra.mxu0 0.0
        %1379 = vmatprep.subr.mxu0 0.0
        %1380 = vmatpush1.msra.mxu0 0.0
        %1381 = vmatprep.subr.mxu0 0.0
        %1382 = vmatpush1.msra.mxu0 0.0
        %1383 = vmatprep.subr.mxu0 0.0
        %1384 = vmatpush1.msra.mxu0 0.0
        %1385 = vmatprep.subr.mxu0 0.0
        %1386 = vmatpush1.msra.mxu0 0.0
        %1387 = vmatprep.subr.mxu0 0.0
        %1388 = vmatpush1.msra.mxu0 0.0
        %1389 = vmatprep.subr.mxu0 0.0
        %1390 = vmatpush1.msra.mxu0 0.0
        %1391 = vmatprep.subr.mxu0 0.0
        %1392 = vmatpush1.msra.mxu0 0.0
        %1393 = vmatprep.subr.mxu0 0.0
        %1394 = vmatpush1.msra.mxu0 0.0
        %1395 = vmatprep.subr.mxu0 0.0
        %1396 = vmatpush1.msra.mxu0 0.0
        %1397 = vmatprep.subr.mxu0 0.0
        %1398 = vmatpush1.msra.mxu0 0.0
        %1399 = vmatprep.mubr.f32.mxu0 0.0
        %1400 = vmatmul.mubr.f32.gmra.mrb[0].mxu0 %v1318
        %v1401 = vpop.f32.mrb[0].mxu0
        %v1402 = vadd.f32 0.0, %v1401
        %v1403 = vpop.f32.mrb[0].mxu0
        %v1404 = vadd.f32 0.0, %v1403
        %1405 = vmatprep.mubr.f32.mxu0 0.0
        %1406 = vmatmul.mubr.f32.gmra.mrb[0].mxu0 %v1321
        %v1407 = vpop.f32.mrb[0].mxu0
        %v1408 = vadd.f32 0.0, %v1407
        %v1409 = vpop.f32.mrb[0].mxu0
        %v1410 = vadd.f32 0.0, %v1409
        %1411 = vdwg.mxu0
        %1412 = vmatprep.subr.mxu0 %v1302
        %1413 = vmatpush1.msra.mxu0 %v1301
        %1414 = vmatprep.subr.mxu0 %v1306
        %1415 = vmatpush1.msra.mxu0 %v1305
        %1416 = vmatprep.subr.mxu0 %v1310
        %1417 = vmatpush1.msra.mxu0 %v1309
        %1418 = vmatprep.subr.mxu0 %v1333
        %1419 = vmatpush1.msra.mxu0 %v1330
        %1420 = vmatprep.subr.mxu0 0.0
        %1421 = vmatpush1.msra.mxu0 0.0
        %1422 = vmatprep.subr.mxu0 0.0
        %1423 = vmatpush1.msra.mxu0 0.0
        %1424 = vmatprep.subr.mxu0 0.0
        %1425 = vmatpush1.msra.mxu0 0.0
        %1426 = vmatprep.subr.mxu0 0.0
        %1427 = vmatpush1.msra.mxu0 0.0
        %1428 = vmatprep.subr.mxu0 0.0
        %1429 = vmatpush1.msra.mxu0 0.0
        %1430 = vmatprep.subr.mxu0 0.0
        %1431 = vmatpush1.msra.mxu0 0.0
        %1432 = vmatprep.subr.mxu0 0.0
        %1433 = vmatpush1.msra.mxu0 0.0
        %1434 = vmatprep.subr.mxu0 0.0
        %1435 = vmatpush1.msra.mxu0 0.0
        %1436 = vmatprep.subr.mxu0 0.0
        %1437 = vmatpush1.msra.mxu0 0.0
        %1438 = vmatprep.subr.mxu0 0.0
        %1439 = vmatpush1.msra.mxu0 0.0
        %1440 = vmatprep.subr.mxu0 0.0
        %1441 = vmatpush1.msra.mxu0 0.0
        %1442 = vmatprep.subr.mxu0 0.0
        %1443 = vmatpush1.msra.mxu0 0.0
        %1444 = vmatprep.subr.mxu0 0.0
        %1445 = vmatpush1.msra.mxu0 0.0
        %1446 = vmatprep.subr.mxu0 0.0
        %1447 = vmatpush1.msra.mxu0 0.0
        %1448 = vmatprep.subr.mxu0 0.0
        %1449 = vmatpush1.msra.mxu0 0.0
        %1450 = vmatprep.subr.mxu0 0.0
        %1451 = vmatpush1.msra.mxu0 0.0
        %1452 = vmatprep.subr.mxu0 0.0
        %1453 = vmatpush1.msra.mxu0 0.0
        %1454 = vmatprep.subr.mxu0 0.0
        %1455 = vmatpush1.msra.mxu0 0.0
        %1456 = vmatprep.subr.mxu0 0.0
        %1457 = vmatpush1.msra.mxu0 0.0
        %1458 = vmatprep.subr.mxu0 0.0
        %1459 = vmatpush1.msra.mxu0 0.0
        %1460 = vmatprep.subr.mxu0 0.0
        %1461 = vmatpush1.msra.mxu0 0.0
        %1462 = vmatprep.subr.mxu0 0.0
        %1463 = vmatpush1.msra.mxu0 0.0
        %1464 = vmatprep.subr.mxu0 0.0
        %1465 = vmatpush1.msra.mxu0 0.0
        %1466 = vmatprep.subr.mxu0 0.0
        %1467 = vmatpush1.msra.mxu0 0.0
        %1468 = vmatprep.subr.mxu0 0.0
        %1469 = vmatpush1.msra.mxu0 0.0
        %1470 = vmatprep.subr.mxu0 0.0
        %1471 = vmatpush1.msra.mxu0 0.0
        %1472 = vmatprep.subr.mxu0 0.0
        %1473 = vmatpush1.msra.mxu0 0.0
        %1474 = vmatprep.subr.mxu0 0.0
        %1475 = vmatpush1.msra.mxu0 0.0
        %1476 = vmatprep.mubr.f32.mxu0 0.0
        %1477 = vmatmul.mubr.f32.gmra.mrb[0].mxu0 %v1318
        %v1478 = vpop.f32.mrb[0].mxu0
        %v1479 = vadd.f32 0.0, %v1478
        %v1480 = vpop.f32.mrb[0].mxu0
        %v1481 = vadd.f32 0.0, %v1480
        %1482 = vmatprep.mubr.f32.mxu0 0.0
        %1483 = vmatmul.mubr.f32.gmra.mrb[0].mxu0 %v1321
        %v1484 = vpop.f32.mrb[0].mxu0
        %v1485 = vadd.f32 0.0, %v1484
        %v1486 = vpop.f32.mrb[0].mxu0
        %v1487 = vadd.f32 0.0, %v1486
        %1488 = vdwg.mxu0
        %s1489 = scalar_lea.vmem %s3, 16
        %v1490 = vld [vmem:[%s1489] sm:$0xff]
        %v1491 = vld [vmem:[%s1489 + $0x8] sm:$0x3f]
        %v1493 = vsel %vm561, %v1490, 0
        %v1496 = vsel %vm561, %v1491, 0
        %1498 = vmatprep.subr.mxu0 %v1300
        %1499 = vmatpush1.msra.mxu0 %v1299
        %1500 = vmatprep.subr.mxu0 %v1304
        %1501 = vmatpush1.msra.mxu0 %v1303
        %1502 = vmatprep.subr.mxu0 %v1308
        %1503 = vmatpush1.msra.mxu0 %v1307
        %1504 = vmatprep.subr.mxu0 %v1327
        %1505 = vmatpush1.msra.mxu0 %v1324
        %1506 = vmatprep.subr.mxu0 0.0
        %1507 = vmatpush1.msra.mxu0 0.0
        %1508 = vmatprep.subr.mxu0 0.0
        %1509 = vmatpush1.msra.mxu0 0.0
        %1510 = vmatprep.subr.mxu0 0.0
        %1511 = vmatpush1.msra.mxu0 0.0
        %1512 = vmatprep.subr.mxu0 0.0
        %1513 = vmatpush1.msra.mxu0 0.0
        %1514 = vmatprep.subr.mxu0 0.0
        %1515 = vmatpush1.msra.mxu0 0.0
        %1516 = vmatprep.subr.mxu0 0.0
        %1517 = vmatpush1.msra.mxu0 0.0
        %1518 = vmatprep.subr.mxu0 0.0
        %1519 = vmatpush1.msra.mxu0 0.0
        %1520 = vmatprep.subr.mxu0 0.0
        %1521 = vmatpush1.msra.mxu0 0.0
        %1522 = vmatprep.subr.mxu0 0.0
        %1523 = vmatpush1.msra.mxu0 0.0
        %1524 = vmatprep.subr.mxu0 0.0
        %1525 = vmatpush1.msra.mxu0 0.0
        %1526 = vmatprep.subr.mxu0 0.0
        %1527 = vmatpush1.msra.mxu0 0.0
        %1528 = vmatprep.subr.mxu0 0.0
        %1529 = vmatpush1.msra.mxu0 0.0
        %1530 = vmatprep.subr.mxu0 0.0
        %1531 = vmatpush1.msra.mxu0 0.0
        %1532 = vmatprep.subr.mxu0 0.0
        %1533 = vmatpush1.msra.mxu0 0.0
        %1534 = vmatprep.subr.mxu0 0.0
        %1535 = vmatpush1.msra.mxu0 0.0
        %1536 = vmatprep.subr.mxu0 0.0
        %1537 = vmatpush1.msra.mxu0 0.0
        %1538 = vmatprep.subr.mxu0 0.0
        %1539 = vmatpush1.msra.mxu0 0.0
        %1540 = vmatprep.subr.mxu0 0.0
        %1541 = vmatpush1.msra.mxu0 0.0
        %1542 = vmatprep.subr.mxu0 0.0
        %1543 = vmatpush1.msra.mxu0 0.0
        %1544 = vmatprep.subr.mxu0 0.0
        %1545 = vmatpush1.msra.mxu0 0.0
        %1546 = vmatprep.subr.mxu0 0.0
        %1547 = vmatpush1.msra.mxu0 0.0
        %1548 = vmatprep.subr.mxu0 0.0
        %1549 = vmatpush1.msra.mxu0 0.0
        %1550 = vmatprep.subr.mxu0 0.0
        %1551 = vmatpush1.msra.mxu0 0.0
        %1552 = vmatprep.subr.mxu0 0.0
        %1553 = vmatpush1.msra.mxu0 0.0
        %1554 = vmatprep.subr.mxu0 0.0
        %1555 = vmatpush1.msra.mxu0 0.0
        %1556 = vmatprep.subr.mxu0 0.0
        %1557 = vmatpush1.msra.mxu0 0.0
        %1558 = vmatprep.subr.mxu0 0.0
        %1559 = vmatpush1.msra.mxu0 0.0
        %1560 = vmatprep.subr.mxu0 0.0
        %1561 = vmatpush1.msra.mxu0 0.0
        %1562 = vmatprep.mubr.f32.mxu0 0.0
        %1563 = vmatmul.mubr.f32.gmra.mrb[0].mxu0 %v1493
        %v1564 = vpop.f32.mrb[0].mxu0
        %v1565 = vadd.f32 0.0, %v1564
        %v1566 = vpop.f32.mrb[0].mxu0
        %v1567 = vadd.f32 0.0, %v1566
        %1568 = vmatprep.mubr.f32.mxu0 0.0
        %1569 = vmatmul.mubr.f32.gmra.mrb[0].mxu0 %v1496
        %v1570 = vpop.f32.mrb[0].mxu0
        %v1571 = vadd.f32 0.0, %v1570
        %v1572 = vpop.f32.mrb[0].mxu0
        %v1573 = vadd.f32 0.0, %v1572
        %1574 = vdwg.mxu0
        %1575 = vmatprep.subr.mxu0 %v1302
        %1576 = vmatpush1.msra.mxu0 %v1301
        %1577 = vmatprep.subr.mxu0 %v1306
        %1578 = vmatpush1.msra.mxu0 %v1305
        %1579 = vmatprep.subr.mxu0 %v1310
        %1580 = vmatpush1.msra.mxu0 %v1309
        %1581 = vmatprep.subr.mxu0 %v1333
        %1582 = vmatpush1.msra.mxu0 %v1330
        %1583 = vmatprep.subr.mxu0 0.0
        %1584 = vmatpush1.msra.mxu0 0.0
        %1585 = vmatprep.subr.mxu0 0.0
        %1586 = vmatpush1.msra.mxu0 0.0
        %1587 = vmatprep.subr.mxu0 0.0
        %1588 = vmatpush1.msra.mxu0 0.0
        %1589 = vmatprep.subr.mxu0 0.0
        %1590 = vmatpush1.msra.mxu0 0.0
        %1591 = vmatprep.subr.mxu0 0.0
        %1592 = vmatpush1.msra.mxu0 0.0
        %1593 = vmatprep.subr.mxu0 0.0
        %1594 = vmatpush1.msra.mxu0 0.0
        %1595 = vmatprep.subr.mxu0 0.0
        %1596 = vmatpush1.msra.mxu0 0.0
        %1597 = vmatprep.subr.mxu0 0.0
        %1598 = vmatpush1.msra.mxu0 0.0
        %1599 = vmatprep.subr.mxu0 0.0
        %1600 = vmatpush1.msra.mxu0 0.0
        %1601 = vmatprep.subr.mxu0 0.0
        %1602 = vmatpush1.msra.mxu0 0.0
        %1603 = vmatprep.subr.mxu0 0.0
        %1604 = vmatpush1.msra.mxu0 0.0
        %1605 = vmatprep.subr.mxu0 0.0
        %1606 = vmatpush1.msra.mxu0 0.0
        %1607 = vmatprep.subr.mxu0 0.0
        %1608 = vmatpush1.msra.mxu0 0.0
        %1609 = vmatprep.subr.mxu0 0.0
        %1610 = vmatpush1.msra.mxu0 0.0
        %1611 = vmatprep.subr.mxu0 0.0
        %1612 = vmatpush1.msra.mxu0 0.0
        %1613 = vmatprep.subr.mxu0 0.0
        %1614 = vmatpush1.msra.mxu0 0.0
        %1615 = vmatprep.subr.mxu0 0.0
        %1616 = vmatpush1.msra.mxu0 0.0
        %1617 = vmatprep.subr.mxu0 0.0
        %1618 = vmatpush1.msra.mxu0 0.0
        %1619 = vmatprep.subr.mxu0 0.0
        %1620 = vmatpush1.msra.mxu0 0.0
        %1621 = vmatprep.subr.mxu0 0.0
        %1622 = vmatpush1.msra.mxu0 0.0
        %1623 = vmatprep.subr.mxu0 0.0
        %1624 = vmatpush1.msra.mxu0 0.0
        %1625 = vmatprep.subr.mxu0 0.0
        %1626 = vmatpush1.msra.mxu0 0.0
        %1627 = vmatprep.subr.mxu0 0.0
        %1628 = vmatpush1.msra.mxu0 0.0
        %1629 = vmatprep.subr.mxu0 0.0
        %1630 = vmatpush1.msra.mxu0 0.0
        %1631 = vmatprep.subr.mxu0 0.0
        %1632 = vmatpush1.msra.mxu0 0.0
        %1633 = vmatprep.subr.mxu0 0.0
        %1634 = vmatpush1.msra.mxu0 0.0
        %1635 = vmatprep.subr.mxu0 0.0
        %1636 = vmatpush1.msra.mxu0 0.0
        %1637 = vmatprep.subr.mxu0 0.0
        %1638 = vmatpush1.msra.mxu0 0.0
        %1639 = vmatprep.mubr.f32.mxu0 0.0
        %1640 = vmatmul.mubr.f32.gmra.mrb[0].mxu0 %v1493
        %v1641 = vpop.f32.mrb[0].mxu0
        %v1642 = vadd.f32 0.0, %v1641
        %v1643 = vpop.f32.mrb[0].mxu0
        %v1644 = vadd.f32 0.0, %v1643
        %1645 = vmatprep.mubr.f32.mxu0 0.0
        %1646 = vmatmul.mubr.f32.gmra.mrb[0].mxu0 %v1496
        %v1647 = vpop.f32.mrb[0].mxu0
        %v1648 = vadd.f32 0.0, %v1647
        %v1649 = vpop.f32.mrb[0].mxu0
        %v1650 = vadd.f32 0.0, %v1649
        %1651 = vdwg.mxu0
        %v1652 = vmax.f32 %v1402, %v1565
        %v1653 = vmax.f32 %v1404, %v1567
        %v1654 = vmax.f32 %v1479, %v1642
        %v1655 = vmax.f32 %v1481, %v1644
        %v1656 = vmax.f32 %v1408, %v1571
        %v1657 = vmax.f32 %v1410, %v1573
        %v1658 = vmax.f32 %v1485, %v1648
        %v1659 = vmax.f32 %v1487, %v1650
        %v1660 = vld [vmem:[#allocation9] sm:$0xff]
        %v1661 = vld [vmem:[#allocation9 + $0x8] sm:$0xff]
        %v1662 = vld [vmem:[#allocation9 + $0x10] sm:$0xff]
        %v1663 = vld [vmem:[#allocation9 + $0x18] sm:$0xff]
        %v1664 = vld [vmem:[#allocation9 + $0x20] sm:$0xff]
        %v1665 = vld [vmem:[#allocation9 + $0x28] sm:$0xff]
        %v1666 = vld [vmem:[#allocation9 + $0x30] sm:$0xff]
        %v1667 = vld [vmem:[#allocation9 + $0x38] sm:$0xff]
        %v1668 = vld [vmem:[#allocation9 + $0x40] sm:$0xff]
        %v1669 = vld [vmem:[#allocation9 + $0x48] sm:$0xff]
        %v1670 = vld [vmem:[#allocation9 + $0x50] sm:$0xff]
        %v1671 = vld [vmem:[#allocation9 + $0x58] sm:$0xff]
        %v1672 = vld [vmem:[#allocation9 + $0x60] sm:$0xff]
        %v1673 = vld [vmem:[#allocation9 + $0x68] sm:$0xff]
        %v1674 = vld [vmem:[#allocation9 + $0x70] sm:$0xff]
        %v1675 = vld [vmem:[#allocation9 + $0x78] sm:$0xff]
        %v1676 = vld [vmem:[#allocation9 + $0x80] sm:$0xff]
        %v1677 = vld [vmem:[#allocation9 + $0x88] sm:$0xff]
        %v1678 = vld [vmem:[#allocation9 + $0x90] sm:$0xff]
        %v1679 = vld [vmem:[#allocation9 + $0x98] sm:$0xff]
        %v1680 = vld [vmem:[#allocation9 + $0xa0] sm:$0xff]
        %v1681 = vld [vmem:[#allocation9 + $0xa8] sm:$0xff]
        %v1682 = vld [vmem:[#allocation9 + $0xb0] sm:$0xff]
        %v1683 = vld [vmem:[#allocation9 + $0xb8] sm:$0xff]
        %v1684 = vld [vmem:[#allocation9 + $0xc0] sm:$0xff]
        %v1685 = vld [vmem:[#allocation9 + $0xc8] sm:$0xff]
        %v1686 = vld [vmem:[#allocation9 + $0xd0] sm:$0xff]
        %v1687 = vld [vmem:[#allocation9 + $0xd8] sm:$0xff]
        %v1688 = vld [vmem:[#allocation9 + $0xe0] sm:$0xff]
        %v1689 = vld [vmem:[#allocation9 + $0xe8] sm:$0xff]
        %v1690 = vld [vmem:[#allocation9 + $0xf0] sm:$0xff]
        %v1691 = vld [vmem:[#allocation9 + $0xf8] sm:$0xff]
        %v1692 = vld [vmem:[#allocation9 + $0x100] sm:$0xff]
        %v1693 = vld [vmem:[#allocation9 + $0x108] sm:$0xff]
        %v1694 = vld [vmem:[#allocation9 + $0x110] sm:$0xff]
        %v1695 = vld [vmem:[#allocation9 + $0x118] sm:$0xff]
        %v1696 = vld [vmem:[#allocation9 + $0x120] sm:$0xff]
        %v1697 = vld [vmem:[#allocation9 + $0x128] sm:$0xff]
        %v1698 = vld [vmem:[#allocation9 + $0x130] sm:$0xff]
        %v1699 = vld [vmem:[#allocation9 + $0x138] sm:$0xff]
        %v1700 = vld [vmem:[#allocation9 + $0x140] sm:$0xff]
        %v1701 = vld [vmem:[#allocation9 + $0x148] sm:$0xff]
        %v1702 = vld [vmem:[#allocation9 + $0x150] sm:$0xff]
        %v1703 = vld [vmem:[#allocation9 + $0x158] sm:$0xff]
        %v1704 = vld [vmem:[#allocation9 + $0x160] sm:$0xff]
        %v1705 = vld [vmem:[#allocation9 + $0x168] sm:$0xff]
        %v1706 = vld [vmem:[#allocation9 + $0x170] sm:$0xff]
        %v1707 = vld [vmem:[#allocation9 + $0x178] sm:$0xff]
        %v1708 = vld [vmem:[#allocation9 + $0x180] sm:$0xff]
        %v1709 = vld [vmem:[#allocation9 + $0x188] sm:$0xff]
        %v1710 = vld [vmem:[#allocation9 + $0x190] sm:$0xff]
        %v1711 = vld [vmem:[#allocation9 + $0x198] sm:$0xff]
        %v1712 = vld [vmem:[#allocation9 + $0x1a0] sm:$0xff]
        %v1713 = vld [vmem:[#allocation9 + $0x1a8] sm:$0xff]
        %v1714 = vld [vmem:[#allocation9 + $0x1b0] sm:$0xff]
        %v1715 = vld [vmem:[#allocation9 + $0x1b8] sm:$0xff]
        %v1716 = vld [vmem:[#allocation9 + $0x1c0] sm:$0xff]
        %v1717 = vld [vmem:[#allocation9 + $0x1c8] sm:$0xff]
        %v1718 = vld [vmem:[#allocation9 + $0x1d0] sm:$0xff]
        %v1719 = vld [vmem:[#allocation9 + $0x1d8] sm:$0xff]
        %v1720 = vld [vmem:[#allocation9 + $0x1e0] sm:$0xff]
        %v1721 = vld [vmem:[#allocation9 + $0x1e8] sm:$0xff]
        %v1722 = vld [vmem:[#allocation9 + $0x1f0] sm:$0xff]
        %v1723 = vld [vmem:[#allocation9 + $0x1f8] sm:$0xff]
        %v1724 = vld [vmem:[#allocation9 + $0x200] sm:$0xff]
        %v1725 = vld [vmem:[#allocation9 + $0x208] sm:$0xff]
        %v1726 = vld [vmem:[#allocation9 + $0x210] sm:$0xff]
        %v1727 = vld [vmem:[#allocation9 + $0x218] sm:$0xff]
        %v1728 = vld [vmem:[#allocation9 + $0x220] sm:$0xff]
        %v1729 = vld [vmem:[#allocation9 + $0x228] sm:$0xff]
        %v1730 = vld [vmem:[#allocation9 + $0x230] sm:$0xff]
        %v1731 = vld [vmem:[#allocation9 + $0x238] sm:$0xff]
        %v1732 = vld [vmem:[#allocation9 + $0x240] sm:$0xff]
        %v1733 = vld [vmem:[#allocation9 + $0x248] sm:$0xff]
        %v1734 = vld [vmem:[#allocation9 + $0x250] sm:$0xff]
        %v1735 = vld [vmem:[#allocation9 + $0x258] sm:$0xff]
        %v1736 = vld [vmem:[#allocation9 + $0x260] sm:$0xff]
        %v1737 = vld [vmem:[#allocation9 + $0x268] sm:$0xff]
        %v1738 = vld [vmem:[#allocation9 + $0x270] sm:$0xff]
        %v1739 = vld [vmem:[#allocation9 + $0x278] sm:$0xff]
        %v1740 = vld [vmem:[#allocation9 + $0x280] sm:$0xff]
        %v1741 = vld [vmem:[#allocation9 + $0x288] sm:$0xff]
        %v1742 = vld [vmem:[#allocation9 + $0x290] sm:$0xff]
        %v1743 = vld [vmem:[#allocation9 + $0x298] sm:$0xff]
        %v1744 = vld [vmem:[#allocation9 + $0x2a0] sm:$0xff]
        %v1745 = vld [vmem:[#allocation9 + $0x2a8] sm:$0xff]
        %v1746 = vld [vmem:[#allocation9 + $0x2b0] sm:$0xff]
        %v1747 = vld [vmem:[#allocation9 + $0x2b8] sm:$0xff]
        %v1748 = vld [vmem:[#allocation9 + $0x2c0] sm:$0xff]
        %v1749 = vld [vmem:[#allocation9 + $0x2c8] sm:$0xff]
        %v1750 = vld [vmem:[#allocation9 + $0x2d0] sm:$0xff]
        %v1751 = vld [vmem:[#allocation9 + $0x2d8] sm:$0xff]
        %v1752 = vld [vmem:[#allocation9 + $0x2e0] sm:$0xff]
        %v1753 = vld [vmem:[#allocation9 + $0x2e8] sm:$0xff]
        %v1754 = vld [vmem:[#allocation9 + $0x2f0] sm:$0xff]
        %v1755 = vld [vmem:[#allocation9 + $0x2f8] sm:$0xff]
        %v1756 = vld [vmem:[#allocation9 + $0x300] sm:$0xff]
        %v1757 = vld [vmem:[#allocation9 + $0x308] sm:$0xff]
        %v1758 = vld [vmem:[#allocation9 + $0x310] sm:$0xff]
        %v1759 = vld [vmem:[#allocation9 + $0x318] sm:$0xff]
        %v1760 = vld [vmem:[#allocation9 + $0x320] sm:$0xff]
        %v1761 = vld [vmem:[#allocation9 + $0x328] sm:$0xff]
        %v1762 = vld [vmem:[#allocation9 + $0x330] sm:$0xff]
        %v1763 = vld [vmem:[#allocation9 + $0x338] sm:$0xff]
        %v1764 = vld [vmem:[#allocation9 + $0x340] sm:$0xff]
        %v1765 = vld [vmem:[#allocation9 + $0x348] sm:$0xff]
        %v1766 = vld [vmem:[#allocation9 + $0x350] sm:$0xff]
        %v1767 = vld [vmem:[#allocation9 + $0x358] sm:$0xff]
        %v1768 = vld [vmem:[#allocation9 + $0x360] sm:$0xff]
        %v1769 = vld [vmem:[#allocation9 + $0x368] sm:$0xff]
        %v1770 = vld [vmem:[#allocation9 + $0x370] sm:$0xff]
        %v1771 = vld [vmem:[#allocation9 + $0x378] sm:$0xff]
        %vm1772 = vcmask 523264
        %v1774 = vsel %vm1772, %v1655, 0
        %v1777 = vsel %vm1772, %v1659, 0
        %1779 = vmatprep.subr.mxu0 %v1661
        %1780 = vmatpush1.msra.mxu0 %v1660
        %1781 = vmatprep.subr.mxu0 %v1663
        %1782 = vmatpush1.msra.mxu0 %v1662
        %1783 = vmatprep.subr.mxu0 %v1665
        %1784 = vmatpush1.msra.mxu0 %v1664
        %1785 = vmatprep.subr.mxu0 %v1667
        %1786 = vmatpush1.msra.mxu0 %v1666
        %1787 = vmatprep.subr.mxu0 %v1669
        %1788 = vmatpush1.msra.mxu0 %v1668
        %1789 = vmatprep.subr.mxu0 %v1671
        %1790 = vmatpush1.msra.mxu0 %v1670
        %1791 = vmatprep.subr.mxu0 %v1673
        %1792 = vmatpush1.msra.mxu0 %v1672
        %1793 = vmatprep.subr.mxu0 %v1675
        %1794 = vmatpush1.msra.mxu0 %v1674
        %1795 = vmatprep.subr.mxu0 %v1677
        %1796 = vmatpush1.msra.mxu0 %v1676
        %1797 = vmatprep.subr.mxu0 %v1679
        %1798 = vmatpush1.msra.mxu0 %v1678
        %1799 = vmatprep.subr.mxu0 %v1681
        %1800 = vmatpush1.msra.mxu0 %v1680
        %1801 = vmatprep.subr.mxu0 %v1683
        %1802 = vmatpush1.msra.mxu0 %v1682
        %1803 = vmatprep.subr.mxu0 %v1685
        %1804 = vmatpush1.msra.mxu0 %v1684
        %1805 = vmatprep.subr.mxu0 %v1687
        %1806 = vmatpush1.msra.mxu0 %v1686
        %1807 = vmatprep.subr.mxu0 %v1689
        %1808 = vmatpush1.msra.mxu0 %v1688
        %1809 = vmatprep.subr.mxu0 %v1691
        %1810 = vmatpush1.msra.mxu0 %v1690
        %1811 = vmatprep.subr.mxu0 %v1693
        %1812 = vmatpush1.msra.mxu0 %v1692
        %1813 = vmatprep.subr.mxu0 %v1695
        %1814 = vmatpush1.msra.mxu0 %v1694
        %1815 = vmatprep.subr.mxu0 %v1697
        %1816 = vmatpush1.msra.mxu0 %v1696
        %1817 = vmatprep.subr.mxu0 %v1699
        %1818 = vmatpush1.msra.mxu0 %v1698
        %1819 = vmatprep.subr.mxu0 %v1701
        %1820 = vmatpush1.msra.mxu0 %v1700
        %1821 = vmatprep.subr.mxu0 %v1703
        %1822 = vmatpush1.msra.mxu0 %v1702
        %1823 = vmatprep.subr.mxu0 %v1705
        %1824 = vmatpush1.msra.mxu0 %v1704
        %1825 = vmatprep.subr.mxu0 %v1707
        %1826 = vmatpush1.msra.mxu0 %v1706
        %1827 = vmatprep.subr.mxu0 %v1709
        %1828 = vmatpush1.msra.mxu0 %v1708
        %1829 = vmatprep.subr.mxu0 %v1711
        %1830 = vmatpush1.msra.mxu0 %v1710
        %1831 = vmatprep.subr.mxu0 %v1713
        %1832 = vmatpush1.msra.mxu0 %v1712
        %1833 = vmatprep.subr.mxu0 %v1715
        %1834 = vmatpush1.msra.mxu0 %v1714
        %1835 = vmatprep.subr.mxu0 %v1717
        %1836 = vmatpush1.msra.mxu0 %v1716
        %1837 = vmatprep.subr.mxu0 %v1719
        %1838 = vmatpush1.msra.mxu0 %v1718
        %1839 = vmatprep.subr.mxu0 %v1721
        %1840 = vmatpush1.msra.mxu0 %v1720
        %1841 = vmatprep.subr.mxu0 %v1723
        %1842 = vmatpush1.msra.mxu0 %v1722
        %1843 = vmatprep.mubr.f32.mxu0 %v1653
        %1844 = vmatmul.mubr.f32.gmra.mrb[0].mxu0 %v1652
        %v1845 = vpop.f32.mrb[0].mxu0
        %v1846 = vadd.f32 0.0, %v1845
        %v1847 = vpop.f32.mrb[0].mxu0
        %v1848 = vadd.f32 0.0, %v1847
        %1849 = vmatprep.mubr.f32.mxu0 %v1657
        %1850 = vmatmul.mubr.f32.gmra.mrb[0].mxu0 %v1656
        %v1851 = vpop.f32.mrb[0].mxu0
        %v1852 = vadd.f32 0.0, %v1851
        %v1853 = vpop.f32.mrb[0].mxu0
        %v1854 = vadd.f32 0.0, %v1853
        %1855 = vdwg.mxu0
        %1856 = vmatprep.subr.mxu0 %v1725
        %1857 = vmatpush1.msra.mxu0 %v1724
        %1858 = vmatprep.subr.mxu0 %v1727
        %1859 = vmatpush1.msra.mxu0 %v1726
        %1860 = vmatprep.subr.mxu0 %v1729
        %1861 = vmatpush1.msra.mxu0 %v1728
        %1862 = vmatprep.subr.mxu0 %v1731
        %1863 = vmatpush1.msra.mxu0 %v1730
        %1864 = vmatprep.subr.mxu0 %v1733
        %1865 = vmatpush1.msra.mxu0 %v1732
        %1866 = vmatprep.subr.mxu0 %v1735
        %1867 = vmatpush1.msra.mxu0 %v1734
        %1868 = vmatprep.subr.mxu0 %v1737
        %1869 = vmatpush1.msra.mxu0 %v1736
        %1870 = vmatprep.subr.mxu0 %v1739
        %1871 = vmatpush1.msra.mxu0 %v1738
        %1872 = vmatprep.subr.mxu0 %v1741
        %1873 = vmatpush1.msra.mxu0 %v1740
        %1874 = vmatprep.subr.mxu0 %v1743
        %1875 = vmatpush1.msra.mxu0 %v1742
        %1876 = vmatprep.subr.mxu0 %v1745
        %1877 = vmatpush1.msra.mxu0 %v1744
        %1878 = vmatprep.subr.mxu0 %v1747
        %1879 = vmatpush1.msra.mxu0 %v1746
        %1880 = vmatprep.subr.mxu0 %v1749
        %1881 = vmatpush1.msra.mxu0 %v1748
        %1882 = vmatprep.subr.mxu0 %v1751
        %1883 = vmatpush1.msra.mxu0 %v1750
        %1884 = vmatprep.subr.mxu0 %v1753
        %1885 = vmatpush1.msra.mxu0 %v1752
        %1886 = vmatprep.subr.mxu0 %v1755
        %1887 = vmatpush1.msra.mxu0 %v1754
        %1888 = vmatprep.subr.mxu0 %v1757
        %1889 = vmatpush1.msra.mxu0 %v1756
        %1890 = vmatprep.subr.mxu0 %v1759
        %1891 = vmatpush1.msra.mxu0 %v1758
        %1892 = vmatprep.subr.mxu0 %v1761
        %1893 = vmatpush1.msra.mxu0 %v1760
        %1894 = vmatprep.subr.mxu0 %v1763
        %1895 = vmatpush1.msra.mxu0 %v1762
        %1896 = vmatprep.subr.mxu0 %v1765
        %1897 = vmatpush1.msra.mxu0 %v1764
        %1898 = vmatprep.subr.mxu0 %v1767
        %1899 = vmatpush1.msra.mxu0 %v1766
        %1900 = vmatprep.subr.mxu0 %v1769
        %1901 = vmatpush1.msra.mxu0 %v1768
        %1902 = vmatprep.subr.mxu0 %v1771
        %1903 = vmatpush1.msra.mxu0 %v1770
        %1904 = vmatprep.subr.mxu0 0.0
        %1905 = vmatpush1.msra.mxu0 0.0
        %1906 = vmatprep.subr.mxu0 0.0
        %1907 = vmatpush1.msra.mxu0 0.0
        %1908 = vmatprep.subr.mxu0 0.0
        %1909 = vmatpush1.msra.mxu0 0.0
        %1910 = vmatprep.subr.mxu0 0.0
        %1911 = vmatpush1.msra.mxu0 0.0
        %1912 = vmatprep.subr.mxu0 0.0
        %1913 = vmatpush1.msra.mxu0 0.0
        %1914 = vmatprep.subr.mxu0 0.0
        %1915 = vmatpush1.msra.mxu0 0.0
        %1916 = vmatprep.subr.mxu0 0.0
        %1917 = vmatpush1.msra.mxu0 0.0
        %1918 = vmatprep.subr.mxu0 0.0
        %1919 = vmatpush1.msra.mxu0 0.0
        %1920 = vmatprep.mubr.f32.mxu0 %v1774
        %1921 = vmatmul.mubr.f32.gmra.mrb[0].mxu0 %v1654
        %v1922 = vpop.f32.mrb[0].mxu0
        %v1923 = vadd.f32 %v1846, %v1922
        %v1924 = vpop.f32.mrb[0].mxu0
        %v1925 = vadd.f32 %v1848, %v1924
        %1926 = vmatprep.mubr.f32.mxu0 %v1777
        %1927 = vmatmul.mubr.f32.gmra.mrb[0].mxu0 %v1658
        %v1928 = vpop.f32.mrb[0].mxu0
        %v1929 = vadd.f32 %v1852, %v1928
        %v1930 = vpop.f32.mrb[0].mxu0
        %v1931 = vadd.f32 %v1854, %v1930
        %1932 = vdwg.mxu0
        %s1933 = scalar_lea.vmem [#allocation9], 896
        %v1934 = vld [vmem:[%s1933] sm:$0xff]
        %v1935 = vld [vmem:[%s1933 + $0x8] sm:$0xff]
        %v1936 = vld [vmem:[%s1933 + $0x10] sm:$0xff]
        %v1937 = vld [vmem:[%s1933 + $0x18] sm:$0xff]
        %v1938 = vld [vmem:[%s1933 + $0x20] sm:$0xff]
        %v1939 = vld [vmem:[%s1933 + $0x28] sm:$0xff]
        %v1940 = vld [vmem:[%s1933 + $0x30] sm:$0xff]
        %v1941 = vld [vmem:[%s1933 + $0x38] sm:$0xff]
        %v1942 = vld [vmem:[%s1933 + $0x40] sm:$0xff]
        %v1943 = vld [vmem:[%s1933 + $0x48] sm:$0xff]
        %v1944 = vld [vmem:[%s1933 + $0x50] sm:$0xff]
        %v1945 = vld [vmem:[%s1933 + $0x58] sm:$0xff]
        %v1946 = vld [vmem:[%s1933 + $0x60] sm:$0xff]
        %v1947 = vld [vmem:[%s1933 + $0x68] sm:$0xff]
        %v1948 = vld [vmem:[%s1933 + $0x70] sm:$0xff]
        %v1949 = vld [vmem:[%s1933 + $0x78] sm:$0xff]
        %v1950 = vld [vmem:[%s1933 + $0x80] sm:$0xff]
        %v1951 = vld [vmem:[%s1933 + $0x88] sm:$0xff]
        %v1952 = vld [vmem:[%s1933 + $0x90] sm:$0xff]
        %v1953 = vld [vmem:[%s1933 + $0x98] sm:$0xff]
        %v1954 = vld [vmem:[%s1933 + $0xa0] sm:$0xff]
        %v1955 = vld [vmem:[%s1933 + $0xa8] sm:$0xff]
        %v1956 = vld [vmem:[%s1933 + $0xb0] sm:$0xff]
        %v1957 = vld [vmem:[%s1933 + $0xb8] sm:$0xff]
        %v1958 = vld [vmem:[%s1933 + $0xc0] sm:$0xff]
        %v1959 = vld [vmem:[%s1933 + $0xc8] sm:$0xff]
        %v1960 = vld [vmem:[%s1933 + $0xd0] sm:$0xff]
        %v1961 = vld [vmem:[%s1933 + $0xd8] sm:$0xff]
        %v1962 = vld [vmem:[%s1933 + $0xe0] sm:$0xff]
        %v1963 = vld [vmem:[%s1933 + $0xe8] sm:$0xff]
        %v1964 = vld [vmem:[%s1933 + $0xf0] sm:$0xff]
        %v1965 = vld [vmem:[%s1933 + $0xf8] sm:$0xff]
        %v1966 = vld [vmem:[%s1933 + $0x100] sm:$0xff]
        %v1967 = vld [vmem:[%s1933 + $0x108] sm:$0xff]
        %v1968 = vld [vmem:[%s1933 + $0x110] sm:$0xff]
        %v1969 = vld [vmem:[%s1933 + $0x118] sm:$0xff]
        %v1970 = vld [vmem:[%s1933 + $0x120] sm:$0xff]
        %v1971 = vld [vmem:[%s1933 + $0x128] sm:$0xff]
        %v1972 = vld [vmem:[%s1933 + $0x130] sm:$0xff]
        %v1973 = vld [vmem:[%s1933 + $0x138] sm:$0xff]
        %v1974 = vld [vmem:[%s1933 + $0x140] sm:$0xff]
        %v1975 = vld [vmem:[%s1933 + $0x148] sm:$0xff]
        %v1976 = vld [vmem:[%s1933 + $0x150] sm:$0xff]
        %v1977 = vld [vmem:[%s1933 + $0x158] sm:$0xff]
        %v1978 = vld [vmem:[%s1933 + $0x160] sm:$0xff]
        %v1979 = vld [vmem:[%s1933 + $0x168] sm:$0xff]
        %v1980 = vld [vmem:[%s1933 + $0x170] sm:$0xff]
        %v1981 = vld [vmem:[%s1933 + $0x178] sm:$0xff]
        %v1982 = vld [vmem:[%s1933 + $0x180] sm:$0xff]
        %v1983 = vld [vmem:[%s1933 + $0x188] sm:$0xff]
        %v1984 = vld [vmem:[%s1933 + $0x190] sm:$0xff]
        %v1985 = vld [vmem:[%s1933 + $0x198] sm:$0xff]
        %v1986 = vld [vmem:[%s1933 + $0x1a0] sm:$0xff]
        %v1987 = vld [vmem:[%s1933 + $0x1a8] sm:$0xff]
        %v1988 = vld [vmem:[%s1933 + $0x1b0] sm:$0xff]
        %v1989 = vld [vmem:[%s1933 + $0x1b8] sm:$0xff]
        %v1990 = vld [vmem:[%s1933 + $0x1c0] sm:$0xff]
        %v1991 = vld [vmem:[%s1933 + $0x1c8] sm:$0xff]
        %v1992 = vld [vmem:[%s1933 + $0x1d0] sm:$0xff]
        %v1993 = vld [vmem:[%s1933 + $0x1d8] sm:$0xff]
        %v1994 = vld [vmem:[%s1933 + $0x1e0] sm:$0xff]
        %v1995 = vld [vmem:[%s1933 + $0x1e8] sm:$0xff]
        %v1996 = vld [vmem:[%s1933 + $0x1f0] sm:$0xff]
        %v1997 = vld [vmem:[%s1933 + $0x1f8] sm:$0xff]
        %v1998 = vld [vmem:[%s1933 + $0x200] sm:$0xff]
        %v1999 = vld [vmem:[%s1933 + $0x208] sm:$0xff]
        %v2000 = vld [vmem:[%s1933 + $0x210] sm:$0xff]
        %v2001 = vld [vmem:[%s1933 + $0x218] sm:$0xff]
        %v2002 = vld [vmem:[%s1933 + $0x220] sm:$0xff]
        %v2003 = vld [vmem:[%s1933 + $0x228] sm:$0xff]
        %v2004 = vld [vmem:[%s1933 + $0x230] sm:$0xff]
        %v2005 = vld [vmem:[%s1933 + $0x238] sm:$0xff]
        %v2006 = vld [vmem:[%s1933 + $0x240] sm:$0xff]
        %v2007 = vld [vmem:[%s1933 + $0x248] sm:$0xff]
        %v2008 = vld [vmem:[%s1933 + $0x250] sm:$0xff]
        %v2009 = vld [vmem:[%s1933 + $0x258] sm:$0xff]
        %v2010 = vld [vmem:[%s1933 + $0x260] sm:$0xff]
        %v2011 = vld [vmem:[%s1933 + $0x268] sm:$0xff]
        %v2012 = vld [vmem:[%s1933 + $0x270] sm:$0xff]
        %v2013 = vld [vmem:[%s1933 + $0x278] sm:$0xff]
        %v2014 = vld [vmem:[%s1933 + $0x280] sm:$0xff]
        %v2015 = vld [vmem:[%s1933 + $0x288] sm:$0xff]
        %v2016 = vld [vmem:[%s1933 + $0x290] sm:$0xff]
        %v2017 = vld [vmem:[%s1933 + $0x298] sm:$0xff]
        %v2018 = vld [vmem:[%s1933 + $0x2a0] sm:$0xff]
        %v2019 = vld [vmem:[%s1933 + $0x2a8] sm:$0xff]
        %v2020 = vld [vmem:[%s1933 + $0x2b0] sm:$0xff]
        %v2021 = vld [vmem:[%s1933 + $0x2b8] sm:$0xff]
        %v2022 = vld [vmem:[%s1933 + $0x2c0] sm:$0xff]
        %v2023 = vld [vmem:[%s1933 + $0x2c8] sm:$0xff]
        %v2024 = vld [vmem:[%s1933 + $0x2d0] sm:$0xff]
        %v2025 = vld [vmem:[%s1933 + $0x2d8] sm:$0xff]
        %v2026 = vld [vmem:[%s1933 + $0x2e0] sm:$0xff]
        %v2027 = vld [vmem:[%s1933 + $0x2e8] sm:$0xff]
        %v2028 = vld [vmem:[%s1933 + $0x2f0] sm:$0xff]
        %v2029 = vld [vmem:[%s1933 + $0x2f8] sm:$0xff]
        %v2030 = vld [vmem:[%s1933 + $0x300] sm:$0xff]
        %v2031 = vld [vmem:[%s1933 + $0x308] sm:$0xff]
        %v2032 = vld [vmem:[%s1933 + $0x310] sm:$0xff]
        %v2033 = vld [vmem:[%s1933 + $0x318] sm:$0xff]
        %v2034 = vld [vmem:[%s1933 + $0x320] sm:$0xff]
        %v2035 = vld [vmem:[%s1933 + $0x328] sm:$0xff]
        %v2036 = vld [vmem:[%s1933 + $0x330] sm:$0xff]
        %v2037 = vld [vmem:[%s1933 + $0x338] sm:$0xff]
        %v2038 = vld [vmem:[%s1933 + $0x340] sm:$0xff]
        %v2039 = vld [vmem:[%s1933 + $0x348] sm:$0xff]
        %v2040 = vld [vmem:[%s1933 + $0x350] sm:$0xff]
        %v2041 = vld [vmem:[%s1933 + $0x358] sm:$0xff]
        %v2042 = vld [vmem:[%s1933 + $0x360] sm:$0xff]
        %v2043 = vld [vmem:[%s1933 + $0x368] sm:$0xff]
        %v2044 = vld [vmem:[%s1933 + $0x370] sm:$0xff]
        %v2045 = vld [vmem:[%s1933 + $0x378] sm:$0xff]
        %2046 = vmatprep.subr.mxu0 %v1935
        %2047 = vmatpush1.msra.mxu0 %v1934
        %2048 = vmatprep.subr.mxu0 %v1937
        %2049 = vmatpush1.msra.mxu0 %v1936
        %2050 = vmatprep.subr.mxu0 %v1939
        %2051 = vmatpush1.msra.mxu0 %v1938
        %2052 = vmatprep.subr.mxu0 %v1941
        %2053 = vmatpush1.msra.mxu0 %v1940
        %2054 = vmatprep.subr.mxu0 %v1943
        %2055 = vmatpush1.msra.mxu0 %v1942
        %2056 = vmatprep.subr.mxu0 %v1945
        %2057 = vmatpush1.msra.mxu0 %v1944
        %2058 = vmatprep.subr.mxu0 %v1947
        %2059 = vmatpush1.msra.mxu0 %v1946
        %2060 = vmatprep.subr.mxu0 %v1949
        %2061 = vmatpush1.msra.mxu0 %v1948
        %2062 = vmatprep.subr.mxu0 %v1951
        %2063 = vmatpush1.msra.mxu0 %v1950
        %2064 = vmatprep.subr.mxu0 %v1953
        %2065 = vmatpush1.msra.mxu0 %v1952
        %2066 = vmatprep.subr.mxu0 %v1955
        %2067 = vmatpush1.msra.mxu0 %v1954
        %2068 = vmatprep.subr.mxu0 %v1957
        %2069 = vmatpush1.msra.mxu0 %v1956
        %2070 = vmatprep.subr.mxu0 %v1959
        %2071 = vmatpush1.msra.mxu0 %v1958
        %2072 = vmatprep.subr.mxu0 %v1961
        %2073 = vmatpush1.msra.mxu0 %v1960
        %2074 = vmatprep.subr.mxu0 %v1963
        %2075 = vmatpush1.msra.mxu0 %v1962
        %2076 = vmatprep.subr.mxu0 %v1965
        %2077 = vmatpush1.msra.mxu0 %v1964
        %2078 = vmatprep.subr.mxu0 %v1967
        %2079 = vmatpush1.msra.mxu0 %v1966
        %2080 = vmatprep.subr.mxu0 %v1969
        %2081 = vmatpush1.msra.mxu0 %v1968
        %2082 = vmatprep.subr.mxu0 %v1971
        %2083 = vmatpush1.msra.mxu0 %v1970
        %2084 = vmatprep.subr.mxu0 %v1973
        %2085 = vmatpush1.msra.mxu0 %v1972
        %2086 = vmatprep.subr.mxu0 %v1975
        %2087 = vmatpush1.msra.mxu0 %v1974
        %2088 = vmatprep.subr.mxu0 %v1977
        %2089 = vmatpush1.msra.mxu0 %v1976
        %2090 = vmatprep.subr.mxu0 %v1979
        %2091 = vmatpush1.msra.mxu0 %v1978
        %2092 = vmatprep.subr.mxu0 %v1981
        %2093 = vmatpush1.msra.mxu0 %v1980
        %2094 = vmatprep.subr.mxu0 %v1983
        %2095 = vmatpush1.msra.mxu0 %v1982
        %2096 = vmatprep.subr.mxu0 %v1985
        %2097 = vmatpush1.msra.mxu0 %v1984
        %2098 = vmatprep.subr.mxu0 %v1987
        %2099 = vmatpush1.msra.mxu0 %v1986
        %2100 = vmatprep.subr.mxu0 %v1989
        %2101 = vmatpush1.msra.mxu0 %v1988
        %2102 = vmatprep.subr.mxu0 %v1991
        %2103 = vmatpush1.msra.mxu0 %v1990
        %2104 = vmatprep.subr.mxu0 %v1993
        %2105 = vmatpush1.msra.mxu0 %v1992
        %2106 = vmatprep.subr.mxu0 %v1995
        %2107 = vmatpush1.msra.mxu0 %v1994
        %2108 = vmatprep.subr.mxu0 %v1997
        %2109 = vmatpush1.msra.mxu0 %v1996
        %2110 = vmatprep.mubr.f32.mxu0 %v1653
        %2111 = vmatmul.mubr.f32.gmra.mrb[0].mxu0 %v1652
        %v2112 = vpop.f32.mrb[0].mxu0
        %v2113 = vadd.f32 0.0, %v2112
        %v2114 = vpop.f32.mrb[0].mxu0
        %v2115 = vadd.f32 0.0, %v2114
        %2116 = vmatprep.mubr.f32.mxu0 %v1657
        %2117 = vmatmul.mubr.f32.gmra.mrb[0].mxu0 %v1656
        %v2118 = vpop.f32.mrb[0].mxu0
        %v2119 = vadd.f32 0.0, %v2118
        %v2120 = vpop.f32.mrb[0].mxu0
        %v2121 = vadd.f32 0.0, %v2120
        %2122 = vdwg.mxu0
        %2123 = vmatprep.subr.mxu0 %v1999
        %2124 = vmatpush1.msra.mxu0 %v1998
        %2125 = vmatprep.subr.mxu0 %v2001
        %2126 = vmatpush1.msra.mxu0 %v2000
        %2127 = vmatprep.subr.mxu0 %v2003
        %2128 = vmatpush1.msra.mxu0 %v2002
        %2129 = vmatprep.subr.mxu0 %v2005
        %2130 = vmatpush1.msra.mxu0 %v2004
        %2131 = vmatprep.subr.mxu0 %v2007
        %2132 = vmatpush1.msra.mxu0 %v2006
        %2133 = vmatprep.subr.mxu0 %v2009
        %2134 = vmatpush1.msra.mxu0 %v2008
        %2135 = vmatprep.subr.mxu0 %v2011
        %2136 = vmatpush1.msra.mxu0 %v2010
        %2137 = vmatprep.subr.mxu0 %v2013
        %2138 = vmatpush1.msra.mxu0 %v2012
        %2139 = vmatprep.subr.mxu0 %v2015
        %2140 = vmatpush1.msra.mxu0 %v2014
        %2141 = vmatprep.subr.mxu0 %v2017
        %2142 = vmatpush1.msra.mxu0 %v2016
        %2143 = vmatprep.subr.mxu0 %v2019
        %2144 = vmatpush1.msra.mxu0 %v2018
        %2145 = vmatprep.subr.mxu0 %v2021
        %2146 = vmatpush1.msra.mxu0 %v2020
        %2147 = vmatprep.subr.mxu0 %v2023
        %2148 = vmatpush1.msra.mxu0 %v2022
        %2149 = vmatprep.subr.mxu0 %v2025
        %2150 = vmatpush1.msra.mxu0 %v2024
        %2151 = vmatprep.subr.mxu0 %v2027
        %2152 = vmatpush1.msra.mxu0 %v2026
        %2153 = vmatprep.subr.mxu0 %v2029
        %2154 = vmatpush1.msra.mxu0 %v2028
        %2155 = vmatprep.subr.mxu0 %v2031
        %2156 = vmatpush1.msra.mxu0 %v2030
        %2157 = vmatprep.subr.mxu0 %v2033
        %2158 = vmatpush1.msra.mxu0 %v2032
        %2159 = vmatprep.subr.mxu0 %v2035
        %2160 = vmatpush1.msra.mxu0 %v2034
        %2161 = vmatprep.subr.mxu0 %v2037
        %2162 = vmatpush1.msra.mxu0 %v2036
        %2163 = vmatprep.subr.mxu0 %v2039
        %2164 = vmatpush1.msra.mxu0 %v2038
        %2165 = vmatprep.subr.mxu0 %v2041
        %2166 = vmatpush1.msra.mxu0 %v2040
        %2167 = vmatprep.subr.mxu0 %v2043
        %2168 = vmatpush1.msra.mxu0 %v2042
        %2169 = vmatprep.subr.mxu0 %v2045
        %2170 = vmatpush1.msra.mxu0 %v2044
        %2171 = vmatprep.subr.mxu0 0.0
        %2172 = vmatpush1.msra.mxu0 0.0
        %2173 = vmatprep.subr.mxu0 0.0
        %2174 = vmatpush1.msra.mxu0 0.0
        %2175 = vmatprep.subr.mxu0 0.0
        %2176 = vmatpush1.msra.mxu0 0.0
        %2177 = vmatprep.subr.mxu0 0.0
        %2178 = vmatpush1.msra.mxu0 0.0
        %2179 = vmatprep.subr.mxu0 0.0
        %2180 = vmatpush1.msra.mxu0 0.0
        %2181 = vmatprep.subr.mxu0 0.0
        %2182 = vmatpush1.msra.mxu0 0.0
        %2183 = vmatprep.subr.mxu0 0.0
        %2184 = vmatpush1.msra.mxu0 0.0
        %2185 = vmatprep.subr.mxu0 0.0
        %2186 = vmatpush1.msra.mxu0 0.0
        %2187 = vmatprep.mubr.f32.mxu0 %v1774
        %2188 = vmatmul.mubr.f32.gmra.mrb[0].mxu0 %v1654
        %v2189 = vpop.f32.mrb[0].mxu0
        %v2190 = vadd.f32 %v2113, %v2189
        %v2191 = vpop.f32.mrb[0].mxu0
        %v2192 = vadd.f32 %v2115, %v2191
        %2193 = vmatprep.mubr.f32.mxu0 %v1777
        %2194 = vmatmul.mubr.f32.gmra.mrb[0].mxu0 %v1658
        %v2195 = vpop.f32.mrb[0].mxu0
        %v2196 = vadd.f32 %v2119, %v2195
        %v2197 = vpop.f32.mrb[0].mxu0
        %v2198 = vadd.f32 %v2121, %v2197
        %2199 = vdwg.mxu0
        %v2200 = vmax.f32 %v1923, %v2190
        %v2201 = vmax.f32 %v1925, %v2192
        %v2202 = vmax.f32 %v1929, %v2196
        %v2203 = vmax.f32 %v1931, %v2198
        %2204 = vst [vmem:[#allocation3] sm:$0xff] 0.0
        %vm2205 = vcmask 785408
        %2206 = vst.msk [vmem:[#allocation3 + $0x8] sm:$0xff] %vm2205, 0.0
        %2207 = vst [vmem:[#allocation3 + $0x10] sm:$0xff] 0.0
        %2208 = vst.msk [vmem:[#allocation3 + $0x18] sm:$0xff] %vm2205, 0.0
        %vm2213 = vcmask 1040384
        %v2214 = vrot.slane %v2200, 7
        %v2215 = vrot.slane %v2201, 7
        %v2216 = vrot.slane %v2202, 7
        %v2217 = vsel %vm2213, %v2214, %v2216
        %v2218 = vrot.slane %v2203, 7
        %v2219 = vsel %vm2213, %v2215, %v2218
        %2224 = vst [vmem:[#allocation3] sm:$0xfe] %v2214
        %vm2225 = vcmask 785409
        %2226 = vst.msk [vmem:[#allocation3 + $0x8] sm:$0xfe] %vm2225, %v2215
        %2227 = vst [vmem:[#allocation3 + $0x10] sm:$0x7f] %v2217
        %vm2228 = vcmask 784384
        %2229 = vst.msk [vmem:[#allocation3 + $0x18] sm:$0x7f] %vm2228, %v2219
        %v2230 = vld [vmem:[#allocation3] sm:$0xff]
        %v2231 = vld [vmem:[#allocation3 + $0x8] sm:$0xff]
        %v2232 = vld [vmem:[#allocation3 + $0x10] sm:$0x3f]
        %v2233 = vld [vmem:[#allocation3 + $0x18] sm:$0x3f]
        %v2234 = vld [vmem:[#allocation10] sm:$0xff]
        %v2235 = vld [vmem:[#allocation10 + $0x8] sm:$0xff]
        %v2236 = vld [vmem:[#allocation10 + $0x10] sm:$0xff]
        %v2237 = vld [vmem:[#allocation10 + $0x18] sm:$0xff]
        %v2238 = vld [vmem:[#allocation10 + $0x20] sm:$0xff]
        %v2239 = vld [vmem:[#allocation10 + $0x28] sm:$0xff]
        %v2240 = vld [vmem:[#allocation10 + $0x30] sm:$0xff]
        %v2241 = vld [vmem:[#allocation10 + $0x38] sm:$0xff]
        %v2242 = vld [vmem:[#allocation10 + $0x40] sm:$0xff]
        %v2243 = vld [vmem:[#allocation10 + $0x48] sm:$0xff]
        %v2244 = vld [vmem:[#allocation10 + $0x50] sm:$0xff]
        %v2245 = vld [vmem:[#allocation10 + $0x58] sm:$0xff]
        %v2246 = vld [vmem:[#allocation10 + $0x60] sm:$0xff]
        %v2247 = vld [vmem:[#allocation10 + $0x68] sm:$0xff]
        %v2248 = vld [vmem:[#allocation10 + $0x70] sm:$0xff]
        %v2249 = vld [vmem:[#allocation10 + $0x78] sm:$0xff]
        %v2250 = vld [vmem:[#allocation10 + $0x80] sm:$0xff]
        %v2251 = vld [vmem:[#allocation10 + $0x88] sm:$0xff]
        %v2252 = vld [vmem:[#allocation10 + $0x90] sm:$0xff]
        %v2253 = vld [vmem:[#allocation10 + $0x98] sm:$0xff]
        %v2254 = vld [vmem:[#allocation10 + $0xa0] sm:$0xff]
        %v2255 = vld [vmem:[#allocation10 + $0xa8] sm:$0xff]
        %v2256 = vld [vmem:[#allocation10 + $0xb0] sm:$0xff]
        %v2257 = vld [vmem:[#allocation10 + $0xb8] sm:$0xff]
        %v2258 = vld [vmem:[#allocation10 + $0xc0] sm:$0xff]
        %v2259 = vld [vmem:[#allocation10 + $0xc8] sm:$0xff]
        %v2260 = vld [vmem:[#allocation10 + $0xd0] sm:$0xff]
        %v2261 = vld [vmem:[#allocation10 + $0xd8] sm:$0xff]
        %v2262 = vld [vmem:[#allocation10 + $0xe0] sm:$0xff]
        %v2263 = vld [vmem:[#allocation10 + $0xe8] sm:$0xff]
        %v2264 = vld [vmem:[#allocation10 + $0xf0] sm:$0xff]
        %v2265 = vld [vmem:[#allocation10 + $0xf8] sm:$0xff]
        %v2266 = vld [vmem:[#allocation10 + $0x100] sm:$0xff]
        %v2267 = vld [vmem:[#allocation10 + $0x108] sm:$0xff]
        %v2268 = vld [vmem:[#allocation10 + $0x110] sm:$0xff]
        %v2269 = vld [vmem:[#allocation10 + $0x118] sm:$0xff]
        %v2270 = vld [vmem:[#allocation10 + $0x120] sm:$0xff]
        %v2271 = vld [vmem:[#allocation10 + $0x128] sm:$0xff]
        %v2272 = vld [vmem:[#allocation10 + $0x130] sm:$0xff]
        %v2273 = vld [vmem:[#allocation10 + $0x138] sm:$0xff]
        %v2274 = vld [vmem:[#allocation10 + $0x140] sm:$0xff]
        %v2275 = vld [vmem:[#allocation10 + $0x148] sm:$0xff]
        %v2276 = vld [vmem:[#allocation10 + $0x150] sm:$0xff]
        %v2277 = vld [vmem:[#allocation10 + $0x158] sm:$0xff]
        %v2278 = vld [vmem:[#allocation10 + $0x160] sm:$0xff]
        %v2279 = vld [vmem:[#allocation10 + $0x168] sm:$0xff]
        %v2280 = vld [vmem:[#allocation10 + $0x170] sm:$0xff]
        %v2281 = vld [vmem:[#allocation10 + $0x178] sm:$0xff]
        %v2282 = vld [vmem:[#allocation10 + $0x180] sm:$0xff]
        %v2283 = vld [vmem:[#allocation10 + $0x188] sm:$0xff]
        %v2284 = vld [vmem:[#allocation10 + $0x190] sm:$0xff]
        %v2285 = vld [vmem:[#allocation10 + $0x198] sm:$0xff]
        %v2286 = vld [vmem:[#allocation10 + $0x1a0] sm:$0xff]
        %v2287 = vld [vmem:[#allocation10 + $0x1a8] sm:$0xff]
        %v2288 = vld [vmem:[#allocation10 + $0x1b0] sm:$0xff]
        %v2289 = vld [vmem:[#allocation10 + $0x1b8] sm:$0xff]
        %v2290 = vld [vmem:[#allocation10 + $0x1c0] sm:$0xff]
        %v2291 = vld [vmem:[#allocation10 + $0x1c8] sm:$0xff]
        %v2292 = vld [vmem:[#allocation10 + $0x1d0] sm:$0xff]
        %v2293 = vld [vmem:[#allocation10 + $0x1d8] sm:$0xff]
        %v2294 = vld [vmem:[#allocation10 + $0x1e0] sm:$0xff]
        %v2295 = vld [vmem:[#allocation10 + $0x1e8] sm:$0xff]
        %v2296 = vld [vmem:[#allocation10 + $0x1f0] sm:$0xff]
        %v2297 = vld [vmem:[#allocation10 + $0x1f8] sm:$0xff]
        %v2298 = vld [vmem:[#allocation10 + $0x200] sm:$0xff]
        %v2299 = vld [vmem:[#allocation10 + $0x208] sm:$0xff]
        %v2300 = vld [vmem:[#allocation10 + $0x210] sm:$0xff]
        %v2301 = vld [vmem:[#allocation10 + $0x218] sm:$0xff]
        %v2302 = vld [vmem:[#allocation10 + $0x220] sm:$0xff]
        %v2303 = vld [vmem:[#allocation10 + $0x228] sm:$0xff]
        %v2304 = vld [vmem:[#allocation10 + $0x230] sm:$0xff]
        %v2305 = vld [vmem:[#allocation10 + $0x238] sm:$0xff]
        %v2306 = vld [vmem:[#allocation10 + $0x240] sm:$0xff]
        %v2307 = vld [vmem:[#allocation10 + $0x248] sm:$0xff]
        %v2308 = vld [vmem:[#allocation10 + $0x250] sm:$0xff]
        %v2309 = vld [vmem:[#allocation10 + $0x258] sm:$0xff]
        %v2310 = vld [vmem:[#allocation10 + $0x260] sm:$0xff]
        %v2311 = vld [vmem:[#allocation10 + $0x268] sm:$0xff]
        %v2312 = vld [vmem:[#allocation10 + $0x270] sm:$0xff]
        %v2313 = vld [vmem:[#allocation10 + $0x278] sm:$0xff]
        %v2314 = vld [vmem:[#allocation10 + $0x280] sm:$0xff]
        %v2315 = vld [vmem:[#allocation10 + $0x288] sm:$0xff]
        %v2316 = vld [vmem:[#allocation10 + $0x290] sm:$0xff]
        %v2317 = vld [vmem:[#allocation10 + $0x298] sm:$0xff]
        %v2318 = vld [vmem:[#allocation10 + $0x2a0] sm:$0xff]
        %v2319 = vld [vmem:[#allocation10 + $0x2a8] sm:$0xff]
        %v2320 = vld [vmem:[#allocation10 + $0x2b0] sm:$0xff]
        %v2321 = vld [vmem:[#allocation10 + $0x2b8] sm:$0xff]
        %v2322 = vld [vmem:[#allocation10 + $0x2c0] sm:$0xff]
        %v2323 = vld [vmem:[#allocation10 + $0x2c8] sm:$0xff]
        %v2324 = vld [vmem:[#allocation10 + $0x2d0] sm:$0xff]
        %v2325 = vld [vmem:[#allocation10 + $0x2d8] sm:$0xff]
        %v2326 = vld [vmem:[#allocation10 + $0x2e0] sm:$0xff]
        %v2327 = vld [vmem:[#allocation10 + $0x2e8] sm:$0xff]
        %v2328 = vld [vmem:[#allocation10 + $0x2f0] sm:$0xff]
        %v2329 = vld [vmem:[#allocation10 + $0x2f8] sm:$0xff]
        %v2330 = vld [vmem:[#allocation10 + $0x300] sm:$0xff]
        %v2331 = vld [vmem:[#allocation10 + $0x308] sm:$0xff]
        %v2332 = vld [vmem:[#allocation10 + $0x310] sm:$0xff]
        %v2333 = vld [vmem:[#allocation10 + $0x318] sm:$0xff]
        %v2334 = vld [vmem:[#allocation10 + $0x320] sm:$0xff]
        %v2335 = vld [vmem:[#allocation10 + $0x328] sm:$0xff]
        %v2336 = vld [vmem:[#allocation10 + $0x330] sm:$0xff]
        %v2337 = vld [vmem:[#allocation10 + $0x338] sm:$0xff]
        %v2338 = vld [vmem:[#allocation10 + $0x340] sm:$0xff]
        %v2339 = vld [vmem:[#allocation10 + $0x348] sm:$0xff]
        %v2340 = vld [vmem:[#allocation10 + $0x350] sm:$0xff]
        %v2341 = vld [vmem:[#allocation10 + $0x358] sm:$0xff]
        %v2342 = vld [vmem:[#allocation10 + $0x360] sm:$0xff]
        %v2343 = vld [vmem:[#allocation10 + $0x368] sm:$0xff]
        %v2344 = vld [vmem:[#allocation10 + $0x370] sm:$0xff]
        %v2345 = vld [vmem:[#allocation10 + $0x378] sm:$0xff]
        %v2346 = vld [vmem:[#allocation3] sm:$0xfe]
        %v2347 = vld [vmem:[#allocation3 + $0x8] sm:$0xfe]
        %v2348 = vld [vmem:[#allocation3 + $0x10] sm:$0x7f]
        %v2349 = vld [vmem:[#allocation3 + $0x18] sm:$0x7f]
        %s2350 = scalar_lea.vmem [#allocation10], 896
        %v2351 = vld [vmem:[%s2350] sm:$0xff]
        %v2352 = vld [vmem:[%s2350 + $0x8] sm:$0xff]
        %v2353 = vld [vmem:[%s2350 + $0x10] sm:$0xff]
        %v2354 = vld [vmem:[%s2350 + $0x18] sm:$0xff]
        %v2355 = vld [vmem:[%s2350 + $0x20] sm:$0xff]
        %v2356 = vld [vmem:[%s2350 + $0x28] sm:$0xff]
        %v2357 = vld [vmem:[%s2350 + $0x30] sm:$0xff]
        %v2358 = vld [vmem:[%s2350 + $0x38] sm:$0xff]
        %v2359 = vld [vmem:[%s2350 + $0x40] sm:$0xff]
        %v2360 = vld [vmem:[%s2350 + $0x48] sm:$0xff]
        %v2361 = vld [vmem:[%s2350 + $0x50] sm:$0xff]
        %v2362 = vld [vmem:[%s2350 + $0x58] sm:$0xff]
        %v2363 = vld [vmem:[%s2350 + $0x60] sm:$0xff]
        %v2364 = vld [vmem:[%s2350 + $0x68] sm:$0xff]
        %v2365 = vld [vmem:[%s2350 + $0x70] sm:$0xff]
        %v2366 = vld [vmem:[%s2350 + $0x78] sm:$0xff]
        %v2367 = vld [vmem:[%s2350 + $0x80] sm:$0xff]
        %v2368 = vld [vmem:[%s2350 + $0x88] sm:$0xff]
        %v2369 = vld [vmem:[%s2350 + $0x90] sm:$0xff]
        %v2370 = vld [vmem:[%s2350 + $0x98] sm:$0xff]
        %v2371 = vld [vmem:[%s2350 + $0xa0] sm:$0xff]
        %v2372 = vld [vmem:[%s2350 + $0xa8] sm:$0xff]
        %v2373 = vld [vmem:[%s2350 + $0xb0] sm:$0xff]
        %v2374 = vld [vmem:[%s2350 + $0xb8] sm:$0xff]
        %v2375 = vld [vmem:[%s2350 + $0xc0] sm:$0xff]
        %v2376 = vld [vmem:[%s2350 + $0xc8] sm:$0xff]
        %v2377 = vld [vmem:[%s2350 + $0xd0] sm:$0xff]
        %v2378 = vld [vmem:[%s2350 + $0xd8] sm:$0xff]
        %v2379 = vld [vmem:[%s2350 + $0xe0] sm:$0xff]
        %v2380 = vld [vmem:[%s2350 + $0xe8] sm:$0xff]
        %v2381 = vld [vmem:[%s2350 + $0xf0] sm:$0xff]
        %v2382 = vld [vmem:[%s2350 + $0xf8] sm:$0xff]
        %v2383 = vld [vmem:[%s2350 + $0x100] sm:$0xff]
        %v2384 = vld [vmem:[%s2350 + $0x108] sm:$0xff]
        %v2385 = vld [vmem:[%s2350 + $0x110] sm:$0xff]
        %v2386 = vld [vmem:[%s2350 + $0x118] sm:$0xff]
        %v2387 = vld [vmem:[%s2350 + $0x120] sm:$0xff]
        %v2388 = vld [vmem:[%s2350 + $0x128] sm:$0xff]
        %v2389 = vld [vmem:[%s2350 + $0x130] sm:$0xff]
        %v2390 = vld [vmem:[%s2350 + $0x138] sm:$0xff]
        %v2391 = vld [vmem:[%s2350 + $0x140] sm:$0xff]
        %v2392 = vld [vmem:[%s2350 + $0x148] sm:$0xff]
        %v2393 = vld [vmem:[%s2350 + $0x150] sm:$0xff]
        %v2394 = vld [vmem:[%s2350 + $0x158] sm:$0xff]
        %v2395 = vld [vmem:[%s2350 + $0x160] sm:$0xff]
        %v2396 = vld [vmem:[%s2350 + $0x168] sm:$0xff]
        %v2397 = vld [vmem:[%s2350 + $0x170] sm:$0xff]
        %v2398 = vld [vmem:[%s2350 + $0x178] sm:$0xff]
        %v2399 = vld [vmem:[%s2350 + $0x180] sm:$0xff]
        %v2400 = vld [vmem:[%s2350 + $0x188] sm:$0xff]
        %v2401 = vld [vmem:[%s2350 + $0x190] sm:$0xff]
        %v2402 = vld [vmem:[%s2350 + $0x198] sm:$0xff]
        %v2403 = vld [vmem:[%s2350 + $0x1a0] sm:$0xff]
        %v2404 = vld [vmem:[%s2350 + $0x1a8] sm:$0xff]
        %v2405 = vld [vmem:[%s2350 + $0x1b0] sm:$0xff]
        %v2406 = vld [vmem:[%s2350 + $0x1b8] sm:$0xff]
        %v2407 = vld [vmem:[%s2350 + $0x1c0] sm:$0xff]
        %v2408 = vld [vmem:[%s2350 + $0x1c8] sm:$0xff]
        %v2409 = vld [vmem:[%s2350 + $0x1d0] sm:$0xff]
        %v2410 = vld [vmem:[%s2350 + $0x1d8] sm:$0xff]
        %v2411 = vld [vmem:[%s2350 + $0x1e0] sm:$0xff]
        %v2412 = vld [vmem:[%s2350 + $0x1e8] sm:$0xff]
        %v2413 = vld [vmem:[%s2350 + $0x1f0] sm:$0xff]
        %v2414 = vld [vmem:[%s2350 + $0x1f8] sm:$0xff]
        %v2415 = vld [vmem:[%s2350 + $0x200] sm:$0xff]
        %v2416 = vld [vmem:[%s2350 + $0x208] sm:$0xff]
        %v2417 = vld [vmem:[%s2350 + $0x210] sm:$0xff]
        %v2418 = vld [vmem:[%s2350 + $0x218] sm:$0xff]
        %v2419 = vld [vmem:[%s2350 + $0x220] sm:$0xff]
        %v2420 = vld [vmem:[%s2350 + $0x228] sm:$0xff]
        %v2421 = vld [vmem:[%s2350 + $0x230] sm:$0xff]
        %v2422 = vld [vmem:[%s2350 + $0x238] sm:$0xff]
        %v2423 = vld [vmem:[%s2350 + $0x240] sm:$0xff]
        %v2424 = vld [vmem:[%s2350 + $0x248] sm:$0xff]
        %v2425 = vld [vmem:[%s2350 + $0x250] sm:$0xff]
        %v2426 = vld [vmem:[%s2350 + $0x258] sm:$0xff]
        %v2427 = vld [vmem:[%s2350 + $0x260] sm:$0xff]
        %v2428 = vld [vmem:[%s2350 + $0x268] sm:$0xff]
        %v2429 = vld [vmem:[%s2350 + $0x270] sm:$0xff]
        %v2430 = vld [vmem:[%s2350 + $0x278] sm:$0xff]
        %v2431 = vld [vmem:[%s2350 + $0x280] sm:$0xff]
        %v2432 = vld [vmem:[%s2350 + $0x288] sm:$0xff]
        %v2433 = vld [vmem:[%s2350 + $0x290] sm:$0xff]
        %v2434 = vld [vmem:[%s2350 + $0x298] sm:$0xff]
        %v2435 = vld [vmem:[%s2350 + $0x2a0] sm:$0xff]
        %v2436 = vld [vmem:[%s2350 + $0x2a8] sm:$0xff]
        %v2437 = vld [vmem:[%s2350 + $0x2b0] sm:$0xff]
        %v2438 = vld [vmem:[%s2350 + $0x2b8] sm:$0xff]
        %v2439 = vld [vmem:[%s2350 + $0x2c0] sm:$0xff]
        %v2440 = vld [vmem:[%s2350 + $0x2c8] sm:$0xff]
        %v2441 = vld [vmem:[%s2350 + $0x2d0] sm:$0xff]
        %v2442 = vld [vmem:[%s2350 + $0x2d8] sm:$0xff]
        %v2443 = vld [vmem:[%s2350 + $0x2e0] sm:$0xff]
        %v2444 = vld [vmem:[%s2350 + $0x2e8] sm:$0xff]
        %v2445 = vld [vmem:[%s2350 + $0x2f0] sm:$0xff]
        %v2446 = vld [vmem:[%s2350 + $0x2f8] sm:$0xff]
        %v2447 = vld [vmem:[%s2350 + $0x300] sm:$0xff]
        %v2448 = vld [vmem:[%s2350 + $0x308] sm:$0xff]
        %v2449 = vld [vmem:[%s2350 + $0x310] sm:$0xff]
        %v2450 = vld [vmem:[%s2350 + $0x318] sm:$0xff]
        %v2451 = vld [vmem:[%s2350 + $0x320] sm:$0xff]
        %v2452 = vld [vmem:[%s2350 + $0x328] sm:$0xff]
        %v2453 = vld [vmem:[%s2350 + $0x330] sm:$0xff]
        %v2454 = vld [vmem:[%s2350 + $0x338] sm:$0xff]
        %v2455 = vld [vmem:[%s2350 + $0x340] sm:$0xff]
        %v2456 = vld [vmem:[%s2350 + $0x348] sm:$0xff]
        %v2457 = vld [vmem:[%s2350 + $0x350] sm:$0xff]
        %v2458 = vld [vmem:[%s2350 + $0x358] sm:$0xff]
        %v2459 = vld [vmem:[%s2350 + $0x360] sm:$0xff]
        %v2460 = vld [vmem:[%s2350 + $0x368] sm:$0xff]
        %v2461 = vld [vmem:[%s2350 + $0x370] sm:$0xff]
        %v2462 = vld [vmem:[%s2350 + $0x378] sm:$0xff]
        %vm2467 = vcmask 1046528
        %v2468 = vrot.slane %v2346, 1
        %v2469 = vrot.slane %v2348, 1
        %v2470 = vsel %vm2467, %v2468, %v2469
        %v2471 = vrot.slane %v2347, 1
        %v2472 = vrot.slane %v2349, 1
        %v2473 = vsel %vm2467, %v2471, %v2472
        %v2476 = vsel %vm2205, %v2473, 0
        %v2478 = vsel %vm2205, %v2472, 0
        %2480 = vmatprep.subr.mxu0 %v2352
        %2481 = vmatpush1.msra.mxu0 %v2351
        %2482 = vmatprep.subr.mxu0 %v2356
        %2483 = vmatpush1.msra.mxu0 %v2355
        %2484 = vmatprep.subr.mxu0 %v2360
        %2485 = vmatpush1.msra.mxu0 %v2359
        %2486 = vmatprep.subr.mxu0 %v2364
        %2487 = vmatpush1.msra.mxu0 %v2363
        %2488 = vmatprep.subr.mxu0 %v2368
        %2489 = vmatpush1.msra.mxu0 %v2367
        %2490 = vmatprep.subr.mxu0 %v2372
        %2491 = vmatpush1.msra.mxu0 %v2371
        %2492 = vmatprep.subr.mxu0 %v2376
        %2493 = vmatpush1.msra.mxu0 %v2375
        %2494 = vmatprep.subr.mxu0 %v2380
        %2495 = vmatpush1.msra.mxu0 %v2379
        %2496 = vmatprep.subr.mxu0 %v2384
        %2497 = vmatpush1.msra.mxu0 %v2383
        %2498 = vmatprep.subr.mxu0 %v2388
        %2499 = vmatpush1.msra.mxu0 %v2387
        %2500 = vmatprep.subr.mxu0 %v2392
        %2501 = vmatpush1.msra.mxu0 %v2391
        %2502 = vmatprep.subr.mxu0 %v2396
        %2503 = vmatpush1.msra.mxu0 %v2395
        %2504 = vmatprep.subr.mxu0 %v2400
        %2505 = vmatpush1.msra.mxu0 %v2399
        %2506 = vmatprep.subr.mxu0 %v2404
        %2507 = vmatpush1.msra.mxu0 %v2403
        %2508 = vmatprep.subr.mxu0 %v2408
        %2509 = vmatpush1.msra.mxu0 %v2407
        %2510 = vmatprep.subr.mxu0 %v2412
        %2511 = vmatpush1.msra.mxu0 %v2411
        %2512 = vmatprep.subr.mxu0 %v2416
        %2513 = vmatpush1.msra.mxu0 %v2415
        %2514 = vmatprep.subr.mxu0 %v2420
        %2515 = vmatpush1.msra.mxu0 %v2419
        %2516 = vmatprep.subr.mxu0 %v2424
        %2517 = vmatpush1.msra.mxu0 %v2423
        %2518 = vmatprep.subr.mxu0 %v2428
        %2519 = vmatpush1.msra.mxu0 %v2427
        %2520 = vmatprep.subr.mxu0 %v2432
        %2521 = vmatpush1.msra.mxu0 %v2431
        %2522 = vmatprep.subr.mxu0 %v2436
        %2523 = vmatpush1.msra.mxu0 %v2435
        %2524 = vmatprep.subr.mxu0 %v2440
        %2525 = vmatpush1.msra.mxu0 %v2439
        %2526 = vmatprep.subr.mxu0 %v2444
        %2527 = vmatpush1.msra.mxu0 %v2443
        %2528 = vmatprep.subr.mxu0 %v2448
        %2529 = vmatpush1.msra.mxu0 %v2447
        %2530 = vmatprep.subr.mxu0 %v2452
        %2531 = vmatpush1.msra.mxu0 %v2451
        %2532 = vmatprep.subr.mxu0 %v2456
        %2533 = vmatpush1.msra.mxu0 %v2455
        %2534 = vmatprep.subr.mxu0 %v2460
        %2535 = vmatpush1.msra.mxu0 %v2459
        %2536 = vmatprep.subr.mxu0 0.0
        %2537 = vmatpush1.msra.mxu0 0.0
        %2538 = vmatprep.subr.mxu0 0.0
        %2539 = vmatpush1.msra.mxu0 0.0
        %2540 = vmatprep.subr.mxu0 0.0
        %2541 = vmatpush1.msra.mxu0 0.0
        %2542 = vmatprep.subr.mxu0 0.0
        %2543 = vmatpush1.msra.mxu0 0.0
        %2544 = vmatprep.mubr.f32.mxu0 %v2476
        %2545 = vmatmul.mubr.f32.gmra.mrb[0].mxu0 %v2470
        %v2546 = vpop.f32.mrb[0].mxu0
        %v2547 = vadd.f32 0.0, %v2546
        %v2548 = vpop.f32.mrb[0].mxu0
        %v2549 = vadd.f32 0.0, %v2548
        %2550 = vmatprep.mubr.f32.mxu0 %v2478
        %2551 = vmatmul.mubr.f32.gmra.mrb[0].mxu0 %v2469
        %v2552 = vpop.f32.mrb[0].mxu0
        %v2553 = vadd.f32 0.0, %v2552
        %v2554 = vpop.f32.mrb[0].mxu0
        %v2555 = vadd.f32 0.0, %v2554
        %2556 = vdwg.mxu0
        %2557 = vmatprep.subr.mxu0 %v2354
        %2558 = vmatpush1.msra.mxu0 %v2353
        %2559 = vmatprep.subr.mxu0 %v2358
        %2560 = vmatpush1.msra.mxu0 %v2357
        %2561 = vmatprep.subr.mxu0 %v2362
        %2562 = vmatpush1.msra.mxu0 %v2361
        %2563 = vmatprep.subr.mxu0 %v2366
        %2564 = vmatpush1.msra.mxu0 %v2365
        %2565 = vmatprep.subr.mxu0 %v2370
        %2566 = vmatpush1.msra.mxu0 %v2369
        %2567 = vmatprep.subr.mxu0 %v2374
        %2568 = vmatpush1.msra.mxu0 %v2373
        %2569 = vmatprep.subr.mxu0 %v2378
        %2570 = vmatpush1.msra.mxu0 %v2377
        %2571 = vmatprep.subr.mxu0 %v2382
        %2572 = vmatpush1.msra.mxu0 %v2381
        %2573 = vmatprep.subr.mxu0 %v2386
        %2574 = vmatpush1.msra.mxu0 %v2385
        %2575 = vmatprep.subr.mxu0 %v2390
        %2576 = vmatpush1.msra.mxu0 %v2389
        %2577 = vmatprep.subr.mxu0 %v2394
        %2578 = vmatpush1.msra.mxu0 %v2393
        %2579 = vmatprep.subr.mxu0 %v2398
        %2580 = vmatpush1.msra.mxu0 %v2397
        %2581 = vmatprep.subr.mxu0 %v2402
        %2582 = vmatpush1.msra.mxu0 %v2401
        %2583 = vmatprep.subr.mxu0 %v2406
        %2584 = vmatpush1.msra.mxu0 %v2405
        %2585 = vmatprep.subr.mxu0 %v2410
        %2586 = vmatpush1.msra.mxu0 %v2409
        %2587 = vmatprep.subr.mxu0 %v2414
        %2588 = vmatpush1.msra.mxu0 %v2413
        %2589 = vmatprep.subr.mxu0 %v2418
        %2590 = vmatpush1.msra.mxu0 %v2417
        %2591 = vmatprep.subr.mxu0 %v2422
        %2592 = vmatpush1.msra.mxu0 %v2421
        %2593 = vmatprep.subr.mxu0 %v2426
        %2594 = vmatpush1.msra.mxu0 %v2425
        %2595 = vmatprep.subr.mxu0 %v2430
        %2596 = vmatpush1.msra.mxu0 %v2429
        %2597 = vmatprep.subr.mxu0 %v2434
        %2598 = vmatpush1.msra.mxu0 %v2433
        %2599 = vmatprep.subr.mxu0 %v2438
        %2600 = vmatpush1.msra.mxu0 %v2437
        %2601 = vmatprep.subr.mxu0 %v2442
        %2602 = vmatpush1.msra.mxu0 %v2441
        %2603 = vmatprep.subr.mxu0 %v2446
        %2604 = vmatpush1.msra.mxu0 %v2445
        %2605 = vmatprep.subr.mxu0 %v2450
        %2606 = vmatpush1.msra.mxu0 %v2449
        %2607 = vmatprep.subr.mxu0 %v2454
        %2608 = vmatpush1.msra.mxu0 %v2453
        %2609 = vmatprep.subr.mxu0 %v2458
        %2610 = vmatpush1.msra.mxu0 %v2457
        %2611 = vmatprep.subr.mxu0 %v2462
        %2612 = vmatpush1.msra.mxu0 %v2461
        %2613 = vmatprep.subr.mxu0 0.0
        %2614 = vmatpush1.msra.mxu0 0.0
        %2615 = vmatprep.subr.mxu0 0.0
        %2616 = vmatpush1.msra.mxu0 0.0
        %2617 = vmatprep.subr.mxu0 0.0
        %2618 = vmatpush1.msra.mxu0 0.0
        %2619 = vmatprep.subr.mxu0 0.0
        %2620 = vmatpush1.msra.mxu0 0.0
        %2621 = vmatprep.mubr.f32.mxu0 %v2476
        %2622 = vmatmul.mubr.f32.gmra.mrb[0].mxu0 %v2470
        %v2623 = vpop.f32.mrb[0].mxu0
        %v2624 = vadd.f32 0.0, %v2623
        %v2625 = vpop.f32.mrb[0].mxu0
        %v2626 = vadd.f32 0.0, %v2625
        %2627 = vmatprep.mubr.f32.mxu0 %v2478
        %2628 = vmatmul.mubr.f32.gmra.mrb[0].mxu0 %v2469
        %v2629 = vpop.f32.mrb[0].mxu0
        %v2630 = vadd.f32 0.0, %v2629
        %v2631 = vpop.f32.mrb[0].mxu0
        %v2632 = vadd.f32 0.0, %v2631
        %2633 = vdwg.mxu0
        %v2635 = vsel %vm2205, %v2231, 0
        %v2638 = vsel %vm2205, %v2233, 0
        %2640 = vmatprep.subr.mxu0 %v2235
        %2641 = vmatpush1.msra.mxu0 %v2234
        %2642 = vmatprep.subr.mxu0 %v2239
        %2643 = vmatpush1.msra.mxu0 %v2238
        %2644 = vmatprep.subr.mxu0 %v2243
        %2645 = vmatpush1.msra.mxu0 %v2242
        %2646 = vmatprep.subr.mxu0 %v2247
        %2647 = vmatpush1.msra.mxu0 %v2246
        %2648 = vmatprep.subr.mxu0 %v2251
        %2649 = vmatpush1.msra.mxu0 %v2250
        %2650 = vmatprep.subr.mxu0 %v2255
        %2651 = vmatpush1.msra.mxu0 %v2254
        %2652 = vmatprep.subr.mxu0 %v2259
        %2653 = vmatpush1.msra.mxu0 %v2258
        %2654 = vmatprep.subr.mxu0 %v2263
        %2655 = vmatpush1.msra.mxu0 %v2262
        %2656 = vmatprep.subr.mxu0 %v2267
        %2657 = vmatpush1.msra.mxu0 %v2266
        %2658 = vmatprep.subr.mxu0 %v2271
        %2659 = vmatpush1.msra.mxu0 %v2270
        %2660 = vmatprep.subr.mxu0 %v2275
        %2661 = vmatpush1.msra.mxu0 %v2274
        %2662 = vmatprep.subr.mxu0 %v2279
        %2663 = vmatpush1.msra.mxu0 %v2278
        %2664 = vmatprep.subr.mxu0 %v2283
        %2665 = vmatpush1.msra.mxu0 %v2282
        %2666 = vmatprep.subr.mxu0 %v2287
        %2667 = vmatpush1.msra.mxu0 %v2286
        %2668 = vmatprep.subr.mxu0 %v2291
        %2669 = vmatpush1.msra.mxu0 %v2290
        %2670 = vmatprep.subr.mxu0 %v2295
        %2671 = vmatpush1.msra.mxu0 %v2294
        %2672 = vmatprep.subr.mxu0 %v2299
        %2673 = vmatpush1.msra.mxu0 %v2298
        %2674 = vmatprep.subr.mxu0 %v2303
        %2675 = vmatpush1.msra.mxu0 %v2302
        %2676 = vmatprep.subr.mxu0 %v2307
        %2677 = vmatpush1.msra.mxu0 %v2306
        %2678 = vmatprep.subr.mxu0 %v2311
        %2679 = vmatpush1.msra.mxu0 %v2310
        %2680 = vmatprep.subr.mxu0 %v2315
        %2681 = vmatpush1.msra.mxu0 %v2314
        %2682 = vmatprep.subr.mxu0 %v2319
        %2683 = vmatpush1.msra.mxu0 %v2318
        %2684 = vmatprep.subr.mxu0 %v2323
        %2685 = vmatpush1.msra.mxu0 %v2322
        %2686 = vmatprep.subr.mxu0 %v2327
        %2687 = vmatpush1.msra.mxu0 %v2326
        %2688 = vmatprep.subr.mxu0 %v2331
        %2689 = vmatpush1.msra.mxu0 %v2330
        %2690 = vmatprep.subr.mxu0 %v2335
        %2691 = vmatpush1.msra.mxu0 %v2334
        %2692 = vmatprep.subr.mxu0 %v2339
        %2693 = vmatpush1.msra.mxu0 %v2338
        %2694 = vmatprep.subr.mxu0 %v2343
        %2695 = vmatpush1.msra.mxu0 %v2342
        %2696 = vmatprep.subr.mxu0 0.0
        %2697 = vmatpush1.msra.mxu0 0.0
        %2698 = vmatprep.subr.mxu0 0.0
        %2699 = vmatpush1.msra.mxu0 0.0
        %2700 = vmatprep.subr.mxu0 0.0
        %2701 = vmatpush1.msra.mxu0 0.0
        %2702 = vmatprep.subr.mxu0 0.0
        %2703 = vmatpush1.msra.mxu0 0.0
        %2704 = vmatprep.mubr.f32.mxu0 %v2635
        %2705 = vmatmul.mubr.f32.gmra.mrb[0].mxu0 %v2230
        %v2706 = vpop.f32.mrb[0].mxu0
        %v2707 = vadd.f32 %v2547, %v2706
        %v2708 = vpop.f32.mrb[0].mxu0
        %v2709 = vadd.f32 %v2549, %v2708
        %2710 = vmatprep.mubr.f32.mxu0 %v2638
        %2711 = vmatmul.mubr.f32.gmra.mrb[0].mxu0 %v2232
        %v2712 = vpop.f32.mrb[0].mxu0
        %v2713 = vadd.f32 %v2553, %v2712
        %v2714 = vpop.f32.mrb[0].mxu0
        %v2715 = vadd.f32 %v2555, %v2714
        %2716 = vdwg.mxu0
        %2717 = vmatprep.subr.mxu0 %v2237
        %2718 = vmatpush1.msra.mxu0 %v2236
        %2719 = vmatprep.subr.mxu0 %v2241
        %2720 = vmatpush1.msra.mxu0 %v2240
        %2721 = vmatprep.subr.mxu0 %v2245
        %2722 = vmatpush1.msra.mxu0 %v2244
        %2723 = vmatprep.subr.mxu0 %v2249
        %2724 = vmatpush1.msra.mxu0 %v2248
        %2725 = vmatprep.subr.mxu0 %v2253
        %2726 = vmatpush1.msra.mxu0 %v2252
        %2727 = vmatprep.subr.mxu0 %v2257
        %2728 = vmatpush1.msra.mxu0 %v2256
        %2729 = vmatprep.subr.mxu0 %v2261
        %2730 = vmatpush1.msra.mxu0 %v2260
        %2731 = vmatprep.subr.mxu0 %v2265
        %2732 = vmatpush1.msra.mxu0 %v2264
        %2733 = vmatprep.subr.mxu0 %v2269
        %2734 = vmatpush1.msra.mxu0 %v2268
        %2735 = vmatprep.subr.mxu0 %v2273
        %2736 = vmatpush1.msra.mxu0 %v2272
        %2737 = vmatprep.subr.mxu0 %v2277
        %2738 = vmatpush1.msra.mxu0 %v2276
        %2739 = vmatprep.subr.mxu0 %v2281
        %2740 = vmatpush1.msra.mxu0 %v2280
        %2741 = vmatprep.subr.mxu0 %v2285
        %2742 = vmatpush1.msra.mxu0 %v2284
        %2743 = vmatprep.subr.mxu0 %v2289
        %2744 = vmatpush1.msra.mxu0 %v2288
        %2745 = vmatprep.subr.mxu0 %v2293
        %2746 = vmatpush1.msra.mxu0 %v2292
        %2747 = vmatprep.subr.mxu0 %v2297
        %2748 = vmatpush1.msra.mxu0 %v2296
        %2749 = vmatprep.subr.mxu0 %v2301
        %2750 = vmatpush1.msra.mxu0 %v2300
        %2751 = vmatprep.subr.mxu0 %v2305
        %2752 = vmatpush1.msra.mxu0 %v2304
        %2753 = vmatprep.subr.mxu0 %v2309
        %2754 = vmatpush1.msra.mxu0 %v2308
        %2755 = vmatprep.subr.mxu0 %v2313
        %2756 = vmatpush1.msra.mxu0 %v2312
        %2757 = vmatprep.subr.mxu0 %v2317
        %2758 = vmatpush1.msra.mxu0 %v2316
        %2759 = vmatprep.subr.mxu0 %v2321
        %2760 = vmatpush1.msra.mxu0 %v2320
        %2761 = vmatprep.subr.mxu0 %v2325
        %2762 = vmatpush1.msra.mxu0 %v2324
        %2763 = vmatprep.subr.mxu0 %v2329
        %2764 = vmatpush1.msra.mxu0 %v2328
        %2765 = vmatprep.subr.mxu0 %v2333
        %2766 = vmatpush1.msra.mxu0 %v2332
        %2767 = vmatprep.subr.mxu0 %v2337
        %2768 = vmatpush1.msra.mxu0 %v2336
        %2769 = vmatprep.subr.mxu0 %v2341
        %2770 = vmatpush1.msra.mxu0 %v2340
        %2771 = vmatprep.subr.mxu0 %v2345
        %2772 = vmatpush1.msra.mxu0 %v2344
        %2773 = vmatprep.subr.mxu0 0.0
        %2774 = vmatpush1.msra.mxu0 0.0
        %2775 = vmatprep.subr.mxu0 0.0
        %2776 = vmatpush1.msra.mxu0 0.0
        %2777 = vmatprep.subr.mxu0 0.0
        %2778 = vmatpush1.msra.mxu0 0.0
        %2779 = vmatprep.subr.mxu0 0.0
        %2780 = vmatpush1.msra.mxu0 0.0
        %2781 = vmatprep.mubr.f32.mxu0 %v2635
        %2782 = vmatmul.mubr.f32.gmra.mrb[0].mxu0 %v2230
        %v2783 = vpop.f32.mrb[0].mxu0
        %v2784 = vadd.f32 %v2624, %v2783
        %v2785 = vpop.f32.mrb[0].mxu0
        %v2786 = vadd.f32 %v2626, %v2785
        %2787 = vmatprep.mubr.f32.mxu0 %v2638
        %2788 = vmatmul.mubr.f32.gmra.mrb[0].mxu0 %v2232
        %v2789 = vpop.f32.mrb[0].mxu0
        %v2790 = vadd.f32 %v2630, %v2789
        %v2791 = vpop.f32.mrb[0].mxu0
        %v2792 = vadd.f32 %v2632, %v2791
        %2793 = vdwg.mxu0
        %v2794 = vld [vmem:[#allocation3] sm:$0xfc]
        %v2795 = vld [vmem:[#allocation3 + $0x8] sm:$0xfc]
        %v2796 = vld [vmem:[#allocation3 + $0x10] sm:$0xff]
        %v2797 = vld [vmem:[#allocation3 + $0x18] sm:$0xff]
        %s2798 = scalar_lea.vmem [#allocation10], 1792
        %v2799 = vld [vmem:[%s2798] sm:$0xff]
        %v2800 = vld [vmem:[%s2798 + $0x8] sm:$0xff]
        %v2801 = vld [vmem:[%s2798 + $0x10] sm:$0xff]
        %v2802 = vld [vmem:[%s2798 + $0x18] sm:$0xff]
        %v2803 = vld [vmem:[%s2798 + $0x20] sm:$0xff]
        %v2804 = vld [vmem:[%s2798 + $0x28] sm:$0xff]
        %v2805 = vld [vmem:[%s2798 + $0x30] sm:$0xff]
        %v2806 = vld [vmem:[%s2798 + $0x38] sm:$0xff]
        %v2807 = vld [vmem:[%s2798 + $0x40] sm:$0xff]
        %v2808 = vld [vmem:[%s2798 + $0x48] sm:$0xff]
        %v2809 = vld [vmem:[%s2798 + $0x50] sm:$0xff]
        %v2810 = vld [vmem:[%s2798 + $0x58] sm:$0xff]
        %v2811 = vld [vmem:[%s2798 + $0x60] sm:$0xff]
        %v2812 = vld [vmem:[%s2798 + $0x68] sm:$0xff]
        %v2813 = vld [vmem:[%s2798 + $0x70] sm:$0xff]
        %v2814 = vld [vmem:[%s2798 + $0x78] sm:$0xff]
        %v2815 = vld [vmem:[%s2798 + $0x80] sm:$0xff]
        %v2816 = vld [vmem:[%s2798 + $0x88] sm:$0xff]
        %v2817 = vld [vmem:[%s2798 + $0x90] sm:$0xff]
        %v2818 = vld [vmem:[%s2798 + $0x98] sm:$0xff]
        %v2819 = vld [vmem:[%s2798 + $0xa0] sm:$0xff]
        %v2820 = vld [vmem:[%s2798 + $0xa8] sm:$0xff]
        %v2821 = vld [vmem:[%s2798 + $0xb0] sm:$0xff]
        %v2822 = vld [vmem:[%s2798 + $0xb8] sm:$0xff]
        %v2823 = vld [vmem:[%s2798 + $0xc0] sm:$0xff]
        %v2824 = vld [vmem:[%s2798 + $0xc8] sm:$0xff]
        %v2825 = vld [vmem:[%s2798 + $0xd0] sm:$0xff]
        %v2826 = vld [vmem:[%s2798 + $0xd8] sm:$0xff]
        %v2827 = vld [vmem:[%s2798 + $0xe0] sm:$0xff]
        %v2828 = vld [vmem:[%s2798 + $0xe8] sm:$0xff]
        %v2829 = vld [vmem:[%s2798 + $0xf0] sm:$0xff]
        %v2830 = vld [vmem:[%s2798 + $0xf8] sm:$0xff]
        %v2831 = vld [vmem:[%s2798 + $0x100] sm:$0xff]
        %v2832 = vld [vmem:[%s2798 + $0x108] sm:$0xff]
        %v2833 = vld [vmem:[%s2798 + $0x110] sm:$0xff]
        %v2834 = vld [vmem:[%s2798 + $0x118] sm:$0xff]
        %v2835 = vld [vmem:[%s2798 + $0x120] sm:$0xff]
        %v2836 = vld [vmem:[%s2798 + $0x128] sm:$0xff]
        %v2837 = vld [vmem:[%s2798 + $0x130] sm:$0xff]
        %v2838 = vld [vmem:[%s2798 + $0x138] sm:$0xff]
        %v2839 = vld [vmem:[%s2798 + $0x140] sm:$0xff]
        %v2840 = vld [vmem:[%s2798 + $0x148] sm:$0xff]
        %v2841 = vld [vmem:[%s2798 + $0x150] sm:$0xff]
        %v2842 = vld [vmem:[%s2798 + $0x158] sm:$0xff]
        %v2843 = vld [vmem:[%s2798 + $0x160] sm:$0xff]
        %v2844 = vld [vmem:[%s2798 + $0x168] sm:$0xff]
        %v2845 = vld [vmem:[%s2798 + $0x170] sm:$0xff]
        %v2846 = vld [vmem:[%s2798 + $0x178] sm:$0xff]
        %v2847 = vld [vmem:[%s2798 + $0x180] sm:$0xff]
        %v2848 = vld [vmem:[%s2798 + $0x188] sm:$0xff]
        %v2849 = vld [vmem:[%s2798 + $0x190] sm:$0xff]
        %v2850 = vld [vmem:[%s2798 + $0x198] sm:$0xff]
        %v2851 = vld [vmem:[%s2798 + $0x1a0] sm:$0xff]
        %v2852 = vld [vmem:[%s2798 + $0x1a8] sm:$0xff]
        %v2853 = vld [vmem:[%s2798 + $0x1b0] sm:$0xff]
        %v2854 = vld [vmem:[%s2798 + $0x1b8] sm:$0xff]
        %v2855 = vld [vmem:[%s2798 + $0x1c0] sm:$0xff]
        %v2856 = vld [vmem:[%s2798 + $0x1c8] sm:$0xff]
        %v2857 = vld [vmem:[%s2798 + $0x1d0] sm:$0xff]
        %v2858 = vld [vmem:[%s2798 + $0x1d8] sm:$0xff]
        %v2859 = vld [vmem:[%s2798 + $0x1e0] sm:$0xff]
        %v2860 = vld [vmem:[%s2798 + $0x1e8] sm:$0xff]
        %v2861 = vld [vmem:[%s2798 + $0x1f0] sm:$0xff]
        %v2862 = vld [vmem:[%s2798 + $0x1f8] sm:$0xff]
        %v2863 = vld [vmem:[%s2798 + $0x200] sm:$0xff]
        %v2864 = vld [vmem:[%s2798 + $0x208] sm:$0xff]
        %v2865 = vld [vmem:[%s2798 + $0x210] sm:$0xff]
        %v2866 = vld [vmem:[%s2798 + $0x218] sm:$0xff]
        %v2867 = vld [vmem:[%s2798 + $0x220] sm:$0xff]
        %v2868 = vld [vmem:[%s2798 + $0x228] sm:$0xff]
        %v2869 = vld [vmem:[%s2798 + $0x230] sm:$0xff]
        %v2870 = vld [vmem:[%s2798 + $0x238] sm:$0xff]
        %v2871 = vld [vmem:[%s2798 + $0x240] sm:$0xff]
        %v2872 = vld [vmem:[%s2798 + $0x248] sm:$0xff]
        %v2873 = vld [vmem:[%s2798 + $0x250] sm:$0xff]
        %v2874 = vld [vmem:[%s2798 + $0x258] sm:$0xff]
        %v2875 = vld [vmem:[%s2798 + $0x260] sm:$0xff]
        %v2876 = vld [vmem:[%s2798 + $0x268] sm:$0xff]
        %v2877 = vld [vmem:[%s2798 + $0x270] sm:$0xff]
        %v2878 = vld [vmem:[%s2798 + $0x278] sm:$0xff]
        %v2879 = vld [vmem:[%s2798 + $0x280] sm:$0xff]
        %v2880 = vld [vmem:[%s2798 + $0x288] sm:$0xff]
        %v2881 = vld [vmem:[%s2798 + $0x290] sm:$0xff]
        %v2882 = vld [vmem:[%s2798 + $0x298] sm:$0xff]
        %v2883 = vld [vmem:[%s2798 + $0x2a0] sm:$0xff]
        %v2884 = vld [vmem:[%s2798 + $0x2a8] sm:$0xff]
        %v2885 = vld [vmem:[%s2798 + $0x2b0] sm:$0xff]
        %v2886 = vld [vmem:[%s2798 + $0x2b8] sm:$0xff]
        %v2887 = vld [vmem:[%s2798 + $0x2c0] sm:$0xff]
        %v2888 = vld [vmem:[%s2798 + $0x2c8] sm:$0xff]
        %v2889 = vld [vmem:[%s2798 + $0x2d0] sm:$0xff]
        %v2890 = vld [vmem:[%s2798 + $0x2d8] sm:$0xff]
        %v2891 = vld [vmem:[%s2798 + $0x2e0] sm:$0xff]
        %v2892 = vld [vmem:[%s2798 + $0x2e8] sm:$0xff]
        %v2893 = vld [vmem:[%s2798 + $0x2f0] sm:$0xff]
        %v2894 = vld [vmem:[%s2798 + $0x2f8] sm:$0xff]
        %v2895 = vld [vmem:[%s2798 + $0x300] sm:$0xff]
        %v2896 = vld [vmem:[%s2798 + $0x308] sm:$0xff]
        %v2897 = vld [vmem:[%s2798 + $0x310] sm:$0xff]
        %v2898 = vld [vmem:[%s2798 + $0x318] sm:$0xff]
        %v2899 = vld [vmem:[%s2798 + $0x320] sm:$0xff]
        %v2900 = vld [vmem:[%s2798 + $0x328] sm:$0xff]
        %v2901 = vld [vmem:[%s2798 + $0x330] sm:$0xff]
        %v2902 = vld [vmem:[%s2798 + $0x338] sm:$0xff]
        %v2903 = vld [vmem:[%s2798 + $0x340] sm:$0xff]
        %v2904 = vld [vmem:[%s2798 + $0x348] sm:$0xff]
        %v2905 = vld [vmem:[%s2798 + $0x350] sm:$0xff]
        %v2906 = vld [vmem:[%s2798 + $0x358] sm:$0xff]
        %v2907 = vld [vmem:[%s2798 + $0x360] sm:$0xff]
        %v2908 = vld [vmem:[%s2798 + $0x368] sm:$0xff]
        %v2909 = vld [vmem:[%s2798 + $0x370] sm:$0xff]
        %v2910 = vld [vmem:[%s2798 + $0x378] sm:$0xff]
        %vm2915 = vcmask 1045504
        %v2916 = vrot.slane %v2794, 2
        %v2917 = vrot.slane %v2796, 2
        %v2918 = vsel %vm2915, %v2916, %v2917
        %v2919 = vrot.slane %v2795, 2
        %v2920 = vrot.slane %v2797, 2
        %v2921 = vsel %vm2915, %v2919, %v2920
        %v2924 = vsel %vm2205, %v2921, 0
        %v2926 = vsel %vm2205, %v2920, 0
        %2928 = vmatprep.subr.mxu0 %v2800
        %2929 = vmatpush1.msra.mxu0 %v2799
        %2930 = vmatprep.subr.mxu0 %v2804
        %2931 = vmatpush1.msra.mxu0 %v2803
        %2932 = vmatprep.subr.mxu0 %v2808
        %2933 = vmatpush1.msra.mxu0 %v2807
        %2934 = vmatprep.subr.mxu0 %v2812
        %2935 = vmatpush1.msra.mxu0 %v2811
        %2936 = vmatprep.subr.mxu0 %v2816
        %2937 = vmatpush1.msra.mxu0 %v2815
        %2938 = vmatprep.subr.mxu0 %v2820
        %2939 = vmatpush1.msra.mxu0 %v2819
        %2940 = vmatprep.subr.mxu0 %v2824
        %2941 = vmatpush1.msra.mxu0 %v2823
        %2942 = vmatprep.subr.mxu0 %v2828
        %2943 = vmatpush1.msra.mxu0 %v2827
        %2944 = vmatprep.subr.mxu0 %v2832
        %2945 = vmatpush1.msra.mxu0 %v2831
        %2946 = vmatprep.subr.mxu0 %v2836
        %2947 = vmatpush1.msra.mxu0 %v2835
        %2948 = vmatprep.subr.mxu0 %v2840
        %2949 = vmatpush1.msra.mxu0 %v2839
        %2950 = vmatprep.subr.mxu0 %v2844
        %2951 = vmatpush1.msra.mxu0 %v2843
        %2952 = vmatprep.subr.mxu0 %v2848
        %2953 = vmatpush1.msra.mxu0 %v2847
        %2954 = vmatprep.subr.mxu0 %v2852
        %2955 = vmatpush1.msra.mxu0 %v2851
        %2956 = vmatprep.subr.mxu0 %v2856
        %2957 = vmatpush1.msra.mxu0 %v2855
        %2958 = vmatprep.subr.mxu0 %v2860
        %2959 = vmatpush1.msra.mxu0 %v2859
        %2960 = vmatprep.subr.mxu0 %v2864
        %2961 = vmatpush1.msra.mxu0 %v2863
        %2962 = vmatprep.subr.mxu0 %v2868
        %2963 = vmatpush1.msra.mxu0 %v2867
        %2964 = vmatprep.subr.mxu0 %v2872
        %2965 = vmatpush1.msra.mxu0 %v2871
        %2966 = vmatprep.subr.mxu0 %v2876
        %2967 = vmatpush1.msra.mxu0 %v2875
        %2968 = vmatprep.subr.mxu0 %v2880
        %2969 = vmatpush1.msra.mxu0 %v2879
        %2970 = vmatprep.subr.mxu0 %v2884
        %2971 = vmatpush1.msra.mxu0 %v2883
        %2972 = vmatprep.subr.mxu0 %v2888
        %2973 = vmatpush1.msra.mxu0 %v2887
        %2974 = vmatprep.subr.mxu0 %v2892
        %2975 = vmatpush1.msra.mxu0 %v2891
        %2976 = vmatprep.subr.mxu0 %v2896
        %2977 = vmatpush1.msra.mxu0 %v2895
        %2978 = vmatprep.subr.mxu0 %v2900
        %2979 = vmatpush1.msra.mxu0 %v2899
        %2980 = vmatprep.subr.mxu0 %v2904
        %2981 = vmatpush1.msra.mxu0 %v2903
        %2982 = vmatprep.subr.mxu0 %v2908
        %2983 = vmatpush1.msra.mxu0 %v2907
        %2984 = vmatprep.subr.mxu0 0.0
        %2985 = vmatpush1.msra.mxu0 0.0
        %2986 = vmatprep.subr.mxu0 0.0
        %2987 = vmatpush1.msra.mxu0 0.0
        %2988 = vmatprep.subr.mxu0 0.0
        %2989 = vmatpush1.msra.mxu0 0.0
        %2990 = vmatprep.subr.mxu0 0.0
        %2991 = vmatpush1.msra.mxu0 0.0
        %2992 = vmatprep.mubr.f32.mxu0 %v2924
        %2993 = vmatmul.mubr.f32.gmra.mrb[0].mxu0 %v2918
        %v2994 = vpop.f32.mrb[0].mxu0
        %v2995 = vadd.f32 0.0, %v2994
        %v2996 = vpop.f32.mrb[0].mxu0
        %v2997 = vadd.f32 0.0, %v2996
        %2998 = vmatprep.mubr.f32.mxu0 %v2926
        %2999 = vmatmul.mubr.f32.gmra.mrb[0].mxu0 %v2917
        %v3000 = vpop.f32.mrb[0].mxu0
        %v3001 = vadd.f32 0.0, %v3000
        %v3002 = vpop.f32.mrb[0].mxu0
        %v3003 = vadd.f32 0.0, %v3002
        %3004 = vdwg.mxu0
        %3005 = vmatprep.subr.mxu0 %v2802
        %3006 = vmatpush1.msra.mxu0 %v2801
        %3007 = vmatprep.subr.mxu0 %v2806
        %3008 = vmatpush1.msra.mxu0 %v2805
        %3009 = vmatprep.subr.mxu0 %v2810
        %3010 = vmatpush1.msra.mxu0 %v2809
        %3011 = vmatprep.subr.mxu0 %v2814
        %3012 = vmatpush1.msra.mxu0 %v2813
        %3013 = vmatprep.subr.mxu0 %v2818
        %3014 = vmatpush1.msra.mxu0 %v2817
        %3015 = vmatprep.subr.mxu0 %v2822
        %3016 = vmatpush1.msra.mxu0 %v2821
        %3017 = vmatprep.subr.mxu0 %v2826
        %3018 = vmatpush1.msra.mxu0 %v2825
        %3019 = vmatprep.subr.mxu0 %v2830
        %3020 = vmatpush1.msra.mxu0 %v2829
        %3021 = vmatprep.subr.mxu0 %v2834
        %3022 = vmatpush1.msra.mxu0 %v2833
        %3023 = vmatprep.subr.mxu0 %v2838
        %3024 = vmatpush1.msra.mxu0 %v2837
        %3025 = vmatprep.subr.mxu0 %v2842
        %3026 = vmatpush1.msra.mxu0 %v2841
        %3027 = vmatprep.subr.mxu0 %v2846
        %3028 = vmatpush1.msra.mxu0 %v2845
        %3029 = vmatprep.subr.mxu0 %v2850
        %3030 = vmatpush1.msra.mxu0 %v2849
        %3031 = vmatprep.subr.mxu0 %v2854
        %3032 = vmatpush1.msra.mxu0 %v2853
        %3033 = vmatprep.subr.mxu0 %v2858
        %3034 = vmatpush1.msra.mxu0 %v2857
        %3035 = vmatprep.subr.mxu0 %v2862
        %3036 = vmatpush1.msra.mxu0 %v2861
        %3037 = vmatprep.subr.mxu0 %v2866
        %3038 = vmatpush1.msra.mxu0 %v2865
        %3039 = vmatprep.subr.mxu0 %v2870
        %3040 = vmatpush1.msra.mxu0 %v2869
        %3041 = vmatprep.subr.mxu0 %v2874
        %3042 = vmatpush1.msra.mxu0 %v2873
        %3043 = vmatprep.subr.mxu0 %v2878
        %3044 = vmatpush1.msra.mxu0 %v2877
        %3045 = vmatprep.subr.mxu0 %v2882
        %3046 = vmatpush1.msra.mxu0 %v2881
        %3047 = vmatprep.subr.mxu0 %v2886
        %3048 = vmatpush1.msra.mxu0 %v2885
        %3049 = vmatprep.subr.mxu0 %v2890
        %3050 = vmatpush1.msra.mxu0 %v2889
        %3051 = vmatprep.subr.mxu0 %v2894
        %3052 = vmatpush1.msra.mxu0 %v2893
        %3053 = vmatprep.subr.mxu0 %v2898
        %3054 = vmatpush1.msra.mxu0 %v2897
        %3055 = vmatprep.subr.mxu0 %v2902
        %3056 = vmatpush1.msra.mxu0 %v2901
        %3057 = vmatprep.subr.mxu0 %v2906
        %3058 = vmatpush1.msra.mxu0 %v2905
        %3059 = vmatprep.subr.mxu0 %v2910
        %3060 = vmatpush1.msra.mxu0 %v2909
        %3061 = vmatprep.subr.mxu0 0.0
        %3062 = vmatpush1.msra.mxu0 0.0
        %3063 = vmatprep.subr.mxu0 0.0
        %3064 = vmatpush1.msra.mxu0 0.0
        %3065 = vmatprep.subr.mxu0 0.0
        %3066 = vmatpush1.msra.mxu0 0.0
        %3067 = vmatprep.subr.mxu0 0.0
        %3068 = vmatpush1.msra.mxu0 0.0
        %3069 = vmatprep.mubr.f32.mxu0 %v2924
        %3070 = vmatmul.mubr.f32.gmra.mrb[0].mxu0 %v2918
        %v3071 = vpop.f32.mrb[0].mxu0
        %v3072 = vadd.f32 0.0, %v3071
        %v3073 = vpop.f32.mrb[0].mxu0
        %v3074 = vadd.f32 0.0, %v3073
        %3075 = vmatprep.mubr.f32.mxu0 %v2926
        %3076 = vmatmul.mubr.f32.gmra.mrb[0].mxu0 %v2917
        %v3077 = vpop.f32.mrb[0].mxu0
        %v3078 = vadd.f32 0.0, %v3077
        %v3079 = vpop.f32.mrb[0].mxu0
        %v3080 = vadd.f32 0.0, %v3079
        %3081 = vdwg.mxu0
        %v3082 = vadd.f32 %v2707, %v2995
        %v3083 = vadd.f32 %v2709, %v2997
        %v3084 = vadd.f32 %v2784, %v3072
        %v3085 = vadd.f32 %v2786, %v3074
        %v3086 = vadd.f32 %v2713, %v3001
        %v3087 = vadd.f32 %v2715, %v3003
        %v3088 = vadd.f32 %v2790, %v3078
        %v3089 = vadd.f32 %v2792, %v3080
        %v3090 = vld [vmem:[#allocation12] sm:$0xf]
        %v3092 = vlaneseq
        %v3093 = vshrl.u32 %v3092, 7
        %v3094 = vsub.s32 0, %v3093
        %v3095 = vrot.slane %v3090, %v3094
        %v3096 = vlaneseq
        %v3097 = vshrl.u32 %v3096, 7
        %v3098 = vsub.s32 1, %v3097
        %v3099 = vrot.slane %v3090, %v3098
        %v3100 = vlaneseq
        %v3101 = vshrl.u32 %v3100, 7
        %v3102 = vsub.s32 2, %v3101
        %v3103 = vrot.slane %v3090, %v3102
        %v3104 = vlaneseq
        %v3105 = vshrl.u32 %v3104, 7
        %v3106 = vsub.s32 3, %v3105
        %v3107 = vrot.slane %v3090, %v3106
        %v3112 = vadd.f32 %v3082, %v3095
        %v3113 = vadd.f32 %v3083, %v3099
        %v3114 = vadd.f32 %v3084, %v3103
        %v3115 = vadd.f32 %v3085, %v3107
        %v3116 = vadd.f32 %v3086, %v3095
        %v3117 = vadd.f32 %v3087, %v3099
        %v3118 = vadd.f32 %v3088, %v3103
        %v3119 = vadd.f32 %v3089, %v3107
        %v3120 = vmax.f32 %v3112, 0.0
        %v3121 = vmax.f32 %v3113, 0.0
        %v3122 = vmax.f32 %v3114, 0.0
        %v3123 = vmax.f32 %v3115, 0.0
        %v3124 = vmax.f32 %v3116, 0.0
        %v3125 = vmax.f32 %v3117, 0.0
        %v3126 = vmax.f32 %v3118, 0.0
        %v3127 = vmax.f32 %v3119, 0.0
        %v3128 = vld [vmem:[%s7] sm:$0x7f]
        %vm3129 = vcmask 113664
        %v3131 = vsel %vm3129, %v3128, 0
        %v3134 = vsel %vm2915, %v3124, 0
        %v3137 = vsel %vm2915, %v3125, 0
        %v3140 = vsel %vm2915, %v3126, 0
        %v3143 = vsel %vm2915, %v3127, 0
        %3145 = vmatprep.subr.mxu0 %v3121
        %3146 = vmatpush1.msra.mxu0 %v3120
        %3147 = vmatprep.subr.mxu0 %v3137
        %3148 = vmatpush1.msra.mxu0 %v3134
        %3149 = vmatprep.subr.mxu0 0.0
        %3150 = vmatpush1.msra.mxu0 0.0
        %3151 = vmatprep.subr.mxu0 0.0
        %3152 = vmatpush1.msra.mxu0 0.0
        %3153 = vmatprep.subr.mxu0 0.0
        %3154 = vmatpush1.msra.mxu0 0.0
        %3155 = vmatprep.subr.mxu0 0.0
        %3156 = vmatpush1.msra.mxu0 0.0
        %3157 = vmatprep.subr.mxu0 0.0
        %3158 = vmatpush1.msra.mxu0 0.0
        %3159 = vmatprep.subr.mxu0 0.0
        %3160 = vmatpush1.msra.mxu0 0.0
        %3161 = vmatprep.subr.mxu0 0.0
        %3162 = vmatpush1.msra.mxu0 0.0
        %3163 = vmatprep.subr.mxu0 0.0
        %3164 = vmatpush1.msra.mxu0 0.0
        %3165 = vmatprep.subr.mxu0 0.0
        %3166 = vmatpush1.msra.mxu0 0.0
        %3167 = vmatprep.subr.mxu0 0.0
        %3168 = vmatpush1.msra.mxu0 0.0
        %3169 = vmatprep.subr.mxu0 0.0
        %3170 = vmatpush1.msra.mxu0 0.0
        %3171 = vmatprep.subr.mxu0 0.0
        %3172 = vmatpush1.msra.mxu0 0.0
        %3173 = vmatprep.subr.mxu0 0.0
        %3174 = vmatpush1.msra.mxu0 0.0
        %3175 = vmatprep.subr.mxu0 0.0
        %3176 = vmatpush1.msra.mxu0 0.0
        %3177 = vmatprep.subr.mxu0 0.0
        %3178 = vmatpush1.msra.mxu0 0.0
        %3179 = vmatprep.subr.mxu0 0.0
        %3180 = vmatpush1.msra.mxu0 0.0
        %3181 = vmatprep.subr.mxu0 0.0
        %3182 = vmatpush1.msra.mxu0 0.0
        %3183 = vmatprep.subr.mxu0 0.0
        %3184 = vmatpush1.msra.mxu0 0.0
        %3185 = vmatprep.subr.mxu0 0.0
        %3186 = vmatpush1.msra.mxu0 0.0
        %3187 = vmatprep.subr.mxu0 0.0
        %3188 = vmatpush1.msra.mxu0 0.0
        %3189 = vmatprep.subr.mxu0 0.0
        %3190 = vmatpush1.msra.mxu0 0.0
        %3191 = vmatprep.subr.mxu0 0.0
        %3192 = vmatpush1.msra.mxu0 0.0
        %3193 = vmatprep.subr.mxu0 0.0
        %3194 = vmatpush1.msra.mxu0 0.0
        %3195 = vmatprep.subr.mxu0 0.0
        %3196 = vmatpush1.msra.mxu0 0.0
        %3197 = vmatprep.subr.mxu0 0.0
        %3198 = vmatpush1.msra.mxu0 0.0
        %3199 = vmatprep.subr.mxu0 0.0
        %3200 = vmatpush1.msra.mxu0 0.0
        %3201 = vmatprep.subr.mxu0 0.0
        %3202 = vmatpush1.msra.mxu0 0.0
        %3203 = vmatprep.subr.mxu0 0.0
        %3204 = vmatpush1.msra.mxu0 0.0
        %3205 = vmatprep.subr.mxu0 0.0
        %3206 = vmatpush1.msra.mxu0 0.0
        %3207 = vmatprep.subr.mxu0 0.0
        %3208 = vmatpush1.msra.mxu0 0.0
        %3209 = vmatprep.mubr.f32.mxu0 0.0
        %3210 = vmatmul.mubr.f32.gmra.mrb[0].mxu0 %v3131
        %v3211 = vpop.f32.mrb[0].mxu0
        %v3212 = vadd.f32 0.0, %v3211
        %v3213 = vpop.f32.mrb[0].mxu0
        %v3214 = vadd.f32 0.0, %v3213
        %3215 = vdwg.mxu0
        %3216 = vmatprep.subr.mxu0 %v3123
        %3217 = vmatpush1.msra.mxu0 %v3122
        %3218 = vmatprep.subr.mxu0 %v3143
        %3219 = vmatpush1.msra.mxu0 %v3140
        %3220 = vmatprep.subr.mxu0 0.0
        %3221 = vmatpush1.msra.mxu0 0.0
        %3222 = vmatprep.subr.mxu0 0.0
        %3223 = vmatpush1.msra.mxu0 0.0
        %3224 = vmatprep.subr.mxu0 0.0
        %3225 = vmatpush1.msra.mxu0 0.0
        %3226 = vmatprep.subr.mxu0 0.0
        %3227 = vmatpush1.msra.mxu0 0.0
        %3228 = vmatprep.subr.mxu0 0.0
        %3229 = vmatpush1.msra.mxu0 0.0
        %3230 = vmatprep.subr.mxu0 0.0
        %3231 = vmatpush1.msra.mxu0 0.0
        %3232 = vmatprep.subr.mxu0 0.0
        %3233 = vmatpush1.msra.mxu0 0.0
        %3234 = vmatprep.subr.mxu0 0.0
        %3235 = vmatpush1.msra.mxu0 0.0
        %3236 = vmatprep.subr.mxu0 0.0
        %3237 = vmatpush1.msra.mxu0 0.0
        %3238 = vmatprep.subr.mxu0 0.0
        %3239 = vmatpush1.msra.mxu0 0.0
        %3240 = vmatprep.subr.mxu0 0.0
        %3241 = vmatpush1.msra.mxu0 0.0
        %3242 = vmatprep.subr.mxu0 0.0
        %3243 = vmatpush1.msra.mxu0 0.0
        %3244 = vmatprep.subr.mxu0 0.0
        %3245 = vmatpush1.msra.mxu0 0.0
        %3246 = vmatprep.subr.mxu0 0.0
        %3247 = vmatpush1.msra.mxu0 0.0
        %3248 = vmatprep.subr.mxu0 0.0
        %3249 = vmatpush1.msra.mxu0 0.0
        %3250 = vmatprep.subr.mxu0 0.0
        %3251 = vmatpush1.msra.mxu0 0.0
        %3252 = vmatprep.subr.mxu0 0.0
        %3253 = vmatpush1.msra.mxu0 0.0
        %3254 = vmatprep.subr.mxu0 0.0
        %3255 = vmatpush1.msra.mxu0 0.0
        %3256 = vmatprep.subr.mxu0 0.0
        %3257 = vmatpush1.msra.mxu0 0.0
        %3258 = vmatprep.subr.mxu0 0.0
        %3259 = vmatpush1.msra.mxu0 0.0
        %3260 = vmatprep.subr.mxu0 0.0
        %3261 = vmatpush1.msra.mxu0 0.0
        %3262 = vmatprep.subr.mxu0 0.0
        %3263 = vmatpush1.msra.mxu0 0.0
        %3264 = vmatprep.subr.mxu0 0.0
        %3265 = vmatpush1.msra.mxu0 0.0
        %3266 = vmatprep.subr.mxu0 0.0
        %3267 = vmatpush1.msra.mxu0 0.0
        %3268 = vmatprep.subr.mxu0 0.0
        %3269 = vmatpush1.msra.mxu0 0.0
        %3270 = vmatprep.subr.mxu0 0.0
        %3271 = vmatpush1.msra.mxu0 0.0
        %3272 = vmatprep.subr.mxu0 0.0
        %3273 = vmatpush1.msra.mxu0 0.0
        %3274 = vmatprep.subr.mxu0 0.0
        %3275 = vmatpush1.msra.mxu0 0.0
        %3276 = vmatprep.subr.mxu0 0.0
        %3277 = vmatpush1.msra.mxu0 0.0
        %3278 = vmatprep.subr.mxu0 0.0
        %3279 = vmatpush1.msra.mxu0 0.0
        %3280 = vmatprep.mubr.f32.mxu0 0.0
        %3281 = vmatmul.mubr.f32.gmra.mrb[0].mxu0 %v3131
        %v3282 = vpop.f32.mrb[0].mxu0
        %v3283 = vadd.f32 0.0, %v3282
        %v3284 = vpop.f32.mrb[0].mxu0
        %v3285 = vadd.f32 0.0, %v3284
        %3286 = vdwg.mxu0
        %s3287 = scalar_lea.vmem %s7, 8
        %v3288 = vld [vmem:[%s3287] sm:$0x7f]
        %v3290 = vsel %vm3129, %v3288, 0
        %3292 = vmatprep.subr.mxu0 %v3121
        %3293 = vmatpush1.msra.mxu0 %v3120
        %3294 = vmatprep.subr.mxu0 %v3137
        %3295 = vmatpush1.msra.mxu0 %v3134
        %3296 = vmatprep.subr.mxu0 0.0
        %3297 = vmatpush1.msra.mxu0 0.0
        %3298 = vmatprep.subr.mxu0 0.0
        %3299 = vmatpush1.msra.mxu0 0.0
        %3300 = vmatprep.subr.mxu0 0.0
        %3301 = vmatpush1.msra.mxu0 0.0
        %3302 = vmatprep.subr.mxu0 0.0
        %3303 = vmatpush1.msra.mxu0 0.0
        %3304 = vmatprep.subr.mxu0 0.0
        %3305 = vmatpush1.msra.mxu0 0.0
        %3306 = vmatprep.subr.mxu0 0.0
        %3307 = vmatpush1.msra.mxu0 0.0
        %3308 = vmatprep.subr.mxu0 0.0
        %3309 = vmatpush1.msra.mxu0 0.0
        %3310 = vmatprep.subr.mxu0 0.0
        %3311 = vmatpush1.msra.mxu0 0.0
        %3312 = vmatprep.subr.mxu0 0.0
        %3313 = vmatpush1.msra.mxu0 0.0
        %3314 = vmatprep.subr.mxu0 0.0
        %3315 = vmatpush1.msra.mxu0 0.0
        %3316 = vmatprep.subr.mxu0 0.0
        %3317 = vmatpush1.msra.mxu0 0.0
        %3318 = vmatprep.subr.mxu0 0.0
        %3319 = vmatpush1.msra.mxu0 0.0
        %3320 = vmatprep.subr.mxu0 0.0
        %3321 = vmatpush1.msra.mxu0 0.0
        %3322 = vmatprep.subr.mxu0 0.0
        %3323 = vmatpush1.msra.mxu0 0.0
        %3324 = vmatprep.subr.mxu0 0.0
        %3325 = vmatpush1.msra.mxu0 0.0
        %3326 = vmatprep.subr.mxu0 0.0
        %3327 = vmatpush1.msra.mxu0 0.0
        %3328 = vmatprep.subr.mxu0 0.0
        %3329 = vmatpush1.msra.mxu0 0.0
        %3330 = vmatprep.subr.mxu0 0.0
        %3331 = vmatpush1.msra.mxu0 0.0
        %3332 = vmatprep.subr.mxu0 0.0
        %3333 = vmatpush1.msra.mxu0 0.0
        %3334 = vmatprep.subr.mxu0 0.0
        %3335 = vmatpush1.msra.mxu0 0.0
        %3336 = vmatprep.subr.mxu0 0.0
        %3337 = vmatpush1.msra.mxu0 0.0
        %3338 = vmatprep.subr.mxu0 0.0
        %3339 = vmatpush1.msra.mxu0 0.0
        %3340 = vmatprep.subr.mxu0 0.0
        %3341 = vmatpush1.msra.mxu0 0.0
        %3342 = vmatprep.subr.mxu0 0.0
        %3343 = vmatpush1.msra.mxu0 0.0
        %3344 = vmatprep.subr.mxu0 0.0
        %3345 = vmatpush1.msra.mxu0 0.0
        %3346 = vmatprep.subr.mxu0 0.0
        %3347 = vmatpush1.msra.mxu0 0.0
        %3348 = vmatprep.subr.mxu0 0.0
        %3349 = vmatpush1.msra.mxu0 0.0
        %3350 = vmatprep.subr.mxu0 0.0
        %3351 = vmatpush1.msra.mxu0 0.0
        %3352 = vmatprep.subr.mxu0 0.0
        %3353 = vmatpush1.msra.mxu0 0.0
        %3354 = vmatprep.subr.mxu0 0.0
        %3355 = vmatpush1.msra.mxu0 0.0
        %3356 = vmatprep.mubr.f32.mxu0 0.0
        %3357 = vmatmul.mubr.f32.gmra.mrb[0].mxu0 %v3290
        %v3358 = vpop.f32.mrb[0].mxu0
        %v3359 = vadd.f32 0.0, %v3358
        %v3360 = vpop.f32.mrb[0].mxu0
        %v3361 = vadd.f32 0.0, %v3360
        %3362 = vdwg.mxu0
        %3363 = vmatprep.subr.mxu0 %v3123
        %3364 = vmatpush1.msra.mxu0 %v3122
        %3365 = vmatprep.subr.mxu0 %v3143
        %3366 = vmatpush1.msra.mxu0 %v3140
        %3367 = vmatprep.subr.mxu0 0.0
        %3368 = vmatpush1.msra.mxu0 0.0
        %3369 = vmatprep.subr.mxu0 0.0
        %3370 = vmatpush1.msra.mxu0 0.0
        %3371 = vmatprep.subr.mxu0 0.0
        %3372 = vmatpush1.msra.mxu0 0.0
        %3373 = vmatprep.subr.mxu0 0.0
        %3374 = vmatpush1.msra.mxu0 0.0
        %3375 = vmatprep.subr.mxu0 0.0
        %3376 = vmatpush1.msra.mxu0 0.0
        %3377 = vmatprep.subr.mxu0 0.0
        %3378 = vmatpush1.msra.mxu0 0.0
        %3379 = vmatprep.subr.mxu0 0.0
        %3380 = vmatpush1.msra.mxu0 0.0
        %3381 = vmatprep.subr.mxu0 0.0
        %3382 = vmatpush1.msra.mxu0 0.0
        %3383 = vmatprep.subr.mxu0 0.0
        %3384 = vmatpush1.msra.mxu0 0.0
        %3385 = vmatprep.subr.mxu0 0.0
        %3386 = vmatpush1.msra.mxu0 0.0
        %3387 = vmatprep.subr.mxu0 0.0
        %3388 = vmatpush1.msra.mxu0 0.0
        %3389 = vmatprep.subr.mxu0 0.0
        %3390 = vmatpush1.msra.mxu0 0.0
        %3391 = vmatprep.subr.mxu0 0.0
        %3392 = vmatpush1.msra.mxu0 0.0
        %3393 = vmatprep.subr.mxu0 0.0
        %3394 = vmatpush1.msra.mxu0 0.0
        %3395 = vmatprep.subr.mxu0 0.0
        %3396 = vmatpush1.msra.mxu0 0.0
        %3397 = vmatprep.subr.mxu0 0.0
        %3398 = vmatpush1.msra.mxu0 0.0
        %3399 = vmatprep.subr.mxu0 0.0
        %3400 = vmatpush1.msra.mxu0 0.0
        %3401 = vmatprep.subr.mxu0 0.0
        %3402 = vmatpush1.msra.mxu0 0.0
        %3403 = vmatprep.subr.mxu0 0.0
        %3404 = vmatpush1.msra.mxu0 0.0
        %3405 = vmatprep.subr.mxu0 0.0
        %3406 = vmatpush1.msra.mxu0 0.0
        %3407 = vmatprep.subr.mxu0 0.0
        %3408 = vmatpush1.msra.mxu0 0.0
        %3409 = vmatprep.subr.mxu0 0.0
        %3410 = vmatpush1.msra.mxu0 0.0
        %3411 = vmatprep.subr.mxu0 0.0
        %3412 = vmatpush1.msra.mxu0 0.0
        %3413 = vmatprep.subr.mxu0 0.0
        %3414 = vmatpush1.msra.mxu0 0.0
        %3415 = vmatprep.subr.mxu0 0.0
        %3416 = vmatpush1.msra.mxu0 0.0
        %3417 = vmatprep.subr.mxu0 0.0
        %3418 = vmatpush1.msra.mxu0 0.0
        %3419 = vmatprep.subr.mxu0 0.0
        %3420 = vmatpush1.msra.mxu0 0.0
        %3421 = vmatprep.subr.mxu0 0.0
        %3422 = vmatpush1.msra.mxu0 0.0
        %3423 = vmatprep.subr.mxu0 0.0
        %3424 = vmatpush1.msra.mxu0 0.0
        %3425 = vmatprep.subr.mxu0 0.0
        %3426 = vmatpush1.msra.mxu0 0.0
        %3427 = vmatprep.mubr.f32.mxu0 0.0
        %3428 = vmatmul.mubr.f32.gmra.mrb[0].mxu0 %v3290
        %v3429 = vpop.f32.mrb[0].mxu0
        %v3430 = vadd.f32 0.0, %v3429
        %v3431 = vpop.f32.mrb[0].mxu0
        %v3432 = vadd.f32 0.0, %v3431
        %3433 = vdwg.mxu0
        %v3434 = vmax.f32 %v3212, %v3359
        %v3435 = vmax.f32 %v3214, %v3361
        %v3436 = vmax.f32 %v3283, %v3430
        %v3437 = vmax.f32 %v3285, %v3432
        %v3438 = vld [vmem:[#allocation13] sm:$0xff]
        %v3439 = vld [vmem:[#allocation13 + $0x8] sm:$0xff]
        %v3440 = vld [vmem:[#allocation13 + $0x10] sm:$0xff]
        %v3441 = vld [vmem:[#allocation13 + $0x18] sm:$0xff]
        %v3442 = vld [vmem:[#allocation13 + $0x20] sm:$0xff]
        %v3443 = vld [vmem:[#allocation13 + $0x28] sm:$0xff]
        %v3444 = vld [vmem:[#allocation13 + $0x30] sm:$0xff]
        %v3445 = vld [vmem:[#allocation13 + $0x38] sm:$0xff]
        %v3446 = vld [vmem:[#allocation13 + $0x40] sm:$0xff]
        %v3447 = vld [vmem:[#allocation13 + $0x48] sm:$0xff]
        %v3448 = vld [vmem:[#allocation13 + $0x50] sm:$0xff]
        %v3449 = vld [vmem:[#allocation13 + $0x58] sm:$0xff]
        %v3450 = vld [vmem:[#allocation13 + $0x60] sm:$0xff]
        %v3451 = vld [vmem:[#allocation13 + $0x68] sm:$0xff]
        %v3452 = vld [vmem:[#allocation13 + $0x70] sm:$0xff]
        %v3453 = vld [vmem:[#allocation13 + $0x78] sm:$0xff]
        %v3454 = vld [vmem:[#allocation13 + $0x80] sm:$0xff]
        %v3455 = vld [vmem:[#allocation13 + $0x88] sm:$0xff]
        %v3456 = vld [vmem:[#allocation13 + $0x90] sm:$0xff]
        %v3457 = vld [vmem:[#allocation13 + $0x98] sm:$0xff]
        %v3458 = vld [vmem:[#allocation13 + $0xa0] sm:$0xff]
        %v3459 = vld [vmem:[#allocation13 + $0xa8] sm:$0xff]
        %v3460 = vld [vmem:[#allocation13 + $0xb0] sm:$0xff]
        %v3461 = vld [vmem:[#allocation13 + $0xb8] sm:$0xff]
        %v3462 = vld [vmem:[#allocation13 + $0xc0] sm:$0xff]
        %v3463 = vld [vmem:[#allocation13 + $0xc8] sm:$0xff]
        %v3464 = vld [vmem:[#allocation13 + $0xd0] sm:$0xff]
        %v3465 = vld [vmem:[#allocation13 + $0xd8] sm:$0xff]
        %v3466 = vld [vmem:[#allocation13 + $0xe0] sm:$0xff]
        %v3467 = vld [vmem:[#allocation13 + $0xe8] sm:$0xff]
        %v3468 = vld [vmem:[#allocation13 + $0xf0] sm:$0xff]
        %v3469 = vld [vmem:[#allocation13 + $0xf8] sm:$0xff]
        %v3470 = vld [vmem:[#allocation13 + $0x100] sm:$0xff]
        %v3471 = vld [vmem:[#allocation13 + $0x108] sm:$0xff]
        %v3472 = vld [vmem:[#allocation13 + $0x110] sm:$0xff]
        %v3473 = vld [vmem:[#allocation13 + $0x118] sm:$0xff]
        %v3474 = vld [vmem:[#allocation13 + $0x120] sm:$0xff]
        %v3475 = vld [vmem:[#allocation13 + $0x128] sm:$0xff]
        %v3476 = vld [vmem:[#allocation13 + $0x130] sm:$0xff]
        %v3477 = vld [vmem:[#allocation13 + $0x138] sm:$0xff]
        %v3478 = vld [vmem:[#allocation13 + $0x140] sm:$0xff]
        %v3479 = vld [vmem:[#allocation13 + $0x148] sm:$0xff]
        %v3480 = vld [vmem:[#allocation13 + $0x150] sm:$0xff]
        %v3481 = vld [vmem:[#allocation13 + $0x158] sm:$0xff]
        %v3482 = vld [vmem:[#allocation13 + $0x160] sm:$0xff]
        %v3483 = vld [vmem:[#allocation13 + $0x168] sm:$0xff]
        %v3484 = vld [vmem:[#allocation13 + $0x170] sm:$0xff]
        %v3485 = vld [vmem:[#allocation13 + $0x178] sm:$0xff]
        %v3486 = vld [vmem:[#allocation13 + $0x180] sm:$0xff]
        %v3487 = vld [vmem:[#allocation13 + $0x188] sm:$0xff]
        %v3488 = vld [vmem:[#allocation13 + $0x190] sm:$0xff]
        %v3489 = vld [vmem:[#allocation13 + $0x198] sm:$0xff]
        %v3490 = vld [vmem:[#allocation13 + $0x1a0] sm:$0xff]
        %v3491 = vld [vmem:[#allocation13 + $0x1a8] sm:$0xff]
        %v3492 = vld [vmem:[#allocation13 + $0x1b0] sm:$0xff]
        %v3493 = vld [vmem:[#allocation13 + $0x1b8] sm:$0xff]
        %v3494 = vld [vmem:[#allocation13 + $0x1c0] sm:$0xff]
        %v3495 = vld [vmem:[#allocation13 + $0x1c8] sm:$0xff]
        %v3496 = vld [vmem:[#allocation13 + $0x1d0] sm:$0xff]
        %v3497 = vld [vmem:[#allocation13 + $0x1d8] sm:$0xff]
        %v3498 = vld [vmem:[#allocation13 + $0x1e0] sm:$0xff]
        %v3499 = vld [vmem:[#allocation13 + $0x1e8] sm:$0xff]
        %v3500 = vld [vmem:[#allocation13 + $0x1f0] sm:$0xff]
        %v3501 = vld [vmem:[#allocation13 + $0x1f8] sm:$0xff]
        %v3502 = vld [vmem:[#allocation13 + $0x200] sm:$0xff]
        %v3503 = vld [vmem:[#allocation13 + $0x208] sm:$0xff]
        %v3504 = vld [vmem:[#allocation13 + $0x210] sm:$0xff]
        %v3505 = vld [vmem:[#allocation13 + $0x218] sm:$0xff]
        %v3506 = vld [vmem:[#allocation13 + $0x220] sm:$0xff]
        %v3507 = vld [vmem:[#allocation13 + $0x228] sm:$0xff]
        %v3508 = vld [vmem:[#allocation13 + $0x230] sm:$0xff]
        %v3509 = vld [vmem:[#allocation13 + $0x238] sm:$0xff]
        %v3510 = vld [vmem:[#allocation13 + $0x240] sm:$0xff]
        %v3511 = vld [vmem:[#allocation13 + $0x248] sm:$0xff]
        %v3512 = vld [vmem:[#allocation13 + $0x250] sm:$0xff]
        %v3513 = vld [vmem:[#allocation13 + $0x258] sm:$0xff]
        %v3514 = vld [vmem:[#allocation13 + $0x260] sm:$0xff]
        %v3515 = vld [vmem:[#allocation13 + $0x268] sm:$0xff]
        %v3516 = vld [vmem:[#allocation13 + $0x270] sm:$0xff]
        %v3517 = vld [vmem:[#allocation13 + $0x278] sm:$0xff]
        %v3518 = vld [vmem:[#allocation13 + $0x280] sm:$0xff]
        %v3519 = vld [vmem:[#allocation13 + $0x288] sm:$0xff]
        %v3520 = vld [vmem:[#allocation13 + $0x290] sm:$0xff]
        %v3521 = vld [vmem:[#allocation13 + $0x298] sm:$0xff]
        %v3522 = vld [vmem:[#allocation13 + $0x2a0] sm:$0xff]
        %v3523 = vld [vmem:[#allocation13 + $0x2a8] sm:$0xff]
        %v3524 = vld [vmem:[#allocation13 + $0x2b0] sm:$0xff]
        %v3525 = vld [vmem:[#allocation13 + $0x2b8] sm:$0xff]
        %v3526 = vld [vmem:[#allocation13 + $0x2c0] sm:$0xff]
        %v3527 = vld [vmem:[#allocation13 + $0x2c8] sm:$0xff]
        %v3528 = vld [vmem:[#allocation13 + $0x2d0] sm:$0xff]
        %v3529 = vld [vmem:[#allocation13 + $0x2d8] sm:$0xff]
        %v3530 = vld [vmem:[#allocation13 + $0x2e0] sm:$0xff]
        %v3531 = vld [vmem:[#allocation13 + $0x2e8] sm:$0xff]
        %v3532 = vld [vmem:[#allocation13 + $0x2f0] sm:$0xff]
        %v3533 = vld [vmem:[#allocation13 + $0x2f8] sm:$0xff]
        %v3534 = vld [vmem:[#allocation13 + $0x300] sm:$0xff]
        %v3535 = vld [vmem:[#allocation13 + $0x308] sm:$0xff]
        %v3536 = vld [vmem:[#allocation13 + $0x310] sm:$0xff]
        %v3537 = vld [vmem:[#allocation13 + $0x318] sm:$0xff]
        %v3538 = vld [vmem:[#allocation13 + $0x320] sm:$0xff]
        %v3539 = vld [vmem:[#allocation13 + $0x328] sm:$0xff]
        %v3540 = vld [vmem:[#allocation13 + $0x330] sm:$0xff]
        %v3541 = vld [vmem:[#allocation13 + $0x338] sm:$0xff]
        %v3542 = vld [vmem:[#allocation13 + $0x340] sm:$0xff]
        %v3543 = vld [vmem:[#allocation13 + $0x348] sm:$0xff]
        %v3544 = vld [vmem:[#allocation13 + $0x350] sm:$0xff]
        %v3545 = vld [vmem:[#allocation13 + $0x358] sm:$0xff]
        %v3546 = vld [vmem:[#allocation13 + $0x360] sm:$0xff]
        %v3547 = vld [vmem:[#allocation13 + $0x368] sm:$0xff]
        %v3548 = vld [vmem:[#allocation13 + $0x370] sm:$0xff]
        %v3549 = vld [vmem:[#allocation13 + $0x378] sm:$0xff]
        %v3551 = vsel %vm1772, %v3437, 0
        %3553 = vmatprep.subr.mxu0 %v3439
        %3554 = vmatpush1.msra.mxu0 %v3438
        %3555 = vmatprep.subr.mxu0 %v3441
        %3556 = vmatpush1.msra.mxu0 %v3440
        %3557 = vmatprep.subr.mxu0 %v3443
        %3558 = vmatpush1.msra.mxu0 %v3442
        %3559 = vmatprep.subr.mxu0 %v3445
        %3560 = vmatpush1.msra.mxu0 %v3444
        %3561 = vmatprep.subr.mxu0 %v3447
        %3562 = vmatpush1.msra.mxu0 %v3446
        %3563 = vmatprep.subr.mxu0 %v3449
        %3564 = vmatpush1.msra.mxu0 %v3448
        %3565 = vmatprep.subr.mxu0 %v3451
        %3566 = vmatpush1.msra.mxu0 %v3450
        %3567 = vmatprep.subr.mxu0 %v3453
        %3568 = vmatpush1.msra.mxu0 %v3452
        %3569 = vmatprep.subr.mxu0 %v3455
        %3570 = vmatpush1.msra.mxu0 %v3454
        %3571 = vmatprep.subr.mxu0 %v3457
        %3572 = vmatpush1.msra.mxu0 %v3456
        %3573 = vmatprep.subr.mxu0 %v3459
        %3574 = vmatpush1.msra.mxu0 %v3458
        %3575 = vmatprep.subr.mxu0 %v3461
        %3576 = vmatpush1.msra.mxu0 %v3460
        %3577 = vmatprep.subr.mxu0 %v3463
        %3578 = vmatpush1.msra.mxu0 %v3462
        %3579 = vmatprep.subr.mxu0 %v3465
        %3580 = vmatpush1.msra.mxu0 %v3464
        %3581 = vmatprep.subr.mxu0 %v3467
        %3582 = vmatpush1.msra.mxu0 %v3466
        %3583 = vmatprep.subr.mxu0 %v3469
        %3584 = vmatpush1.msra.mxu0 %v3468
        %3585 = vmatprep.subr.mxu0 %v3471
        %3586 = vmatpush1.msra.mxu0 %v3470
        %3587 = vmatprep.subr.mxu0 %v3473
        %3588 = vmatpush1.msra.mxu0 %v3472
        %3589 = vmatprep.subr.mxu0 %v3475
        %3590 = vmatpush1.msra.mxu0 %v3474
        %3591 = vmatprep.subr.mxu0 %v3477
        %3592 = vmatpush1.msra.mxu0 %v3476
        %3593 = vmatprep.subr.mxu0 %v3479
        %3594 = vmatpush1.msra.mxu0 %v3478
        %3595 = vmatprep.subr.mxu0 %v3481
        %3596 = vmatpush1.msra.mxu0 %v3480
        %3597 = vmatprep.subr.mxu0 %v3483
        %3598 = vmatpush1.msra.mxu0 %v3482
        %3599 = vmatprep.subr.mxu0 %v3485
        %3600 = vmatpush1.msra.mxu0 %v3484
        %3601 = vmatprep.subr.mxu0 %v3487
        %3602 = vmatpush1.msra.mxu0 %v3486
        %3603 = vmatprep.subr.mxu0 %v3489
        %3604 = vmatpush1.msra.mxu0 %v3488
        %3605 = vmatprep.subr.mxu0 %v3491
        %3606 = vmatpush1.msra.mxu0 %v3490
        %3607 = vmatprep.subr.mxu0 %v3493
        %3608 = vmatpush1.msra.mxu0 %v3492
        %3609 = vmatprep.subr.mxu0 %v3495
        %3610 = vmatpush1.msra.mxu0 %v3494
        %3611 = vmatprep.subr.mxu0 %v3497
        %3612 = vmatpush1.msra.mxu0 %v3496
        %3613 = vmatprep.subr.mxu0 %v3499
        %3614 = vmatpush1.msra.mxu0 %v3498
        %3615 = vmatprep.subr.mxu0 %v3501
        %3616 = vmatpush1.msra.mxu0 %v3500
        %3617 = vmatprep.mubr.f32.mxu0 %v3435
        %3618 = vmatmul.mubr.f32.gmra.mrb[0].mxu0 %v3434
        %v3619 = vpop.f32.mrb[0].mxu0
        %v3620 = vadd.f32 0.0, %v3619
        %v3621 = vpop.f32.mrb[0].mxu0
        %v3622 = vadd.f32 0.0, %v3621
        %3623 = vdwg.mxu0
        %3624 = vmatprep.subr.mxu0 %v3503
        %3625 = vmatpush1.msra.mxu0 %v3502
        %3626 = vmatprep.subr.mxu0 %v3505
        %3627 = vmatpush1.msra.mxu0 %v3504
        %3628 = vmatprep.subr.mxu0 %v3507
        %3629 = vmatpush1.msra.mxu0 %v3506
        %3630 = vmatprep.subr.mxu0 %v3509
        %3631 = vmatpush1.msra.mxu0 %v3508
        %3632 = vmatprep.subr.mxu0 %v3511
        %3633 = vmatpush1.msra.mxu0 %v3510
        %3634 = vmatprep.subr.mxu0 %v3513
        %3635 = vmatpush1.msra.mxu0 %v3512
        %3636 = vmatprep.subr.mxu0 %v3515
        %3637 = vmatpush1.msra.mxu0 %v3514
        %3638 = vmatprep.subr.mxu0 %v3517
        %3639 = vmatpush1.msra.mxu0 %v3516
        %3640 = vmatprep.subr.mxu0 %v3519
        %3641 = vmatpush1.msra.mxu0 %v3518
        %3642 = vmatprep.subr.mxu0 %v3521
        %3643 = vmatpush1.msra.mxu0 %v3520
        %3644 = vmatprep.subr.mxu0 %v3523
        %3645 = vmatpush1.msra.mxu0 %v3522
        %3646 = vmatprep.subr.mxu0 %v3525
        %3647 = vmatpush1.msra.mxu0 %v3524
        %3648 = vmatprep.subr.mxu0 %v3527
        %3649 = vmatpush1.msra.mxu0 %v3526
        %3650 = vmatprep.subr.mxu0 %v3529
        %3651 = vmatpush1.msra.mxu0 %v3528
        %3652 = vmatprep.subr.mxu0 %v3531
        %3653 = vmatpush1.msra.mxu0 %v3530
        %3654 = vmatprep.subr.mxu0 %v3533
        %3655 = vmatpush1.msra.mxu0 %v3532
        %3656 = vmatprep.subr.mxu0 %v3535
        %3657 = vmatpush1.msra.mxu0 %v3534
        %3658 = vmatprep.subr.mxu0 %v3537
        %3659 = vmatpush1.msra.mxu0 %v3536
        %3660 = vmatprep.subr.mxu0 %v3539
        %3661 = vmatpush1.msra.mxu0 %v3538
        %3662 = vmatprep.subr.mxu0 %v3541
        %3663 = vmatpush1.msra.mxu0 %v3540
        %3664 = vmatprep.subr.mxu0 %v3543
        %3665 = vmatpush1.msra.mxu0 %v3542
        %3666 = vmatprep.subr.mxu0 %v3545
        %3667 = vmatpush1.msra.mxu0 %v3544
        %3668 = vmatprep.subr.mxu0 %v3547
        %3669 = vmatpush1.msra.mxu0 %v3546
        %3670 = vmatprep.subr.mxu0 %v3549
        %3671 = vmatpush1.msra.mxu0 %v3548
        %3672 = vmatprep.subr.mxu0 0.0
        %3673 = vmatpush1.msra.mxu0 0.0
        %3674 = vmatprep.subr.mxu0 0.0
        %3675 = vmatpush1.msra.mxu0 0.0
        %3676 = vmatprep.subr.mxu0 0.0
        %3677 = vmatpush1.msra.mxu0 0.0
        %3678 = vmatprep.subr.mxu0 0.0
        %3679 = vmatpush1.msra.mxu0 0.0
        %3680 = vmatprep.subr.mxu0 0.0
        %3681 = vmatpush1.msra.mxu0 0.0
        %3682 = vmatprep.subr.mxu0 0.0
        %3683 = vmatpush1.msra.mxu0 0.0
        %3684 = vmatprep.subr.mxu0 0.0
        %3685 = vmatpush1.msra.mxu0 0.0
        %3686 = vmatprep.subr.mxu0 0.0
        %3687 = vmatpush1.msra.mxu0 0.0
        %3688 = vmatprep.mubr.f32.mxu0 %v3551
        %3689 = vmatmul.mubr.f32.gmra.mrb[0].mxu0 %v3436
        %v3690 = vpop.f32.mrb[0].mxu0
        %v3691 = vadd.f32 %v3620, %v3690
        %v3692 = vpop.f32.mrb[0].mxu0
        %v3693 = vadd.f32 %v3622, %v3692
        %3694 = vdwg.mxu0
        %s3695 = scalar_lea.vmem [#allocation13], 896
        %v3696 = vld [vmem:[%s3695] sm:$0xff]
        %v3697 = vld [vmem:[%s3695 + $0x8] sm:$0xff]
        %v3698 = vld [vmem:[%s3695 + $0x10] sm:$0xff]
        %v3699 = vld [vmem:[%s3695 + $0x18] sm:$0xff]
        %v3700 = vld [vmem:[%s3695 + $0x20] sm:$0xff]
        %v3701 = vld [vmem:[%s3695 + $0x28] sm:$0xff]
        %v3702 = vld [vmem:[%s3695 + $0x30] sm:$0xff]
        %v3703 = vld [vmem:[%s3695 + $0x38] sm:$0xff]
        %v3704 = vld [vmem:[%s3695 + $0x40] sm:$0xff]
        %v3705 = vld [vmem:[%s3695 + $0x48] sm:$0xff]
        %v3706 = vld [vmem:[%s3695 + $0x50] sm:$0xff]
        %v3707 = vld [vmem:[%s3695 + $0x58] sm:$0xff]
        %v3708 = vld [vmem:[%s3695 + $0x60] sm:$0xff]
        %v3709 = vld [vmem:[%s3695 + $0x68] sm:$0xff]
        %v3710 = vld [vmem:[%s3695 + $0x70] sm:$0xff]
        %v3711 = vld [vmem:[%s3695 + $0x78] sm:$0xff]
        %v3712 = vld [vmem:[%s3695 + $0x80] sm:$0xff]
        %v3713 = vld [vmem:[%s3695 + $0x88] sm:$0xff]
        %v3714 = vld [vmem:[%s3695 + $0x90] sm:$0xff]
        %v3715 = vld [vmem:[%s3695 + $0x98] sm:$0xff]
        %v3716 = vld [vmem:[%s3695 + $0xa0] sm:$0xff]
        %v3717 = vld [vmem:[%s3695 + $0xa8] sm:$0xff]
        %v3718 = vld [vmem:[%s3695 + $0xb0] sm:$0xff]
        %v3719 = vld [vmem:[%s3695 + $0xb8] sm:$0xff]
        %v3720 = vld [vmem:[%s3695 + $0xc0] sm:$0xff]
        %v3721 = vld [vmem:[%s3695 + $0xc8] sm:$0xff]
        %v3722 = vld [vmem:[%s3695 + $0xd0] sm:$0xff]
        %v3723 = vld [vmem:[%s3695 + $0xd8] sm:$0xff]
        %v3724 = vld [vmem:[%s3695 + $0xe0] sm:$0xff]
        %v3725 = vld [vmem:[%s3695 + $0xe8] sm:$0xff]
        %v3726 = vld [vmem:[%s3695 + $0xf0] sm:$0xff]
        %v3727 = vld [vmem:[%s3695 + $0xf8] sm:$0xff]
        %v3728 = vld [vmem:[%s3695 + $0x100] sm:$0xff]
        %v3729 = vld [vmem:[%s3695 + $0x108] sm:$0xff]
        %v3730 = vld [vmem:[%s3695 + $0x110] sm:$0xff]
        %v3731 = vld [vmem:[%s3695 + $0x118] sm:$0xff]
        %v3732 = vld [vmem:[%s3695 + $0x120] sm:$0xff]
        %v3733 = vld [vmem:[%s3695 + $0x128] sm:$0xff]
        %v3734 = vld [vmem:[%s3695 + $0x130] sm:$0xff]
        %v3735 = vld [vmem:[%s3695 + $0x138] sm:$0xff]
        %v3736 = vld [vmem:[%s3695 + $0x140] sm:$0xff]
        %v3737 = vld [vmem:[%s3695 + $0x148] sm:$0xff]
        %v3738 = vld [vmem:[%s3695 + $0x150] sm:$0xff]
        %v3739 = vld [vmem:[%s3695 + $0x158] sm:$0xff]
        %v3740 = vld [vmem:[%s3695 + $0x160] sm:$0xff]
        %v3741 = vld [vmem:[%s3695 + $0x168] sm:$0xff]
        %v3742 = vld [vmem:[%s3695 + $0x170] sm:$0xff]
        %v3743 = vld [vmem:[%s3695 + $0x178] sm:$0xff]
        %v3744 = vld [vmem:[%s3695 + $0x180] sm:$0xff]
        %v3745 = vld [vmem:[%s3695 + $0x188] sm:$0xff]
        %v3746 = vld [vmem:[%s3695 + $0x190] sm:$0xff]
        %v3747 = vld [vmem:[%s3695 + $0x198] sm:$0xff]
        %v3748 = vld [vmem:[%s3695 + $0x1a0] sm:$0xff]
        %v3749 = vld [vmem:[%s3695 + $0x1a8] sm:$0xff]
        %v3750 = vld [vmem:[%s3695 + $0x1b0] sm:$0xff]
        %v3751 = vld [vmem:[%s3695 + $0x1b8] sm:$0xff]
        %v3752 = vld [vmem:[%s3695 + $0x1c0] sm:$0xff]
        %v3753 = vld [vmem:[%s3695 + $0x1c8] sm:$0xff]
        %v3754 = vld [vmem:[%s3695 + $0x1d0] sm:$0xff]
        %v3755 = vld [vmem:[%s3695 + $0x1d8] sm:$0xff]
        %v3756 = vld [vmem:[%s3695 + $0x1e0] sm:$0xff]
        %v3757 = vld [vmem:[%s3695 + $0x1e8] sm:$0xff]
        %v3758 = vld [vmem:[%s3695 + $0x1f0] sm:$0xff]
        %v3759 = vld [vmem:[%s3695 + $0x1f8] sm:$0xff]
        %v3760 = vld [vmem:[%s3695 + $0x200] sm:$0xff]
        %v3761 = vld [vmem:[%s3695 + $0x208] sm:$0xff]
        %v3762 = vld [vmem:[%s3695 + $0x210] sm:$0xff]
        %v3763 = vld [vmem:[%s3695 + $0x218] sm:$0xff]
        %v3764 = vld [vmem:[%s3695 + $0x220] sm:$0xff]
        %v3765 = vld [vmem:[%s3695 + $0x228] sm:$0xff]
        %v3766 = vld [vmem:[%s3695 + $0x230] sm:$0xff]
        %v3767 = vld [vmem:[%s3695 + $0x238] sm:$0xff]
        %v3768 = vld [vmem:[%s3695 + $0x240] sm:$0xff]
        %v3769 = vld [vmem:[%s3695 + $0x248] sm:$0xff]
        %v3770 = vld [vmem:[%s3695 + $0x250] sm:$0xff]
        %v3771 = vld [vmem:[%s3695 + $0x258] sm:$0xff]
        %v3772 = vld [vmem:[%s3695 + $0x260] sm:$0xff]
        %v3773 = vld [vmem:[%s3695 + $0x268] sm:$0xff]
        %v3774 = vld [vmem:[%s3695 + $0x270] sm:$0xff]
        %v3775 = vld [vmem:[%s3695 + $0x278] sm:$0xff]
        %v3776 = vld [vmem:[%s3695 + $0x280] sm:$0xff]
        %v3777 = vld [vmem:[%s3695 + $0x288] sm:$0xff]
        %v3778 = vld [vmem:[%s3695 + $0x290] sm:$0xff]
        %v3779 = vld [vmem:[%s3695 + $0x298] sm:$0xff]
        %v3780 = vld [vmem:[%s3695 + $0x2a0] sm:$0xff]
        %v3781 = vld [vmem:[%s3695 + $0x2a8] sm:$0xff]
        %v3782 = vld [vmem:[%s3695 + $0x2b0] sm:$0xff]
        %v3783 = vld [vmem:[%s3695 + $0x2b8] sm:$0xff]
        %v3784 = vld [vmem:[%s3695 + $0x2c0] sm:$0xff]
        %v3785 = vld [vmem:[%s3695 + $0x2c8] sm:$0xff]
        %v3786 = vld [vmem:[%s3695 + $0x2d0] sm:$0xff]
        %v3787 = vld [vmem:[%s3695 + $0x2d8] sm:$0xff]
        %v3788 = vld [vmem:[%s3695 + $0x2e0] sm:$0xff]
        %v3789 = vld [vmem:[%s3695 + $0x2e8] sm:$0xff]
        %v3790 = vld [vmem:[%s3695 + $0x2f0] sm:$0xff]
        %v3791 = vld [vmem:[%s3695 + $0x2f8] sm:$0xff]
        %v3792 = vld [vmem:[%s3695 + $0x300] sm:$0xff]
        %v3793 = vld [vmem:[%s3695 + $0x308] sm:$0xff]
        %v3794 = vld [vmem:[%s3695 + $0x310] sm:$0xff]
        %v3795 = vld [vmem:[%s3695 + $0x318] sm:$0xff]
        %v3796 = vld [vmem:[%s3695 + $0x320] sm:$0xff]
        %v3797 = vld [vmem:[%s3695 + $0x328] sm:$0xff]
        %v3798 = vld [vmem:[%s3695 + $0x330] sm:$0xff]
        %v3799 = vld [vmem:[%s3695 + $0x338] sm:$0xff]
        %v3800 = vld [vmem:[%s3695 + $0x340] sm:$0xff]
        %v3801 = vld [vmem:[%s3695 + $0x348] sm:$0xff]
        %v3802 = vld [vmem:[%s3695 + $0x350] sm:$0xff]
        %v3803 = vld [vmem:[%s3695 + $0x358] sm:$0xff]
        %v3804 = vld [vmem:[%s3695 + $0x360] sm:$0xff]
        %v3805 = vld [vmem:[%s3695 + $0x368] sm:$0xff]
        %v3806 = vld [vmem:[%s3695 + $0x370] sm:$0xff]
        %v3807 = vld [vmem:[%s3695 + $0x378] sm:$0xff]
        %3808 = vmatprep.subr.mxu0 %v3697
        %3809 = vmatpush1.msra.mxu0 %v3696
        %3810 = vmatprep.subr.mxu0 %v3699
        %3811 = vmatpush1.msra.mxu0 %v3698
        %3812 = vmatprep.subr.mxu0 %v3701
        %3813 = vmatpush1.msra.mxu0 %v3700
        %3814 = vmatprep.subr.mxu0 %v3703
        %3815 = vmatpush1.msra.mxu0 %v3702
        %3816 = vmatprep.subr.mxu0 %v3705
        %3817 = vmatpush1.msra.mxu0 %v3704
        %3818 = vmatprep.subr.mxu0 %v3707
        %3819 = vmatpush1.msra.mxu0 %v3706
        %3820 = vmatprep.subr.mxu0 %v3709
        %3821 = vmatpush1.msra.mxu0 %v3708
        %3822 = vmatprep.subr.mxu0 %v3711
        %3823 = vmatpush1.msra.mxu0 %v3710
        %3824 = vmatprep.subr.mxu0 %v3713
        %3825 = vmatpush1.msra.mxu0 %v3712
        %3826 = vmatprep.subr.mxu0 %v3715
        %3827 = vmatpush1.msra.mxu0 %v3714
        %3828 = vmatprep.subr.mxu0 %v3717
        %3829 = vmatpush1.msra.mxu0 %v3716
        %3830 = vmatprep.subr.mxu0 %v3719
        %3831 = vmatpush1.msra.mxu0 %v3718
        %3832 = vmatprep.subr.mxu0 %v3721
        %3833 = vmatpush1.msra.mxu0 %v3720
        %3834 = vmatprep.subr.mxu0 %v3723
        %3835 = vmatpush1.msra.mxu0 %v3722
        %3836 = vmatprep.subr.mxu0 %v3725
        %3837 = vmatpush1.msra.mxu0 %v3724
        %3838 = vmatprep.subr.mxu0 %v3727
        %3839 = vmatpush1.msra.mxu0 %v3726
        %3840 = vmatprep.subr.mxu0 %v3729
        %3841 = vmatpush1.msra.mxu0 %v3728
        %3842 = vmatprep.subr.mxu0 %v3731
        %3843 = vmatpush1.msra.mxu0 %v3730
        %3844 = vmatprep.subr.mxu0 %v3733
        %3845 = vmatpush1.msra.mxu0 %v3732
        %3846 = vmatprep.subr.mxu0 %v3735
        %3847 = vmatpush1.msra.mxu0 %v3734
        %3848 = vmatprep.subr.mxu0 %v3737
        %3849 = vmatpush1.msra.mxu0 %v3736
        %3850 = vmatprep.subr.mxu0 %v3739
        %3851 = vmatpush1.msra.mxu0 %v3738
        %3852 = vmatprep.subr.mxu0 %v3741
        %3853 = vmatpush1.msra.mxu0 %v3740
        %3854 = vmatprep.subr.mxu0 %v3743
        %3855 = vmatpush1.msra.mxu0 %v3742
        %3856 = vmatprep.subr.mxu0 %v3745
        %3857 = vmatpush1.msra.mxu0 %v3744
        %3858 = vmatprep.subr.mxu0 %v3747
        %3859 = vmatpush1.msra.mxu0 %v3746
        %3860 = vmatprep.subr.mxu0 %v3749
        %3861 = vmatpush1.msra.mxu0 %v3748
        %3862 = vmatprep.subr.mxu0 %v3751
        %3863 = vmatpush1.msra.mxu0 %v3750
        %3864 = vmatprep.subr.mxu0 %v3753
        %3865 = vmatpush1.msra.mxu0 %v3752
        %3866 = vmatprep.subr.mxu0 %v3755
        %3867 = vmatpush1.msra.mxu0 %v3754
        %3868 = vmatprep.subr.mxu0 %v3757
        %3869 = vmatpush1.msra.mxu0 %v3756
        %3870 = vmatprep.subr.mxu0 %v3759
        %3871 = vmatpush1.msra.mxu0 %v3758
        %3872 = vmatprep.mubr.f32.mxu0 %v3435
        %3873 = vmatmul.mubr.f32.gmra.mrb[0].mxu0 %v3434
        %v3874 = vpop.f32.mrb[0].mxu0
        %v3875 = vadd.f32 0.0, %v3874
        %v3876 = vpop.f32.mrb[0].mxu0
        %v3877 = vadd.f32 0.0, %v3876
        %3878 = vdwg.mxu0
        %3879 = vmatprep.subr.mxu0 %v3761
        %3880 = vmatpush1.msra.mxu0 %v3760
        %3881 = vmatprep.subr.mxu0 %v3763
        %3882 = vmatpush1.msra.mxu0 %v3762
        %3883 = vmatprep.subr.mxu0 %v3765
        %3884 = vmatpush1.msra.mxu0 %v3764
        %3885 = vmatprep.subr.mxu0 %v3767
        %3886 = vmatpush1.msra.mxu0 %v3766
        %3887 = vmatprep.subr.mxu0 %v3769
        %3888 = vmatpush1.msra.mxu0 %v3768
        %3889 = vmatprep.subr.mxu0 %v3771
        %3890 = vmatpush1.msra.mxu0 %v3770
        %3891 = vmatprep.subr.mxu0 %v3773
        %3892 = vmatpush1.msra.mxu0 %v3772
        %3893 = vmatprep.subr.mxu0 %v3775
        %3894 = vmatpush1.msra.mxu0 %v3774
        %3895 = vmatprep.subr.mxu0 %v3777
        %3896 = vmatpush1.msra.mxu0 %v3776
        %3897 = vmatprep.subr.mxu0 %v3779
        %3898 = vmatpush1.msra.mxu0 %v3778
        %3899 = vmatprep.subr.mxu0 %v3781
        %3900 = vmatpush1.msra.mxu0 %v3780
        %3901 = vmatprep.subr.mxu0 %v3783
        %3902 = vmatpush1.msra.mxu0 %v3782
        %3903 = vmatprep.subr.mxu0 %v3785
        %3904 = vmatpush1.msra.mxu0 %v3784
        %3905 = vmatprep.subr.mxu0 %v3787
        %3906 = vmatpush1.msra.mxu0 %v3786
        %3907 = vmatprep.subr.mxu0 %v3789
        %3908 = vmatpush1.msra.mxu0 %v3788
        %3909 = vmatprep.subr.mxu0 %v3791
        %3910 = vmatpush1.msra.mxu0 %v3790
        %3911 = vmatprep.subr.mxu0 %v3793
        %3912 = vmatpush1.msra.mxu0 %v3792
        %3913 = vmatprep.subr.mxu0 %v3795
        %3914 = vmatpush1.msra.mxu0 %v3794
        %3915 = vmatprep.subr.mxu0 %v3797
        %3916 = vmatpush1.msra.mxu0 %v3796
        %3917 = vmatprep.subr.mxu0 %v3799
        %3918 = vmatpush1.msra.mxu0 %v3798
        %3919 = vmatprep.subr.mxu0 %v3801
        %3920 = vmatpush1.msra.mxu0 %v3800
        %3921 = vmatprep.subr.mxu0 %v3803
        %3922 = vmatpush1.msra.mxu0 %v3802
        %3923 = vmatprep.subr.mxu0 %v3805
        %3924 = vmatpush1.msra.mxu0 %v3804
        %3925 = vmatprep.subr.mxu0 %v3807
        %3926 = vmatpush1.msra.mxu0 %v3806
        %3927 = vmatprep.subr.mxu0 0.0
        %3928 = vmatpush1.msra.mxu0 0.0
        %3929 = vmatprep.subr.mxu0 0.0
        %3930 = vmatpush1.msra.mxu0 0.0
        %3931 = vmatprep.subr.mxu0 0.0
        %3932 = vmatpush1.msra.mxu0 0.0
        %3933 = vmatprep.subr.mxu0 0.0
        %3934 = vmatpush1.msra.mxu0 0.0
        %3935 = vmatprep.subr.mxu0 0.0
        %3936 = vmatpush1.msra.mxu0 0.0
        %3937 = vmatprep.subr.mxu0 0.0
        %3938 = vmatpush1.msra.mxu0 0.0
        %3939 = vmatprep.subr.mxu0 0.0
        %3940 = vmatpush1.msra.mxu0 0.0
        %3941 = vmatprep.subr.mxu0 0.0
        %3942 = vmatpush1.msra.mxu0 0.0
        %3943 = vmatprep.mubr.f32.mxu0 %v3551
        %3944 = vmatmul.mubr.f32.gmra.mrb[0].mxu0 %v3436
        %v3945 = vpop.f32.mrb[0].mxu0
        %v3946 = vadd.f32 %v3875, %v3945
        %v3947 = vpop.f32.mrb[0].mxu0
        %v3948 = vadd.f32 %v3877, %v3947
        %3949 = vdwg.mxu0
        %v3950 = vmax.f32 %v3691, %v3946
        %v3951 = vmax.f32 %v3693, %v3948
        %v3952 = vld [vmem:[#allocation15] sm:$0xff]
        %v3953 = vld [vmem:[#allocation15 + $0x8] sm:$0xff]
        %v3954 = vld [vmem:[#allocation15 + $0x10] sm:$0xff]
        %v3955 = vld [vmem:[#allocation15 + $0x18] sm:$0xff]
        %v3956 = vld [vmem:[#allocation15 + $0x20] sm:$0xff]
        %v3957 = vld [vmem:[#allocation15 + $0x28] sm:$0xff]
        %v3958 = vld [vmem:[#allocation15 + $0x30] sm:$0xff]
        %v3959 = vld [vmem:[#allocation15 + $0x38] sm:$0xff]
        %v3960 = vld [vmem:[#allocation15 + $0x40] sm:$0xff]
        %v3961 = vld [vmem:[#allocation15 + $0x48] sm:$0xff]
        %v3962 = vld [vmem:[#allocation15 + $0x50] sm:$0xff]
        %v3963 = vld [vmem:[#allocation15 + $0x58] sm:$0xff]
        %v3964 = vld [vmem:[#allocation15 + $0x60] sm:$0xff]
        %v3965 = vld [vmem:[#allocation15 + $0x68] sm:$0xff]
        %v3966 = vld [vmem:[#allocation15 + $0x70] sm:$0xff]
        %v3967 = vld [vmem:[#allocation15 + $0x78] sm:$0xff]
        %v3968 = vld [vmem:[#allocation15 + $0x80] sm:$0xff]
        %v3969 = vld [vmem:[#allocation15 + $0x88] sm:$0xff]
        %v3970 = vld [vmem:[#allocation15 + $0x90] sm:$0xff]
        %v3971 = vld [vmem:[#allocation15 + $0x98] sm:$0xff]
        %v3972 = vld [vmem:[#allocation15 + $0xa0] sm:$0xff]
        %v3973 = vld [vmem:[#allocation15 + $0xa8] sm:$0xff]
        %v3974 = vld [vmem:[#allocation15 + $0xb0] sm:$0xff]
        %v3975 = vld [vmem:[#allocation15 + $0xb8] sm:$0xff]
        %v3976 = vld [vmem:[#allocation15 + $0xc0] sm:$0xff]
        %v3977 = vld [vmem:[#allocation15 + $0xc8] sm:$0xff]
        %v3978 = vld [vmem:[#allocation15 + $0xd0] sm:$0xff]
        %v3979 = vld [vmem:[#allocation15 + $0xd8] sm:$0xff]
        %s3980 = scalar_lea.vmem [#allocation15], 224
        %v3981 = vld [vmem:[%s3980] sm:$0xff]
        %v3982 = vld [vmem:[%s3980 + $0x8] sm:$0xff]
        %v3983 = vld [vmem:[%s3980 + $0x10] sm:$0xff]
        %v3984 = vld [vmem:[%s3980 + $0x18] sm:$0xff]
        %v3985 = vld [vmem:[%s3980 + $0x20] sm:$0xff]
        %v3986 = vld [vmem:[%s3980 + $0x28] sm:$0xff]
        %v3987 = vld [vmem:[%s3980 + $0x30] sm:$0xff]
        %v3988 = vld [vmem:[%s3980 + $0x38] sm:$0xff]
        %v3989 = vld [vmem:[%s3980 + $0x40] sm:$0xff]
        %v3990 = vld [vmem:[%s3980 + $0x48] sm:$0xff]
        %v3991 = vld [vmem:[%s3980 + $0x50] sm:$0xff]
        %v3992 = vld [vmem:[%s3980 + $0x58] sm:$0xff]
        %v3993 = vld [vmem:[%s3980 + $0x60] sm:$0xff]
        %v3994 = vld [vmem:[%s3980 + $0x68] sm:$0xff]
        %v3995 = vld [vmem:[%s3980 + $0x70] sm:$0xff]
        %v3996 = vld [vmem:[%s3980 + $0x78] sm:$0xff]
        %v3997 = vld [vmem:[%s3980 + $0x80] sm:$0xff]
        %v3998 = vld [vmem:[%s3980 + $0x88] sm:$0xff]
        %v3999 = vld [vmem:[%s3980 + $0x90] sm:$0xff]
        %v4000 = vld [vmem:[%s3980 + $0x98] sm:$0xff]
        %v4001 = vld [vmem:[%s3980 + $0xa0] sm:$0xff]
        %v4002 = vld [vmem:[%s3980 + $0xa8] sm:$0xff]
        %v4003 = vld [vmem:[%s3980 + $0xb0] sm:$0xff]
        %v4004 = vld [vmem:[%s3980 + $0xb8] sm:$0xff]
        %v4005 = vld [vmem:[%s3980 + $0xc0] sm:$0xff]
        %v4006 = vld [vmem:[%s3980 + $0xc8] sm:$0xff]
        %v4007 = vld [vmem:[%s3980 + $0xd0] sm:$0xff]
        %v4008 = vld [vmem:[%s3980 + $0xd8] sm:$0xff]
        %v4011 = vrot.slane %v3950, 1
        %v4012 = vrot.slane %v3951, 1
        %v4014 = vsel %vm2205, %v4012, 0
        %4016 = vmatprep.subr.mxu0 0.0
        %4017 = vmatpush1.msra.mxu0 %v3981
        %4018 = vmatprep.subr.mxu0 0.0
        %4019 = vmatpush1.msra.mxu0 %v3982
        %4020 = vmatprep.subr.mxu0 0.0
        %4021 = vmatpush1.msra.mxu0 %v3983
        %4022 = vmatprep.subr.mxu0 0.0
        %4023 = vmatpush1.msra.mxu0 %v3984
        %4024 = vmatprep.subr.mxu0 0.0
        %4025 = vmatpush1.msra.mxu0 %v3985
        %4026 = vmatprep.subr.mxu0 0.0
        %4027 = vmatpush1.msra.mxu0 %v3986
        %4028 = vmatprep.subr.mxu0 0.0
        %4029 = vmatpush1.msra.mxu0 %v3987
        %4030 = vmatprep.subr.mxu0 0.0
        %4031 = vmatpush1.msra.mxu0 %v3988
        %4032 = vmatprep.subr.mxu0 0.0
        %4033 = vmatpush1.msra.mxu0 %v3989
        %4034 = vmatprep.subr.mxu0 0.0
        %4035 = vmatpush1.msra.mxu0 %v3990
        %4036 = vmatprep.subr.mxu0 0.0
        %4037 = vmatpush1.msra.mxu0 %v3991
        %4038 = vmatprep.subr.mxu0 0.0
        %4039 = vmatpush1.msra.mxu0 %v3992
        %4040 = vmatprep.subr.mxu0 0.0
        %4041 = vmatpush1.msra.mxu0 %v3993
        %4042 = vmatprep.subr.mxu0 0.0
        %4043 = vmatpush1.msra.mxu0 %v3994
        %4044 = vmatprep.subr.mxu0 0.0
        %4045 = vmatpush1.msra.mxu0 %v3995
        %4046 = vmatprep.subr.mxu0 0.0
        %4047 = vmatpush1.msra.mxu0 %v3996
        %4048 = vmatprep.subr.mxu0 0.0
        %4049 = vmatpush1.msra.mxu0 %v3997
        %4050 = vmatprep.subr.mxu0 0.0
        %4051 = vmatpush1.msra.mxu0 %v3998
        %4052 = vmatprep.subr.mxu0 0.0
        %4053 = vmatpush1.msra.mxu0 %v3999
        %4054 = vmatprep.subr.mxu0 0.0
        %4055 = vmatpush1.msra.mxu0 %v4000
        %4056 = vmatprep.subr.mxu0 0.0
        %4057 = vmatpush1.msra.mxu0 %v4001
        %4058 = vmatprep.subr.mxu0 0.0
        %4059 = vmatpush1.msra.mxu0 %v4002
        %4060 = vmatprep.subr.mxu0 0.0
        %4061 = vmatpush1.msra.mxu0 %v4003
        %4062 = vmatprep.subr.mxu0 0.0
        %4063 = vmatpush1.msra.mxu0 %v4004
        %4064 = vmatprep.subr.mxu0 0.0
        %4065 = vmatpush1.msra.mxu0 %v4005
        %4066 = vmatprep.subr.mxu0 0.0
        %4067 = vmatpush1.msra.mxu0 %v4006
        %4068 = vmatprep.subr.mxu0 0.0
        %4069 = vmatpush1.msra.mxu0 %v4007
        %4070 = vmatprep.subr.mxu0 0.0
        %4071 = vmatpush1.msra.mxu0 %v4008
        %4072 = vmatprep.subr.mxu0 0.0
        %4073 = vmatpush1.msra.mxu0 0.0
        %4074 = vmatprep.subr.mxu0 0.0
        %4075 = vmatpush1.msra.mxu0 0.0
        %4076 = vmatprep.subr.mxu0 0.0
        %4077 = vmatpush1.msra.mxu0 0.0
        %4078 = vmatprep.subr.mxu0 0.0
        %4079 = vmatpush1.msra.mxu0 0.0
        %4080 = vmatprep.mubr.f32.mxu0 %v4014
        %4081 = vmatmul.mubr.f32.gmra.mrb[0].mxu0 %v4011
        %v4082 = vpop.f32.mrb[0].mxu0
        %v4083 = vadd.f32 0.0, %v4082
        %v4084 = vpop.f32.mrb[0].mxu0
        %4085 = vdwg.mxu0
        %v4086 = vsel %vm2205, %v3951, 0
        %4088 = vmatprep.subr.mxu0 0.0
        %4089 = vmatpush1.msra.mxu0 %v3952
        %4090 = vmatprep.subr.mxu0 0.0
        %4091 = vmatpush1.msra.mxu0 %v3953
        %4092 = vmatprep.subr.mxu0 0.0
        %4093 = vmatpush1.msra.mxu0 %v3954
        %4094 = vmatprep.subr.mxu0 0.0
        %4095 = vmatpush1.msra.mxu0 %v3955
        %4096 = vmatprep.subr.mxu0 0.0
        %4097 = vmatpush1.msra.mxu0 %v3956
        %4098 = vmatprep.subr.mxu0 0.0
        %4099 = vmatpush1.msra.mxu0 %v3957
        %4100 = vmatprep.subr.mxu0 0.0
        %4101 = vmatpush1.msra.mxu0 %v3958
        %4102 = vmatprep.subr.mxu0 0.0
        %4103 = vmatpush1.msra.mxu0 %v3959
        %4104 = vmatprep.subr.mxu0 0.0
        %4105 = vmatpush1.msra.mxu0 %v3960
        %4106 = vmatprep.subr.mxu0 0.0
        %4107 = vmatpush1.msra.mxu0 %v3961
        %4108 = vmatprep.subr.mxu0 0.0
        %4109 = vmatpush1.msra.mxu0 %v3962
        %4110 = vmatprep.subr.mxu0 0.0
        %4111 = vmatpush1.msra.mxu0 %v3963
        %4112 = vmatprep.subr.mxu0 0.0
        %4113 = vmatpush1.msra.mxu0 %v3964
        %4114 = vmatprep.subr.mxu0 0.0
        %4115 = vmatpush1.msra.mxu0 %v3965
        %4116 = vmatprep.subr.mxu0 0.0
        %4117 = vmatpush1.msra.mxu0 %v3966
        %4118 = vmatprep.subr.mxu0 0.0
        %4119 = vmatpush1.msra.mxu0 %v3967
        %4120 = vmatprep.subr.mxu0 0.0
        %4121 = vmatpush1.msra.mxu0 %v3968
        %4122 = vmatprep.subr.mxu0 0.0
        %4123 = vmatpush1.msra.mxu0 %v3969
        %4124 = vmatprep.subr.mxu0 0.0
        %4125 = vmatpush1.msra.mxu0 %v3970
        %4126 = vmatprep.subr.mxu0 0.0
        %4127 = vmatpush1.msra.mxu0 %v3971
        %4128 = vmatprep.subr.mxu0 0.0
        %4129 = vmatpush1.msra.mxu0 %v3972
        %4130 = vmatprep.subr.mxu0 0.0
        %4131 = vmatpush1.msra.mxu0 %v3973
        %4132 = vmatprep.subr.mxu0 0.0
        %4133 = vmatpush1.msra.mxu0 %v3974
        %4134 = vmatprep.subr.mxu0 0.0
        %4135 = vmatpush1.msra.mxu0 %v3975
        %4136 = vmatprep.subr.mxu0 0.0
        %4137 = vmatpush1.msra.mxu0 %v3976
        %4138 = vmatprep.subr.mxu0 0.0
        %4139 = vmatpush1.msra.mxu0 %v3977
        %4140 = vmatprep.subr.mxu0 0.0
        %4141 = vmatpush1.msra.mxu0 %v3978
        %4142 = vmatprep.subr.mxu0 0.0
        %4143 = vmatpush1.msra.mxu0 %v3979
        %4144 = vmatprep.subr.mxu0 0.0
        %4145 = vmatpush1.msra.mxu0 0.0
        %4146 = vmatprep.subr.mxu0 0.0
        %4147 = vmatpush1.msra.mxu0 0.0
        %4148 = vmatprep.subr.mxu0 0.0
        %4149 = vmatpush1.msra.mxu0 0.0
        %4150 = vmatprep.subr.mxu0 0.0
        %4151 = vmatpush1.msra.mxu0 0.0
        %4152 = vmatprep.mubr.f32.mxu0 %v4086
        %4153 = vmatmul.mubr.f32.gmra.mrb[0].mxu0 %v3950
        %v4154 = vpop.f32.mrb[0].mxu0
        %v4155 = vadd.f32 %v4083, %v4154
        %v4156 = vpop.f32.mrb[0].mxu0
        %4157 = vdwg.mxu0
        %s4158 = scalar_lea.vmem [#allocation15], 448
        %v4159 = vld [vmem:[%s4158] sm:$0xff]
        %v4160 = vld [vmem:[%s4158 + $0x8] sm:$0xff]
        %v4161 = vld [vmem:[%s4158 + $0x10] sm:$0xff]
        %v4162 = vld [vmem:[%s4158 + $0x18] sm:$0xff]
        %v4163 = vld [vmem:[%s4158 + $0x20] sm:$0xff]
        %v4164 = vld [vmem:[%s4158 + $0x28] sm:$0xff]
        %v4165 = vld [vmem:[%s4158 + $0x30] sm:$0xff]
        %v4166 = vld [vmem:[%s4158 + $0x38] sm:$0xff]
        %v4167 = vld [vmem:[%s4158 + $0x40] sm:$0xff]
        %v4168 = vld [vmem:[%s4158 + $0x48] sm:$0xff]
        %v4169 = vld [vmem:[%s4158 + $0x50] sm:$0xff]
        %v4170 = vld [vmem:[%s4158 + $0x58] sm:$0xff]
        %v4171 = vld [vmem:[%s4158 + $0x60] sm:$0xff]
        %v4172 = vld [vmem:[%s4158 + $0x68] sm:$0xff]
        %v4173 = vld [vmem:[%s4158 + $0x70] sm:$0xff]
        %v4174 = vld [vmem:[%s4158 + $0x78] sm:$0xff]
        %v4175 = vld [vmem:[%s4158 + $0x80] sm:$0xff]
        %v4176 = vld [vmem:[%s4158 + $0x88] sm:$0xff]
        %v4177 = vld [vmem:[%s4158 + $0x90] sm:$0xff]
        %v4178 = vld [vmem:[%s4158 + $0x98] sm:$0xff]
        %v4179 = vld [vmem:[%s4158 + $0xa0] sm:$0xff]
        %v4180 = vld [vmem:[%s4158 + $0xa8] sm:$0xff]
        %v4181 = vld [vmem:[%s4158 + $0xb0] sm:$0xff]
        %v4182 = vld [vmem:[%s4158 + $0xb8] sm:$0xff]
        %v4183 = vld [vmem:[%s4158 + $0xc0] sm:$0xff]
        %v4184 = vld [vmem:[%s4158 + $0xc8] sm:$0xff]
        %v4185 = vld [vmem:[%s4158 + $0xd0] sm:$0xff]
        %v4186 = vld [vmem:[%s4158 + $0xd8] sm:$0xff]
        %v4187 = vrot.slane %v3950, 2
        %v4188 = vrot.slane %v3951, 2
        %v4190 = vsel %vm2205, %v4188, 0
        %4192 = vmatprep.subr.mxu0 0.0
        %4193 = vmatpush1.msra.mxu0 %v4159
        %4194 = vmatprep.subr.mxu0 0.0
        %4195 = vmatpush1.msra.mxu0 %v4160
        %4196 = vmatprep.subr.mxu0 0.0
        %4197 = vmatpush1.msra.mxu0 %v4161
        %4198 = vmatprep.subr.mxu0 0.0
        %4199 = vmatpush1.msra.mxu0 %v4162
        %4200 = vmatprep.subr.mxu0 0.0
        %4201 = vmatpush1.msra.mxu0 %v4163
        %4202 = vmatprep.subr.mxu0 0.0
        %4203 = vmatpush1.msra.mxu0 %v4164
        %4204 = vmatprep.subr.mxu0 0.0
        %4205 = vmatpush1.msra.mxu0 %v4165
        %4206 = vmatprep.subr.mxu0 0.0
        %4207 = vmatpush1.msra.mxu0 %v4166
        %4208 = vmatprep.subr.mxu0 0.0
        %4209 = vmatpush1.msra.mxu0 %v4167
        %4210 = vmatprep.subr.mxu0 0.0
        %4211 = vmatpush1.msra.mxu0 %v4168
        %4212 = vmatprep.subr.mxu0 0.0
        %4213 = vmatpush1.msra.mxu0 %v4169
        %4214 = vmatprep.subr.mxu0 0.0
        %4215 = vmatpush1.msra.mxu0 %v4170
        %4216 = vmatprep.subr.mxu0 0.0
        %4217 = vmatpush1.msra.mxu0 %v4171
        %4218 = vmatprep.subr.mxu0 0.0
        %4219 = vmatpush1.msra.mxu0 %v4172
        %4220 = vmatprep.subr.mxu0 0.0
        %4221 = vmatpush1.msra.mxu0 %v4173
        %4222 = vmatprep.subr.mxu0 0.0
        %4223 = vmatpush1.msra.mxu0 %v4174
        %4224 = vmatprep.subr.mxu0 0.0
        %4225 = vmatpush1.msra.mxu0 %v4175
        %4226 = vmatprep.subr.mxu0 0.0
        %4227 = vmatpush1.msra.mxu0 %v4176
        %4228 = vmatprep.subr.mxu0 0.0
        %4229 = vmatpush1.msra.mxu0 %v4177
        %4230 = vmatprep.subr.mxu0 0.0
        %4231 = vmatpush1.msra.mxu0 %v4178
        %4232 = vmatprep.subr.mxu0 0.0
        %4233 = vmatpush1.msra.mxu0 %v4179
        %4234 = vmatprep.subr.mxu0 0.0
        %4235 = vmatpush1.msra.mxu0 %v4180
        %4236 = vmatprep.subr.mxu0 0.0
        %4237 = vmatpush1.msra.mxu0 %v4181
        %4238 = vmatprep.subr.mxu0 0.0
        %4239 = vmatpush1.msra.mxu0 %v4182
        %4240 = vmatprep.subr.mxu0 0.0
        %4241 = vmatpush1.msra.mxu0 %v4183
        %4242 = vmatprep.subr.mxu0 0.0
        %4243 = vmatpush1.msra.mxu0 %v4184
        %4244 = vmatprep.subr.mxu0 0.0
        %4245 = vmatpush1.msra.mxu0 %v4185
        %4246 = vmatprep.subr.mxu0 0.0
        %4247 = vmatpush1.msra.mxu0 %v4186
        %4248 = vmatprep.subr.mxu0 0.0
        %4249 = vmatpush1.msra.mxu0 0.0
        %4250 = vmatprep.subr.mxu0 0.0
        %4251 = vmatpush1.msra.mxu0 0.0
        %4252 = vmatprep.subr.mxu0 0.0
        %4253 = vmatpush1.msra.mxu0 0.0
        %4254 = vmatprep.subr.mxu0 0.0
        %4255 = vmatpush1.msra.mxu0 0.0
        %4256 = vmatprep.mubr.f32.mxu0 %v4190
        %4257 = vmatmul.mubr.f32.gmra.mrb[0].mxu0 %v4187
        %v4258 = vpop.f32.mrb[0].mxu0
        %v4259 = vadd.f32 0.0, %v4258
        %v4260 = vpop.f32.mrb[0].mxu0
        %4261 = vdwg.mxu0
        %v4262 = vadd.f32 %v4155, %v4259
        %s4263 = scalar_lea.vmem [#allocation15], 672
        %v4264 = vld [vmem:[%s4263] sm:$0xff]
        %v4265 = vld [vmem:[%s4263 + $0x8] sm:$0xff]
        %v4266 = vld [vmem:[%s4263 + $0x10] sm:$0xff]
        %v4267 = vld [vmem:[%s4263 + $0x18] sm:$0xff]
        %v4268 = vld [vmem:[%s4263 + $0x20] sm:$0xff]
        %v4269 = vld [vmem:[%s4263 + $0x28] sm:$0xff]
        %v4270 = vld [vmem:[%s4263 + $0x30] sm:$0xff]
        %v4271 = vld [vmem:[%s4263 + $0x38] sm:$0xff]
        %v4272 = vld [vmem:[%s4263 + $0x40] sm:$0xff]
        %v4273 = vld [vmem:[%s4263 + $0x48] sm:$0xff]
        %v4274 = vld [vmem:[%s4263 + $0x50] sm:$0xff]
        %v4275 = vld [vmem:[%s4263 + $0x58] sm:$0xff]
        %v4276 = vld [vmem:[%s4263 + $0x60] sm:$0xff]
        %v4277 = vld [vmem:[%s4263 + $0x68] sm:$0xff]
        %v4278 = vld [vmem:[%s4263 + $0x70] sm:$0xff]
        %v4279 = vld [vmem:[%s4263 + $0x78] sm:$0xff]
        %v4280 = vld [vmem:[%s4263 + $0x80] sm:$0xff]
        %v4281 = vld [vmem:[%s4263 + $0x88] sm:$0xff]
        %v4282 = vld [vmem:[%s4263 + $0x90] sm:$0xff]
        %v4283 = vld [vmem:[%s4263 + $0x98] sm:$0xff]
        %v4284 = vld [vmem:[%s4263 + $0xa0] sm:$0xff]
        %v4285 = vld [vmem:[%s4263 + $0xa8] sm:$0xff]
        %v4286 = vld [vmem:[%s4263 + $0xb0] sm:$0xff]
        %v4287 = vld [vmem:[%s4263 + $0xb8] sm:$0xff]
        %v4288 = vld [vmem:[%s4263 + $0xc0] sm:$0xff]
        %v4289 = vld [vmem:[%s4263 + $0xc8] sm:$0xff]
        %v4290 = vld [vmem:[%s4263 + $0xd0] sm:$0xff]
        %v4291 = vld [vmem:[%s4263 + $0xd8] sm:$0xff]
        %v4292 = vrot.slane %v3950, 3
        %v4293 = vrot.slane %v3951, 3
        %v4295 = vsel %vm2205, %v4293, 0
        %4297 = vmatprep.subr.mxu0 0.0
        %4298 = vmatpush1.msra.mxu0 %v4264
        %4299 = vmatprep.subr.mxu0 0.0
        %4300 = vmatpush1.msra.mxu0 %v4265
        %4301 = vmatprep.subr.mxu0 0.0
        %4302 = vmatpush1.msra.mxu0 %v4266
        %4303 = vmatprep.subr.mxu0 0.0
        %4304 = vmatpush1.msra.mxu0 %v4267
        %4305 = vmatprep.subr.mxu0 0.0
        %4306 = vmatpush1.msra.mxu0 %v4268
        %4307 = vmatprep.subr.mxu0 0.0
        %4308 = vmatpush1.msra.mxu0 %v4269
        %4309 = vmatprep.subr.mxu0 0.0
        %4310 = vmatpush1.msra.mxu0 %v4270
        %4311 = vmatprep.subr.mxu0 0.0
        %4312 = vmatpush1.msra.mxu0 %v4271
        %4313 = vmatprep.subr.mxu0 0.0
        %4314 = vmatpush1.msra.mxu0 %v4272
        %4315 = vmatprep.subr.mxu0 0.0
        %4316 = vmatpush1.msra.mxu0 %v4273
        %4317 = vmatprep.subr.mxu0 0.0
        %4318 = vmatpush1.msra.mxu0 %v4274
        %4319 = vmatprep.subr.mxu0 0.0
        %4320 = vmatpush1.msra.mxu0 %v4275
        %4321 = vmatprep.subr.mxu0 0.0
        %4322 = vmatpush1.msra.mxu0 %v4276
        %4323 = vmatprep.subr.mxu0 0.0
        %4324 = vmatpush1.msra.mxu0 %v4277
        %4325 = vmatprep.subr.mxu0 0.0
        %4326 = vmatpush1.msra.mxu0 %v4278
        %4327 = vmatprep.subr.mxu0 0.0
        %4328 = vmatpush1.msra.mxu0 %v4279
        %4329 = vmatprep.subr.mxu0 0.0
        %4330 = vmatpush1.msra.mxu0 %v4280
        %4331 = vmatprep.subr.mxu0 0.0
        %4332 = vmatpush1.msra.mxu0 %v4281
        %4333 = vmatprep.subr.mxu0 0.0
        %4334 = vmatpush1.msra.mxu0 %v4282
        %4335 = vmatprep.subr.mxu0 0.0
        %4336 = vmatpush1.msra.mxu0 %v4283
        %4337 = vmatprep.subr.mxu0 0.0
        %4338 = vmatpush1.msra.mxu0 %v4284
        %4339 = vmatprep.subr.mxu0 0.0
        %4340 = vmatpush1.msra.mxu0 %v4285
        %4341 = vmatprep.subr.mxu0 0.0
        %4342 = vmatpush1.msra.mxu0 %v4286
        %4343 = vmatprep.subr.mxu0 0.0
        %4344 = vmatpush1.msra.mxu0 %v4287
        %4345 = vmatprep.subr.mxu0 0.0
        %4346 = vmatpush1.msra.mxu0 %v4288
        %4347 = vmatprep.subr.mxu0 0.0
        %4348 = vmatpush1.msra.mxu0 %v4289
        %4349 = vmatprep.subr.mxu0 0.0
        %4350 = vmatpush1.msra.mxu0 %v4290
        %4351 = vmatprep.subr.mxu0 0.0
        %4352 = vmatpush1.msra.mxu0 %v4291
        %4353 = vmatprep.subr.mxu0 0.0
        %4354 = vmatpush1.msra.mxu0 0.0
        %4355 = vmatprep.subr.mxu0 0.0
        %4356 = vmatpush1.msra.mxu0 0.0
        %4357 = vmatprep.subr.mxu0 0.0
        %4358 = vmatpush1.msra.mxu0 0.0
        %4359 = vmatprep.subr.mxu0 0.0
        %4360 = vmatpush1.msra.mxu0 0.0
        %4361 = vmatprep.mubr.f32.mxu0 %v4295
        %4362 = vmatmul.mubr.f32.gmra.mrb[0].mxu0 %v4292
        %v4363 = vpop.f32.mrb[0].mxu0
        %v4364 = vadd.f32 0.0, %v4363
        %v4365 = vpop.f32.mrb[0].mxu0
        %4366 = vdwg.mxu0
        %v4367 = vadd.f32 %v4262, %v4364
        %s4368 = scalar_lea.vmem [#allocation15], 896
        %v4369 = vld [vmem:[%s4368] sm:$0xff]
        %v4370 = vld [vmem:[%s4368 + $0x8] sm:$0xff]
        %v4371 = vld [vmem:[%s4368 + $0x10] sm:$0xff]
        %v4372 = vld [vmem:[%s4368 + $0x18] sm:$0xff]
        %v4373 = vld [vmem:[%s4368 + $0x20] sm:$0xff]
        %v4374 = vld [vmem:[%s4368 + $0x28] sm:$0xff]
        %v4375 = vld [vmem:[%s4368 + $0x30] sm:$0xff]
        %v4376 = vld [vmem:[%s4368 + $0x38] sm:$0xff]
        %v4377 = vld [vmem:[%s4368 + $0x40] sm:$0xff]
        %v4378 = vld [vmem:[%s4368 + $0x48] sm:$0xff]
        %v4379 = vld [vmem:[%s4368 + $0x50] sm:$0xff]
        %v4380 = vld [vmem:[%s4368 + $0x58] sm:$0xff]
        %v4381 = vld [vmem:[%s4368 + $0x60] sm:$0xff]
        %v4382 = vld [vmem:[%s4368 + $0x68] sm:$0xff]
        %v4383 = vld [vmem:[%s4368 + $0x70] sm:$0xff]
        %v4384 = vld [vmem:[%s4368 + $0x78] sm:$0xff]
        %v4385 = vld [vmem:[%s4368 + $0x80] sm:$0xff]
        %v4386 = vld [vmem:[%s4368 + $0x88] sm:$0xff]
        %v4387 = vld [vmem:[%s4368 + $0x90] sm:$0xff]
        %v4388 = vld [vmem:[%s4368 + $0x98] sm:$0xff]
        %v4389 = vld [vmem:[%s4368 + $0xa0] sm:$0xff]
        %v4390 = vld [vmem:[%s4368 + $0xa8] sm:$0xff]
        %v4391 = vld [vmem:[%s4368 + $0xb0] sm:$0xff]
        %v4392 = vld [vmem:[%s4368 + $0xb8] sm:$0xff]
        %v4393 = vld [vmem:[%s4368 + $0xc0] sm:$0xff]
        %v4394 = vld [vmem:[%s4368 + $0xc8] sm:$0xff]
        %v4395 = vld [vmem:[%s4368 + $0xd0] sm:$0xff]
        %v4396 = vld [vmem:[%s4368 + $0xd8] sm:$0xff]
        %v4397 = vrot.slane %v3950, 4
        %v4398 = vrot.slane %v3951, 4
        %v4400 = vsel %vm2205, %v4398, 0
        %4402 = vmatprep.subr.mxu0 0.0
        %4403 = vmatpush1.msra.mxu0 %v4369
        %4404 = vmatprep.subr.mxu0 0.0
        %4405 = vmatpush1.msra.mxu0 %v4370
        %4406 = vmatprep.subr.mxu0 0.0
        %4407 = vmatpush1.msra.mxu0 %v4371
        %4408 = vmatprep.subr.mxu0 0.0
        %4409 = vmatpush1.msra.mxu0 %v4372
        %4410 = vmatprep.subr.mxu0 0.0
        %4411 = vmatpush1.msra.mxu0 %v4373
        %4412 = vmatprep.subr.mxu0 0.0
        %4413 = vmatpush1.msra.mxu0 %v4374
        %4414 = vmatprep.subr.mxu0 0.0
        %4415 = vmatpush1.msra.mxu0 %v4375
        %4416 = vmatprep.subr.mxu0 0.0
        %4417 = vmatpush1.msra.mxu0 %v4376
        %4418 = vmatprep.subr.mxu0 0.0
        %4419 = vmatpush1.msra.mxu0 %v4377
        %4420 = vmatprep.subr.mxu0 0.0
        %4421 = vmatpush1.msra.mxu0 %v4378
        %4422 = vmatprep.subr.mxu0 0.0
        %4423 = vmatpush1.msra.mxu0 %v4379
        %4424 = vmatprep.subr.mxu0 0.0
        %4425 = vmatpush1.msra.mxu0 %v4380
        %4426 = vmatprep.subr.mxu0 0.0
        %4427 = vmatpush1.msra.mxu0 %v4381
        %4428 = vmatprep.subr.mxu0 0.0
        %4429 = vmatpush1.msra.mxu0 %v4382
        %4430 = vmatprep.subr.mxu0 0.0
        %4431 = vmatpush1.msra.mxu0 %v4383
        %4432 = vmatprep.subr.mxu0 0.0
        %4433 = vmatpush1.msra.mxu0 %v4384
        %4434 = vmatprep.subr.mxu0 0.0
        %4435 = vmatpush1.msra.mxu0 %v4385
        %4436 = vmatprep.subr.mxu0 0.0
        %4437 = vmatpush1.msra.mxu0 %v4386
        %4438 = vmatprep.subr.mxu0 0.0
        %4439 = vmatpush1.msra.mxu0 %v4387
        %4440 = vmatprep.subr.mxu0 0.0
        %4441 = vmatpush1.msra.mxu0 %v4388
        %4442 = vmatprep.subr.mxu0 0.0
        %4443 = vmatpush1.msra.mxu0 %v4389
        %4444 = vmatprep.subr.mxu0 0.0
        %4445 = vmatpush1.msra.mxu0 %v4390
        %4446 = vmatprep.subr.mxu0 0.0
        %4447 = vmatpush1.msra.mxu0 %v4391
        %4448 = vmatprep.subr.mxu0 0.0
        %4449 = vmatpush1.msra.mxu0 %v4392
        %4450 = vmatprep.subr.mxu0 0.0
        %4451 = vmatpush1.msra.mxu0 %v4393
        %4452 = vmatprep.subr.mxu0 0.0
        %4453 = vmatpush1.msra.mxu0 %v4394
        %4454 = vmatprep.subr.mxu0 0.0
        %4455 = vmatpush1.msra.mxu0 %v4395
        %4456 = vmatprep.subr.mxu0 0.0
        %4457 = vmatpush1.msra.mxu0 %v4396
        %4458 = vmatprep.subr.mxu0 0.0
        %4459 = vmatpush1.msra.mxu0 0.0
        %4460 = vmatprep.subr.mxu0 0.0
        %4461 = vmatpush1.msra.mxu0 0.0
        %4462 = vmatprep.subr.mxu0 0.0
        %4463 = vmatpush1.msra.mxu0 0.0
        %4464 = vmatprep.subr.mxu0 0.0
        %4465 = vmatpush1.msra.mxu0 0.0
        %4466 = vmatprep.mubr.f32.mxu0 %v4400
        %4467 = vmatmul.mubr.f32.gmra.mrb[0].mxu0 %v4397
        %v4468 = vpop.f32.mrb[0].mxu0
        %v4469 = vadd.f32 0.0, %v4468
        %v4470 = vpop.f32.mrb[0].mxu0
        %4471 = vdwg.mxu0
        %v4472 = vadd.f32 %v4367, %v4469
        %s4473 = scalar_lea.vmem [#allocation15], 1120
        %v4474 = vld [vmem:[%s4473] sm:$0xff]
        %v4475 = vld [vmem:[%s4473 + $0x8] sm:$0xff]
        %v4476 = vld [vmem:[%s4473 + $0x10] sm:$0xff]
        %v4477 = vld [vmem:[%s4473 + $0x18] sm:$0xff]
        %v4478 = vld [vmem:[%s4473 + $0x20] sm:$0xff]
        %v4479 = vld [vmem:[%s4473 + $0x28] sm:$0xff]
        %v4480 = vld [vmem:[%s4473 + $0x30] sm:$0xff]
        %v4481 = vld [vmem:[%s4473 + $0x38] sm:$0xff]
        %v4482 = vld [vmem:[%s4473 + $0x40] sm:$0xff]
        %v4483 = vld [vmem:[%s4473 + $0x48] sm:$0xff]
        %v4484 = vld [vmem:[%s4473 + $0x50] sm:$0xff]
        %v4485 = vld [vmem:[%s4473 + $0x58] sm:$0xff]
        %v4486 = vld [vmem:[%s4473 + $0x60] sm:$0xff]
        %v4487 = vld [vmem:[%s4473 + $0x68] sm:$0xff]
        %v4488 = vld [vmem:[%s4473 + $0x70] sm:$0xff]
        %v4489 = vld [vmem:[%s4473 + $0x78] sm:$0xff]
        %v4490 = vld [vmem:[%s4473 + $0x80] sm:$0xff]
        %v4491 = vld [vmem:[%s4473 + $0x88] sm:$0xff]
        %v4492 = vld [vmem:[%s4473 + $0x90] sm:$0xff]
        %v4493 = vld [vmem:[%s4473 + $0x98] sm:$0xff]
        %v4494 = vld [vmem:[%s4473 + $0xa0] sm:$0xff]
        %v4495 = vld [vmem:[%s4473 + $0xa8] sm:$0xff]
        %v4496 = vld [vmem:[%s4473 + $0xb0] sm:$0xff]
        %v4497 = vld [vmem:[%s4473 + $0xb8] sm:$0xff]
        %v4498 = vld [vmem:[%s4473 + $0xc0] sm:$0xff]
        %v4499 = vld [vmem:[%s4473 + $0xc8] sm:$0xff]
        %v4500 = vld [vmem:[%s4473 + $0xd0] sm:$0xff]
        %v4501 = vld [vmem:[%s4473 + $0xd8] sm:$0xff]
        %v4502 = vrot.slane %v3950, 5
        %v4503 = vrot.slane %v3951, 5
        %v4505 = vsel %vm2205, %v4503, 0
        %4507 = vmatprep.subr.mxu0 0.0
        %4508 = vmatpush1.msra.mxu0 %v4474
        %4509 = vmatprep.subr.mxu0 0.0
        %4510 = vmatpush1.msra.mxu0 %v4475
        %4511 = vmatprep.subr.mxu0 0.0
        %4512 = vmatpush1.msra.mxu0 %v4476
        %4513 = vmatprep.subr.mxu0 0.0
        %4514 = vmatpush1.msra.mxu0 %v4477
        %4515 = vmatprep.subr.mxu0 0.0
        %4516 = vmatpush1.msra.mxu0 %v4478
        %4517 = vmatprep.subr.mxu0 0.0
        %4518 = vmatpush1.msra.mxu0 %v4479
        %4519 = vmatprep.subr.mxu0 0.0
        %4520 = vmatpush1.msra.mxu0 %v4480
        %4521 = vmatprep.subr.mxu0 0.0
        %4522 = vmatpush1.msra.mxu0 %v4481
        %4523 = vmatprep.subr.mxu0 0.0
        %4524 = vmatpush1.msra.mxu0 %v4482
        %4525 = vmatprep.subr.mxu0 0.0
        %4526 = vmatpush1.msra.mxu0 %v4483
        %4527 = vmatprep.subr.mxu0 0.0
        %4528 = vmatpush1.msra.mxu0 %v4484
        %4529 = vmatprep.subr.mxu0 0.0
        %4530 = vmatpush1.msra.mxu0 %v4485
        %4531 = vmatprep.subr.mxu0 0.0
        %4532 = vmatpush1.msra.mxu0 %v4486
        %4533 = vmatprep.subr.mxu0 0.0
        %4534 = vmatpush1.msra.mxu0 %v4487
        %4535 = vmatprep.subr.mxu0 0.0
        %4536 = vmatpush1.msra.mxu0 %v4488
        %4537 = vmatprep.subr.mxu0 0.0
        %4538 = vmatpush1.msra.mxu0 %v4489
        %4539 = vmatprep.subr.mxu0 0.0
        %4540 = vmatpush1.msra.mxu0 %v4490
        %4541 = vmatprep.subr.mxu0 0.0
        %4542 = vmatpush1.msra.mxu0 %v4491
        %4543 = vmatprep.subr.mxu0 0.0
        %4544 = vmatpush1.msra.mxu0 %v4492
        %4545 = vmatprep.subr.mxu0 0.0
        %4546 = vmatpush1.msra.mxu0 %v4493
        %4547 = vmatprep.subr.mxu0 0.0
        %4548 = vmatpush1.msra.mxu0 %v4494
        %4549 = vmatprep.subr.mxu0 0.0
        %4550 = vmatpush1.msra.mxu0 %v4495
        %4551 = vmatprep.subr.mxu0 0.0
        %4552 = vmatpush1.msra.mxu0 %v4496
        %4553 = vmatprep.subr.mxu0 0.0
        %4554 = vmatpush1.msra.mxu0 %v4497
        %4555 = vmatprep.subr.mxu0 0.0
        %4556 = vmatpush1.msra.mxu0 %v4498
        %4557 = vmatprep.subr.mxu0 0.0
        %4558 = vmatpush1.msra.mxu0 %v4499
        %4559 = vmatprep.subr.mxu0 0.0
        %4560 = vmatpush1.msra.mxu0 %v4500
        %4561 = vmatprep.subr.mxu0 0.0
        %4562 = vmatpush1.msra.mxu0 %v4501
        %4563 = vmatprep.subr.mxu0 0.0
        %4564 = vmatpush1.msra.mxu0 0.0
        %4565 = vmatprep.subr.mxu0 0.0
        %4566 = vmatpush1.msra.mxu0 0.0
        %4567 = vmatprep.subr.mxu0 0.0
        %4568 = vmatpush1.msra.mxu0 0.0
        %4569 = vmatprep.subr.mxu0 0.0
        %4570 = vmatpush1.msra.mxu0 0.0
        %4571 = vmatprep.mubr.f32.mxu0 %v4505
        %4572 = vmatmul.mubr.f32.gmra.mrb[0].mxu0 %v4502
        %v4573 = vpop.f32.mrb[0].mxu0
        %v4574 = vadd.f32 0.0, %v4573
        %v4575 = vpop.f32.mrb[0].mxu0
        %4576 = vdwg.mxu0
        %v4577 = vadd.f32 %v4472, %v4574
        %s4578 = scalar_lea.vmem [#allocation15], 1344
        %v4579 = vld [vmem:[%s4578] sm:$0xff]
        %v4580 = vld [vmem:[%s4578 + $0x8] sm:$0xff]
        %v4581 = vld [vmem:[%s4578 + $0x10] sm:$0xff]
        %v4582 = vld [vmem:[%s4578 + $0x18] sm:$0xff]
        %v4583 = vld [vmem:[%s4578 + $0x20] sm:$0xff]
        %v4584 = vld [vmem:[%s4578 + $0x28] sm:$0xff]
        %v4585 = vld [vmem:[%s4578 + $0x30] sm:$0xff]
        %v4586 = vld [vmem:[%s4578 + $0x38] sm:$0xff]
        %v4587 = vld [vmem:[%s4578 + $0x40] sm:$0xff]
        %v4588 = vld [vmem:[%s4578 + $0x48] sm:$0xff]
        %v4589 = vld [vmem:[%s4578 + $0x50] sm:$0xff]
        %v4590 = vld [vmem:[%s4578 + $0x58] sm:$0xff]
        %v4591 = vld [vmem:[%s4578 + $0x60] sm:$0xff]
        %v4592 = vld [vmem:[%s4578 + $0x68] sm:$0xff]
        %v4593 = vld [vmem:[%s4578 + $0x70] sm:$0xff]
        %v4594 = vld [vmem:[%s4578 + $0x78] sm:$0xff]
        %v4595 = vld [vmem:[%s4578 + $0x80] sm:$0xff]
        %v4596 = vld [vmem:[%s4578 + $0x88] sm:$0xff]
        %v4597 = vld [vmem:[%s4578 + $0x90] sm:$0xff]
        %v4598 = vld [vmem:[%s4578 + $0x98] sm:$0xff]
        %v4599 = vld [vmem:[%s4578 + $0xa0] sm:$0xff]
        %v4600 = vld [vmem:[%s4578 + $0xa8] sm:$0xff]
        %v4601 = vld [vmem:[%s4578 + $0xb0] sm:$0xff]
        %v4602 = vld [vmem:[%s4578 + $0xb8] sm:$0xff]
        %v4603 = vld [vmem:[%s4578 + $0xc0] sm:$0xff]
        %v4604 = vld [vmem:[%s4578 + $0xc8] sm:$0xff]
        %v4605 = vld [vmem:[%s4578 + $0xd0] sm:$0xff]
        %v4606 = vld [vmem:[%s4578 + $0xd8] sm:$0xff]
        %v4607 = vrot.slane %v3950, 6
        %v4608 = vrot.slane %v3951, 6
        %v4610 = vsel %vm2205, %v4608, 0
        %4612 = vmatprep.subr.mxu0 0.0
        %4613 = vmatpush1.msra.mxu0 %v4579
        %4614 = vmatprep.subr.mxu0 0.0
        %4615 = vmatpush1.msra.mxu0 %v4580
        %4616 = vmatprep.subr.mxu0 0.0
        %4617 = vmatpush1.msra.mxu0 %v4581
        %4618 = vmatprep.subr.mxu0 0.0
        %4619 = vmatpush1.msra.mxu0 %v4582
        %4620 = vmatprep.subr.mxu0 0.0
        %4621 = vmatpush1.msra.mxu0 %v4583
        %4622 = vmatprep.subr.mxu0 0.0
        %4623 = vmatpush1.msra.mxu0 %v4584
        %4624 = vmatprep.subr.mxu0 0.0
        %4625 = vmatpush1.msra.mxu0 %v4585
        %4626 = vmatprep.subr.mxu0 0.0
        %4627 = vmatpush1.msra.mxu0 %v4586
        %4628 = vmatprep.subr.mxu0 0.0
        %4629 = vmatpush1.msra.mxu0 %v4587
        %4630 = vmatprep.subr.mxu0 0.0
        %4631 = vmatpush1.msra.mxu0 %v4588
        %4632 = vmatprep.subr.mxu0 0.0
        %4633 = vmatpush1.msra.mxu0 %v4589
        %4634 = vmatprep.subr.mxu0 0.0
        %4635 = vmatpush1.msra.mxu0 %v4590
        %4636 = vmatprep.subr.mxu0 0.0
        %4637 = vmatpush1.msra.mxu0 %v4591
        %4638 = vmatprep.subr.mxu0 0.0
        %4639 = vmatpush1.msra.mxu0 %v4592
        %4640 = vmatprep.subr.mxu0 0.0
        %4641 = vmatpush1.msra.mxu0 %v4593
        %4642 = vmatprep.subr.mxu0 0.0
        %4643 = vmatpush1.msra.mxu0 %v4594
        %4644 = vmatprep.subr.mxu0 0.0
        %4645 = vmatpush1.msra.mxu0 %v4595
        %4646 = vmatprep.subr.mxu0 0.0
        %4647 = vmatpush1.msra.mxu0 %v4596
        %4648 = vmatprep.subr.mxu0 0.0
        %4649 = vmatpush1.msra.mxu0 %v4597
        %4650 = vmatprep.subr.mxu0 0.0
        %4651 = vmatpush1.msra.mxu0 %v4598
        %4652 = vmatprep.subr.mxu0 0.0
        %4653 = vmatpush1.msra.mxu0 %v4599
        %4654 = vmatprep.subr.mxu0 0.0
        %4655 = vmatpush1.msra.mxu0 %v4600
        %4656 = vmatprep.subr.mxu0 0.0
        %4657 = vmatpush1.msra.mxu0 %v4601
        %4658 = vmatprep.subr.mxu0 0.0
        %4659 = vmatpush1.msra.mxu0 %v4602
        %4660 = vmatprep.subr.mxu0 0.0
        %4661 = vmatpush1.msra.mxu0 %v4603
        %4662 = vmatprep.subr.mxu0 0.0
        %4663 = vmatpush1.msra.mxu0 %v4604
        %4664 = vmatprep.subr.mxu0 0.0
        %4665 = vmatpush1.msra.mxu0 %v4605
        %4666 = vmatprep.subr.mxu0 0.0
        %4667 = vmatpush1.msra.mxu0 %v4606
        %4668 = vmatprep.subr.mxu0 0.0
        %4669 = vmatpush1.msra.mxu0 0.0
        %4670 = vmatprep.subr.mxu0 0.0
        %4671 = vmatpush1.msra.mxu0 0.0
        %4672 = vmatprep.subr.mxu0 0.0
        %4673 = vmatpush1.msra.mxu0 0.0
        %4674 = vmatprep.subr.mxu0 0.0
        %4675 = vmatpush1.msra.mxu0 0.0
        %4676 = vmatprep.mubr.f32.mxu0 %v4610
        %4677 = vmatmul.mubr.f32.gmra.mrb[0].mxu0 %v4607
        %v4678 = vpop.f32.mrb[0].mxu0
        %v4679 = vadd.f32 0.0, %v4678
        %v4680 = vpop.f32.mrb[0].mxu0
        %4681 = vdwg.mxu0
        %v4682 = vadd.f32 %v4577, %v4679
        %v4683 = vld [vmem:[#allocation16] sm:$0x1]
        %v4684 = vadd.f32 %v4682, %v4683
        %v4685 = vmax.f32 %v4684, 0.0
        %v4686 = vld [vmem:[%s11] sm:$0xff]
        %v4687 = vld [vmem:[%s11 + $0x8] sm:$0xff]
        %v4688 = vld [vmem:[%s11 + $0x10] sm:$0xff]
        %v4689 = vld [vmem:[%s11 + $0x18] sm:$0xff]
        %v4690 = vld [vmem:[%s11 + $0x20] sm:$0xff]
        %v4691 = vld [vmem:[%s11 + $0x28] sm:$0xff]
        %v4692 = vld [vmem:[%s11 + $0x30] sm:$0xff]
        %v4693 = vld [vmem:[%s11 + $0x38] sm:$0xff]
        %v4694 = vld [vmem:[%s11 + $0x40] sm:$0xff]
        %v4695 = vld [vmem:[%s11 + $0x48] sm:$0xff]
        %v4696 = vld [vmem:[%s11 + $0x50] sm:$0xff]
        %v4697 = vld [vmem:[%s11 + $0x58] sm:$0xff]
        %v4698 = vld [vmem:[%s11 + $0x60] sm:$0xff]
        %v4699 = vld [vmem:[%s11 + $0x68] sm:$0xff]
        %v4700 = vld [vmem:[%s11 + $0x70] sm:$0xff]
        %v4701 = vld [vmem:[%s11 + $0x78] sm:$0xff]
        %v4702 = vld [vmem:[#allocation18] sm:$0x1]
        %4703 = vmatprep.subr.mxu0 0.0
        %4704 = vmatpush1.msra.mxu0 %v4686
        %4705 = vmatprep.subr.mxu0 0.0
        %4706 = vmatpush1.msra.mxu0 %v4687
        %4707 = vmatprep.subr.mxu0 0.0
        %4708 = vmatpush1.msra.mxu0 %v4688
        %4709 = vmatprep.subr.mxu0 0.0
        %4710 = vmatpush1.msra.mxu0 %v4689
        %4711 = vmatprep.subr.mxu0 0.0
        %4712 = vmatpush1.msra.mxu0 %v4690
        %4713 = vmatprep.subr.mxu0 0.0
        %4714 = vmatpush1.msra.mxu0 %v4691
        %4715 = vmatprep.subr.mxu0 0.0
        %4716 = vmatpush1.msra.mxu0 %v4692
        %4717 = vmatprep.subr.mxu0 0.0
        %4718 = vmatpush1.msra.mxu0 %v4693
        %4719 = vmatprep.subr.mxu0 0.0
        %4720 = vmatpush1.msra.mxu0 %v4694
        %4721 = vmatprep.subr.mxu0 0.0
        %4722 = vmatpush1.msra.mxu0 %v4695
        %4723 = vmatprep.subr.mxu0 0.0
        %4724 = vmatpush1.msra.mxu0 %v4696
        %4725 = vmatprep.subr.mxu0 0.0
        %4726 = vmatpush1.msra.mxu0 %v4697
        %4727 = vmatprep.subr.mxu0 0.0
        %4728 = vmatpush1.msra.mxu0 %v4698
        %4729 = vmatprep.subr.mxu0 0.0
        %4730 = vmatpush1.msra.mxu0 %v4699
        %4731 = vmatprep.subr.mxu0 0.0
        %4732 = vmatpush1.msra.mxu0 %v4700
        %4733 = vmatprep.subr.mxu0 0.0
        %4734 = vmatpush1.msra.mxu0 %v4701
        %4735 = vmatprep.subr.mxu0 0.0
        %4736 = vmatpush1.msra.mxu0 0.0
        %4737 = vmatprep.subr.mxu0 0.0
        %4738 = vmatpush1.msra.mxu0 0.0
        %4739 = vmatprep.subr.mxu0 0.0
        %4740 = vmatpush1.msra.mxu0 0.0
        %4741 = vmatprep.subr.mxu0 0.0
        %4742 = vmatpush1.msra.mxu0 0.0
        %4743 = vmatprep.subr.mxu0 0.0
        %4744 = vmatpush1.msra.mxu0 0.0
        %4745 = vmatprep.subr.mxu0 0.0
        %4746 = vmatpush1.msra.mxu0 0.0
        %4747 = vmatprep.subr.mxu0 0.0
        %4748 = vmatpush1.msra.mxu0 0.0
        %4749 = vmatprep.subr.mxu0 0.0
        %4750 = vmatpush1.msra.mxu0 0.0
        %4751 = vmatprep.subr.mxu0 0.0
        %4752 = vmatpush1.msra.mxu0 0.0
        %4753 = vmatprep.subr.mxu0 0.0
        %4754 = vmatpush1.msra.mxu0 0.0
        %4755 = vmatprep.subr.mxu0 0.0
        %4756 = vmatpush1.msra.mxu0 0.0
        %4757 = vmatprep.subr.mxu0 0.0
        %4758 = vmatpush1.msra.mxu0 0.0
        %4759 = vmatprep.subr.mxu0 0.0
        %4760 = vmatpush1.msra.mxu0 0.0
        %4761 = vmatprep.subr.mxu0 0.0
        %4762 = vmatpush1.msra.mxu0 0.0
        %4763 = vmatprep.subr.mxu0 0.0
        %4764 = vmatpush1.msra.mxu0 0.0
        %4765 = vmatprep.subr.mxu0 0.0
        %4766 = vmatpush1.msra.mxu0 0.0
        %4767 = vmatprep.mubr.f32.mxu0 0.0
        %4768 = vmatmul.mubr.f32.gmra.mrb[0].mxu0 %v4685
        %v4769 = vpop.f32.mrb[0].mxu0
        %v4770 = vadd.f32 %v4702, %v4769
        %v4771 = vpop.f32.mrb[0].mxu0
        %4772 = vdwg.mxu0
        %vm4773 = vcmask 73728
        %v4774 = vsel %vm4773, %v4770, -inf
        %4775 = vmax.xlane.f32.xlu0 %v4774
        %v4776 = vpop.xlane.xlu0 %4775
        %v4777 = vsub.f32 %v4770, %v4776
        %v4778 = vmul.f32 %v4777, 1.442695
        %v4779 = vpow.pop %v4778
        %v4780 = vsel %vm4773, %v4779, 0.0
        %4781 = vadd.xlane.f32.xlu0 %v4780
        %v4782 = vpop.xlane.xlu0 %4781
        %v4783 = vlog2.pop %v4782
        %v4784 = vmul.f32 %v4783, 0.6931472
        %v4785 = vsub.f32 %v4777, %v4784
        %4786 = vst.msk [vmem:[%s555] sm:$0x1] %vm4773, %v4785
        %s4787 = sand.u32 %s318, 1
        %s4788 = scalar_lea.sflag [#allocation6], %s4787
        %s4789 = sand.u32 %s318, 1
        %s4790 = scalar_lea.vmem [#allocation19], %s4789
        // Predicated region
        $region109: #{simple_cnn_forward.1} parent=71 // pred_check
          %p4791 = pneg %p328
        $region110: #{simple_cnn_forward.1} parent=71 // pred_check_branch
          %4793 = sbr.rel (%p4791) target = $region112
        $region111: #{simple_cnn_forward.1} parent=71 // pred_region
          %s4795 = ssub.s32 16, 16
          %4796 = vsyncadd %s4788, %s4795
          %s4797 = smul.addr %s32, 16
          %s4798 = scalar_lea.hbm %s13, %s4797
          %s4800 = sshll.u32 %s4790, 4
          %s4801 = int_to_ptr.vmem [resolvable:$true] %s4800
          %4803 = dma.vmem_to_hbm [thread:$0]  %s4801, 16, %s4798, %s4788
        $region112: #{simple_cnn_forward.1} parent=71 // pred_fallthru
          _
      $region72: #{simple_cnn_forward.1} parent=5 // pred_fallthru
        _
      %p4804 = scmp.le.s32.totalorder 2, %s27
      // Predicated region
      $region113: #{simple_cnn_forward.1} parent=5 // pred_check
        %p4805 = pneg %p4804
      $region114: #{simple_cnn_forward.1} parent=5 // pred_check_branch
        %4807 = sbr.rel (%p4805) target = $region116
      $region115: #{simple_cnn_forward.1} parent=5 // pred_region
        %s4808 = ssub.s32 %s27, 2
        // Predicated region
        $region117: #{simple_cnn_forward.1} parent=115 // pred_check
          %p4809 = pneg %p334
        $region118: #{simple_cnn_forward.1} parent=115 // pred_check_branch
          %4811 = sbr.rel (%p4809) target = $region120
        $region119: #{simple_cnn_forward.1} parent=115 // pred_region
          %s4812 = sand.u32 %s319, 1
          %s4813 = scalar_lea.sflag [#allocation6], %s4812
          %s4814 = sand.u32 %s319, 1
          %s4815 = scalar_lea.vmem [#allocation19], %s4814
          %4816 = dma.done %s4813, 16
        $region120: #{simple_cnn_forward.1} parent=115 // pred_fallthru
          _
      $region116: #{simple_cnn_forward.1} parent=5 // pred_fallthru
        _
    $region6: #{simple_cnn_forward.1} parent=1 // loop_footer
      %s31 = sadd.s32 1, %s27
    $region7: #{simple_cnn_forward.1} parent=1 // loop_footer_branch
      %26 = sbr.rel target = $region3
    $region8: #{simple_cnn_forward.1} parent=1 // loop_exit
      _
    %4817 = vsyncpa [#allocation5], 1
    %s4818 = scalar_lea.sflag [#allocation5], 1
    %4819 = vsyncpa %s4818, 1
    %4820 = vsyncpa [#allocation8], 1
    %4821 = vsyncpa [#allocation11], 1
    %4822 = vsyncpa [#allocation14], 1
    %4823 = vsyncpa [#allocation17], 1
    %4824 = vsyncpa [#allocation6], 1
    %s4825 = scalar_lea.sflag [#allocation6], 1
    %4826 = vsyncpa %s4825, 1

</llo_original>
